<compile_context>
chip_gen: v5e
topology: v5e:2x2
jax: 0.10.0
libtpu: 0.0.40
codegen_flags: <defaults>
</compile_context>

<pallas_src>
import jax
import jax.numpy as jnp
from jax.experimental import pallas as pl
from jax.experimental.pallas import tpu as pltpu


# Set to jnp.bfloat16 to feed the MXU bf16 operands (f32 accumulation kept);
# exact f32 by default for fidelity to the PyTorch reference.
_MXU_DTYPE = jnp.float32


# ----------------------------------------------------------------- kernel ---

def _lenet_fused_kernel(
    x_ref,                                   # (28*B, 28) s-major: row = s*B+b
    cb1_ref, cbias1_ref, sel1_ref,           # conv1 banded w / bias / pool sel
    cb2_ref, cbias2_ref, sel2_ref,           # conv2 banded w / bias / pool sel
    g1_ref, fc1b_ref,                        # fc1 (per-row regrouped) / bias
    fc2t_ref, fc2b_ref, fc3t_ref, fc3b_ref,  # fc2 / fc3 (fc3 padded to 128)
    out_ref,                                 # (B, 128) lane-dense logits slab
    p1_ref,                                  # scratch (12*B, 72) f32
):
    f32 = jnp.float32
    B = out_ref.shape[0]           # images per grid step (multiple of 8)
    wdt = cb1_ref.dtype            # MXU operand dtype (f32 or bf16)

    # conv1 (1->6, k5) + bias + ReLU.  Rows oh*B + b, cols oc*24 + ow.
    acc1 = jnp.zeros((24 * B, 144), f32)
    for di in range(5):
        acc1 = acc1 + jnp.dot(
            x_ref[pl.ds(di * B, 24 * B), :].astype(wdt), cb1_ref[di],
            preferred_element_type=f32)
    a1 = jnp.maximum(acc1 + cbias1_ref[...], 0.0).astype(wdt)

    # maxpool1 2x2.  Width half: exact 0/1 selection matmuls (lane side).
    # Height half: elementwise max of two B-row-aligned blocks (batches on M).
    cmax1 = jnp.maximum(
        jnp.dot(a1, sel1_ref[0], preferred_element_type=f32),
        jnp.dot(a1, sel1_ref[1], preferred_element_type=f32))
    for ph in range(12):
        p1_ref[pl.ds(ph * B, B), :] = jnp.maximum(
            cmax1[2 * ph * B:(2 * ph + 1) * B, :],
            cmax1[(2 * ph + 1) * B:(2 * ph + 2) * B, :])

    # conv2 (6->16, k3) + bias + ReLU.  Rows oh2*B + b, cols oc*10 + ow2.
    acc2 = jnp.zeros((10 * B, 160), f32)
    for di in range(3):
        acc2 = acc2 + jnp.dot(
            p1_ref[pl.ds(di * B, 10 * B), :].astype(wdt), cb2_ref[di],
            preferred_element_type=f32)
    a2 = jnp.maximum(acc2 + cbias2_ref[...], 0.0).astype(wdt)

    # maxpool2 2x2 (width via selection matmuls) fused with fc1: the height
    # half-and-flatten is just 5 aligned block-maxes feeding (B,80)@(80,120).
    cmax2 = jnp.maximum(
        jnp.dot(a2, sel2_ref[0], preferred_element_type=f32),
        jnp.dot(a2, sel2_ref[1], preferred_element_type=f32))
    y1 = jnp.zeros((B, 120), f32)
    for ph in range(5):
        blk = jnp.maximum(
            cmax2[2 * ph * B:(2 * ph + 1) * B, :],
            cmax2[(2 * ph + 1) * B:(2 * ph + 2) * B, :])
        y1 = y1 + jnp.dot(blk.astype(wdt), g1_ref[ph],
                          preferred_element_type=f32)
    y1 = jnp.maximum(y1 + fc1b_ref[...], 0.0)

    # fc2 (120->60) + ReLU, fc3 (60->10, padded to 128 lanes) + ReLU.
    y2 = jnp.maximum(
        jnp.dot(y1.astype(wdt), fc2t_ref[...], preferred_element_type=f32)
        + fc2b_ref[...], 0.0)
    y3 = jnp.maximum(
        jnp.dot(y2.astype(wdt), fc3t_ref[...], preferred_element_type=f32)
        + fc3b_ref[...], 0.0)

    out_ref[...] = y3                                  # unmasked (B,128) store


# ------------------------------------------------- init-time preprocessing ---

def init_params(key):
    # Deterministic PyTorch-default-style init: U(-1/sqrt(fan_in), 1/sqrt(fan_in)).
    ks = jax.random.split(key, 10)

    def u(k, shape, fan_in):
        bound = 1.0 / jnp.sqrt(jnp.float32(fan_in))
        return jax.random.uniform(k, shape, jnp.float32, -bound, bound)

    return {
        "conv1_w": u(ks[0], (6, 1, 5, 5), 1 * 5 * 5),
        "conv1_b": u(ks[1], (6,), 1 * 5 * 5),
        "conv2_w": u(ks[2], (16, 6, 3, 3), 6 * 3 * 3),
        "conv2_b": u(ks[3], (16,), 6 * 3 * 3),
        "fc1_w": u(ks[4], (120, 400), 400),
        "fc1_b": u(ks[5], (120,), 400),
        "fc2_w": u(ks[6], (60, 120), 120),
        "fc2_b": u(ks[7], (60,), 120),
        "fc3_w": u(ks[8], (10, 60), 60),
        "fc3_b": u(ks[9], (10,), 60),
    }


def prepare_params(p, mxu_dtype=_MXU_DTYPE):
    """One-time weight preprocessing (layout plumbing at init, not per step)."""
    f32 = jnp.float32
    w1 = p["conv1_w"].astype(f32)          # (6, 1, 5, 5)
    b1 = p["conv1_b"].astype(f32)          # (6,)
    w2 = p["conv2_w"].astype(f32)          # (16, 6, 3, 3)
    b2 = p["conv2_b"].astype(f32)          # (16,)

    # conv1 as banded matmuls over width: cb1[di][ow+dj, oc*24+ow] = w1[oc,0,di,dj]
    oc, ow, dj = jnp.meshgrid(jnp.arange(6), jnp.arange(24), jnp.arange(5),
                              indexing="ij")
    r1 = (ow + dj).reshape(-1)
    c1 = (oc * 24 + ow).reshape(-1)
    cb1 = jnp.zeros((5, 28, 144), f32)
    for di in range(5):
        cb1 = cb1.at[di, r1, c1].set(w1[oc, 0, di, dj].reshape(-1))
    cbias1 = jnp.repeat(b1, 24).reshape(1, 144)

    # pool1 width-halving as exact 0/1 selection matmuls (even / odd columns).
    oc6 = jnp.repeat(jnp.arange(6), 12)
    pw12 = jnp.tile(jnp.arange(12), 6)
    se1 = jnp.zeros((144, 72), f32).at[oc6 * 24 + 2 * pw12, oc6 * 12 + pw12].set(1.0)
    so1 = jnp.zeros((144, 72), f32).at[oc6 * 24 + 2 * pw12 + 1, oc6 * 12 + pw12].set(1.0)
    sel1 = jnp.stack([se1, so1], axis=0)                        # (2, 144, 72)

    # conv2 banded: cb2[di][ic*12 + ow + dj, oc*10 + ow] = w2[oc, ic, di, dj]
    oc2, ow2, ic2, dj2 = jnp.meshgrid(jnp.arange(16), jnp.arange(10),
                                      jnp.arange(6), jnp.arange(3), indexing="ij")
    r2 = (ic2 * 12 + ow2 + dj2).reshape(-1)
    c2 = (oc2 * 10 + ow2).reshape(-1)
    cb2 = jnp.zeros((3, 72, 160), f32)
    for di in range(3):
        cb2 = cb2.at[di, r2, c2].set(w2[oc2, ic2, di, dj2].reshape(-1))
    cbias2 = jnp.repeat(b2, 10).reshape(1, 160)

    # pool2 width-halving selection.
    oc16 = jnp.repeat(jnp.arange(16), 5)
    pw5 = jnp.tile(jnp.arange(5), 16)
    se2 = jnp.zeros((160, 80), f32).at[oc16 * 10 + 2 * pw5, oc16 * 5 + pw5].set(1.0)
    so2 = jnp.zeros((160, 80), f32).at[oc16 * 10 + 2 * pw5 + 1, oc16 * 5 + pw5].set(1.0)
    sel2 = jnp.stack([se2, so2], axis=0)                        # (2, 160, 80)

    # fc1 weight (120, 400) regrouped per pooled row so it consumes the
    # kernel's pooled layout [col = oc*5 + pw] while matching PyTorch's
    # (C,H,W) view(-1, 400) order:  g1[ph][oc*5+pw, j] = fc1_w[j, oc*25+ph*5+pw]
    w1r = p["fc1_w"].astype(f32).reshape(120, 16, 5, 5)
    g1 = jnp.stack([w1r[:, :, ph, :].reshape(120, 80).T for ph in range(5)],
                   axis=0)                                      # (5, 80, 120)

    # fc3 padded to 128 output columns -> fully lane-dense output store.
    fc3t = jnp.zeros((60, 128), f32).at[:, :10].set(p["fc3_w"].astype(f32).T)
    fc3b = jnp.zeros((1, 128), f32).at[0, :10].set(p["fc3_b"].astype(f32))

    return dict(
        cb1=cb1.astype(mxu_dtype), cbias1=cbias1, sel1=sel1.astype(mxu_dtype),
        cb2=cb2.astype(mxu_dtype), cbias2=cbias2, sel2=sel2.astype(mxu_dtype),
        g1=g1.astype(mxu_dtype),
        fc1b=p["fc1_b"].astype(f32).reshape(1, 120),
        fc2t=p["fc2_w"].astype(f32).T.astype(mxu_dtype),
        fc2b=p["fc2_b"].astype(f32).reshape(1, 60),
        fc3t=fc3t.astype(mxu_dtype), fc3b=fc3b,
    )


# ---------------------------------------------------------------- forward ---

_CONST_ORDER = ("cb1", "cbias1", "sel1", "cb2", "cbias2", "sel2",
                "g1", "fc1b", "fc2t", "fc2b", "fc3t", "fc3b")


def net_forward(prep, x, labels=None, block_batch=64):
    # x: (N, 1, 28, 28) NCHW, as the PyTorch module implies (view(-1, 400)).
    n = x.shape[0]
    assert x.shape[1:] == (1, 28, 28), "Net expects 1x28x28 inputs"

    bb = max(8, int(block_batch))
    bb = ((bb + 7) // 8) * 8            # multiple of 8 keeps every slice aligned
    nblocks = -(-n // bb)
    npad = nblocks * bb

    x2 = x.reshape(n, 28, 28).astype(jnp.float32)
    if npad != n:
        x2 = jnp.concatenate(
            [x2, jnp.zeros((npad - n, 28, 28), jnp.float32)], axis=0)

    # Batch-minor ("s-major") layout per block: row = image_row * bb + image_idx.
    # This makes every conv shift / pool-halving / flatten a contiguous,
    # B-row-aligned block operation inside the kernel (layout plumbing only).
    xs = (x2.reshape(nblocks, bb, 28, 28)
             .transpose(0, 2, 1, 3)
             .reshape(nblocks * 28 * bb, 28))

    consts = [prep[k] for k in _CONST_ORDER]
    in_specs = [pl.BlockSpec((28 * bb, 28), lambda i: (i, 0))]
    for c in consts:
        # Tiny constants stay VMEM-resident across the whole grid.
        in_specs.append(pl.BlockSpec(c.shape, lambda i, _nd=c.ndim: (0,) * _nd))

    out = pl.pallas_call(
        _lenet_fused_kernel,
        out_shape=jax.ShapeDtypeStruct((npad, 128), jnp.float32),
        grid=(nblocks,),
        in_specs=in_specs,
        out_specs=pl.BlockSpec((bb, 128), lambda i: (i, 0)),
        scratch_shapes=[pltpu.VMEM((12 * bb, 72), jnp.float32)],
        compiler_params=pltpu.CompilerParams(
            dimension_semantics=("parallel",)),
    )(xs, *consts)

    logits = out[:n, :10]
    result = (logits,)
    if labels is not None:
        # CrossEntropyLoss branch (plain JAX, outside the Pallas kernel).
        logp = jax.nn.log_softmax(logits, axis=-1)
        loss = -jnp.mean(jnp.take_along_axis(
            logp, labels.reshape(-1, 1).astype(jnp.int32), axis=-1))
        result = (loss,) + result
    return result


if __name__ == "__main__":
    key = jax.random.PRNGKey(0)
    pkey, xkey = jax.random.split(key)
    params = init_params(pkey)
    prep = prepare_params(params)

    # The module's forward implies 28x28 single-channel input (view(-1, 16*5*5)).
    x = jax.random.normal(xkey, (16, 1, 28, 28), jnp.float32)

    fwd = jax.jit(net_forward, static_argnames=("block_batch",))
    (logits,) = fwd(prep, x, block_batch=8)   # 2 grid blocks of 8 images
    jax.block_until_ready(logits)

    assert logits.shape == (16, 10) and logits.dtype == jnp.float32
    assert bool(jnp.all(jnp.isfinite(logits)))
    print("KERNEL_OK")
</pallas_src>

<mosaic_0001>
module attributes {stable_mosaic.version = 11 : i64} {
  func.func @_lenet_fused_kernel(%arg0: i32, %arg1: memref<224x28xf32, #tpu.memory_space<vmem>>, %arg2: memref<5x28x144xf32, #tpu.memory_space<vmem>>, %arg3: memref<1x144xf32, #tpu.memory_space<vmem>>, %arg4: memref<2x144x72xf32, #tpu.memory_space<vmem>>, %arg5: memref<3x72x160xf32, #tpu.memory_space<vmem>>, %arg6: memref<1x160xf32, #tpu.memory_space<vmem>>, %arg7: memref<2x160x80xf32, #tpu.memory_space<vmem>>, %arg8: memref<5x80x120xf32, #tpu.memory_space<vmem>>, %arg9: memref<1x120xf32, #tpu.memory_space<vmem>>, %arg10: memref<120x60xf32, #tpu.memory_space<vmem>>, %arg11: memref<1x60xf32, #tpu.memory_space<vmem>>, %arg12: memref<60x128xf32, #tpu.memory_space<vmem>>, %arg13: memref<1x128xf32, #tpu.memory_space<vmem>>, %arg14: memref<8x128xf32, #tpu.memory_space<vmem>>, %arg15: memref<96x72xf32, #tpu.memory_space<vmem>>) attributes {dimension_semantics = [#tpu.dimension_semantics<parallel>], iteration_bounds = array<i64: 2>, scalar_prefetch = 0 : i64, scratch_operands = 1 : i64, tpu.core_type = #tpu.core_type<tc>, window_params = [{transform_indices = @transform_0, window_bounds = array<i64: 224, 28>}, {pipeline_mode = #tpu.pipeline_mode<synchronous>, transform_indices = @transform_1, window_bounds = array<i64: 5, 28, 144>}, {pipeline_mode = #tpu.pipeline_mode<synchronous>, transform_indices = @transform_2, window_bounds = array<i64: 1, 144>}, {pipeline_mode = #tpu.pipeline_mode<synchronous>, transform_indices = @transform_3, window_bounds = array<i64: 2, 144, 72>}, {pipeline_mode = #tpu.pipeline_mode<synchronous>, transform_indices = @transform_4, window_bounds = array<i64: 3, 72, 160>}, {pipeline_mode = #tpu.pipeline_mode<synchronous>, transform_indices = @transform_5, window_bounds = array<i64: 1, 160>}, {pipeline_mode = #tpu.pipeline_mode<synchronous>, transform_indices = @transform_6, window_bounds = array<i64: 2, 160, 80>}, {pipeline_mode = #tpu.pipeline_mode<synchronous>, transform_indices = @transform_7, window_bounds = array<i64: 5, 80, 120>}, {pipeline_mode = #tpu.pipeline_mode<synchronous>, transform_indices = @transform_8, window_bounds = array<i64: 1, 120>}, {pipeline_mode = #tpu.pipeline_mode<synchronous>, transform_indices = @transform_9, window_bounds = array<i64: 120, 60>}, {pipeline_mode = #tpu.pipeline_mode<synchronous>, transform_indices = @transform_10, window_bounds = array<i64: 1, 60>}, {pipeline_mode = #tpu.pipeline_mode<synchronous>, transform_indices = @transform_11, window_bounds = array<i64: 60, 128>}, {pipeline_mode = #tpu.pipeline_mode<synchronous>, transform_indices = @transform_12, window_bounds = array<i64: 1, 128>}, {transform_indices = @transform_13, window_bounds = array<i64: 8, 128>}]} {
    %cst = arith.constant 0.000000e+00 : f32
    %0 = vector.broadcast %cst : f32 to vector<192x144xf32>
    %c0 = arith.constant 0 : index
    %c0_0 = arith.constant 0 : index
    %1 = vector.load %arg1[%c0, %c0_0] : memref<224x28xf32, #tpu.memory_space<vmem>>, vector<192x28xf32>
    %c0_1 = arith.constant 0 : index
    %c0_2 = arith.constant 0 : index
    %c0_3 = arith.constant 0 : index
    %2 = vector.load %arg2[%c0_1, %c0_2, %c0_3] : memref<5x28x144xf32, #tpu.memory_space<vmem>>, vector<1x28x144xf32>
    %3 = vector.shape_cast %2 : vector<1x28x144xf32> to vector<28x144xf32>
    %cst_4 = arith.constant dense<0.000000e+00> : vector<192x144xf32>
    %4 = tpu.matmul %1, %3, %cst_4 {dimension_numbers = #tpu.dot_dimension_numbers<[1], [0], [0], [1], [0, 0, 1, 1], [], []>} : vector<192x28xf32>, vector<28x144xf32>, vector<192x144xf32> -> vector<192x144xf32>
    %5 = arith.addf %0, %4 : vector<192x144xf32>
    %c8 = arith.constant 8 : index
    %c0_5 = arith.constant 0 : index
    %6 = vector.load %arg1[%c8, %c0_5] : memref<224x28xf32, #tpu.memory_space<vmem>>, vector<192x28xf32>
    %c1 = arith.constant 1 : index
    %c0_6 = arith.constant 0 : index
    %c0_7 = arith.constant 0 : index
    %7 = vector.load %arg2[%c1, %c0_6, %c0_7] : memref<5x28x144xf32, #tpu.memory_space<vmem>>, vector<1x28x144xf32>
    %8 = vector.shape_cast %7 : vector<1x28x144xf32> to vector<28x144xf32>
    %cst_8 = arith.constant dense<0.000000e+00> : vector<192x144xf32>
    %9 = tpu.matmul %6, %8, %cst_8 {dimension_numbers = #tpu.dot_dimension_numbers<[1], [0], [0], [1], [0, 0, 1, 1], [], []>} : vector<192x28xf32>, vector<28x144xf32>, vector<192x144xf32> -> vector<192x144xf32>
    %10 = arith.addf %5, %9 : vector<192x144xf32>
    %c16 = arith.constant 16 : index
    %c0_9 = arith.constant 0 : index
    %11 = vector.load %arg1[%c16, %c0_9] : memref<224x28xf32, #tpu.memory_space<vmem>>, vector<192x28xf32>
    %c2 = arith.constant 2 : index
    %c0_10 = arith.constant 0 : index
    %c0_11 = arith.constant 0 : index
    %12 = vector.load %arg2[%c2, %c0_10, %c0_11] : memref<5x28x144xf32, #tpu.memory_space<vmem>>, vector<1x28x144xf32>
    %13 = vector.shape_cast %12 : vector<1x28x144xf32> to vector<28x144xf32>
    %cst_12 = arith.constant dense<0.000000e+00> : vector<192x144xf32>
    %14 = tpu.matmul %11, %13, %cst_12 {dimension_numbers = #tpu.dot_dimension_numbers<[1], [0], [0], [1], [0, 0, 1, 1], [], []>} : vector<192x28xf32>, vector<28x144xf32>, vector<192x144xf32> -> vector<192x144xf32>
    %15 = arith.addf %10, %14 : vector<192x144xf32>
    %c24 = arith.constant 24 : index
    %c0_13 = arith.constant 0 : index
    %16 = vector.load %arg1[%c24, %c0_13] : memref<224x28xf32, #tpu.memory_space<vmem>>, vector<192x28xf32>
    %c3 = arith.constant 3 : index
    %c0_14 = arith.constant 0 : index
    %c0_15 = arith.constant 0 : index
    %17 = vector.load %arg2[%c3, %c0_14, %c0_15] : memref<5x28x144xf32, #tpu.memory_space<vmem>>, vector<1x28x144xf32>
    %18 = vector.shape_cast %17 : vector<1x28x144xf32> to vector<28x144xf32>
    %cst_16 = arith.constant dense<0.000000e+00> : vector<192x144xf32>
    %19 = tpu.matmul %16, %18, %cst_16 {dimension_numbers = #tpu.dot_dimension_numbers<[1], [0], [0], [1], [0, 0, 1, 1], [], []>} : vector<192x28xf32>, vector<28x144xf32>, vector<192x144xf32> -> vector<192x144xf32>
    %20 = arith.addf %15, %19 : vector<192x144xf32>
    %c32 = arith.constant 32 : index
    %c0_17 = arith.constant 0 : index
    %21 = vector.load %arg1[%c32, %c0_17] : memref<224x28xf32, #tpu.memory_space<vmem>>, vector<192x28xf32>
    %c4 = arith.constant 4 : index
    %c0_18 = arith.constant 0 : index
    %c0_19 = arith.constant 0 : index
    %22 = vector.load %arg2[%c4, %c0_18, %c0_19] : memref<5x28x144xf32, #tpu.memory_space<vmem>>, vector<1x28x144xf32>
    %23 = vector.shape_cast %22 : vector<1x28x144xf32> to vector<28x144xf32>
    %cst_20 = arith.constant dense<0.000000e+00> : vector<192x144xf32>
    %24 = tpu.matmul %21, %23, %cst_20 {dimension_numbers = #tpu.dot_dimension_numbers<[1], [0], [0], [1], [0, 0, 1, 1], [], []>} : vector<192x28xf32>, vector<28x144xf32>, vector<192x144xf32> -> vector<192x144xf32>
    %25 = arith.addf %20, %24 : vector<192x144xf32>
    %c0_21 = arith.constant 0 : index
    %c0_22 = arith.constant 0 : index
    %26 = vector.load %arg3[%c0_21, %c0_22] : memref<1x144xf32, #tpu.memory_space<vmem>>, vector<1x144xf32>
    %27 = vector.broadcast %26 : vector<1x144xf32> to vector<192x144xf32>
    %28 = arith.addf %25, %27 : vector<192x144xf32>
    %cst_23 = arith.constant 0.000000e+00 : f32
    %29 = vector.broadcast %cst_23 : f32 to vector<192x144xf32>
    %30 = arith.maximumf %28, %29 : vector<192x144xf32>
    %c0_24 = arith.constant 0 : index
    %c0_25 = arith.constant 0 : index
    %c0_26 = arith.constant 0 : index
    %31 = vector.load %arg4[%c0_24, %c0_25, %c0_26] : memref<2x144x72xf32, #tpu.memory_space<vmem>>, vector<1x144x72xf32>
    %32 = vector.shape_cast %31 : vector<1x144x72xf32> to vector<144x72xf32>
    %cst_27 = arith.constant dense<0.000000e+00> : vector<192x72xf32>
    %33 = tpu.matmul %30, %32, %cst_27 {dimension_numbers = #tpu.dot_dimension_numbers<[1], [0], [0], [1], [0, 0, 1, 1], [], []>} : vector<192x144xf32>, vector<144x72xf32>, vector<192x72xf32> -> vector<192x72xf32>
    %c1_28 = arith.constant 1 : index
    %c0_29 = arith.constant 0 : index
    %c0_30 = arith.constant 0 : index
    %34 = vector.load %arg4[%c1_28, %c0_29, %c0_30] : memref<2x144x72xf32, #tpu.memory_space<vmem>>, vector<1x144x72xf32>
    %35 = vector.shape_cast %34 : vector<1x144x72xf32> to vector<144x72xf32>
    %cst_31 = arith.constant dense<0.000000e+00> : vector<192x72xf32>
    %36 = tpu.matmul %30, %35, %cst_31 {dimension_numbers = #tpu.dot_dimension_numbers<[1], [0], [0], [1], [0, 0, 1, 1], [], []>} : vector<192x144xf32>, vector<144x72xf32>, vector<192x72xf32> -> vector<192x72xf32>
    %37 = arith.maximumf %33, %36 : vector<192x72xf32>
    %38 = vector.extract_strided_slice %37 {offsets = [0, 0], sizes = [8, 72], strides = [1, 1]} : vector<192x72xf32> to vector<8x72xf32>
    %39 = vector.extract_strided_slice %37 {offsets = [8, 0], sizes = [8, 72], strides = [1, 1]} : vector<192x72xf32> to vector<8x72xf32>
    %40 = arith.maximumf %38, %39 : vector<8x72xf32>
    %c0_32 = arith.constant 0 : index
    %c0_33 = arith.constant 0 : index
    %41 = vector.load %arg15[%c0_32, %c0_33] : memref<96x72xf32, #tpu.memory_space<vmem>>, vector<8x72xf32>
    tpu.vector_store %arg15[%c0_32, %c0_33], %40 {strides = array<i32>} : memref<96x72xf32, #tpu.memory_space<vmem>>, vector<8x72xf32>,
    %42 = vector.extract_strided_slice %37 {offsets = [16, 0], sizes = [8, 72], strides = [1, 1]} : vector<192x72xf32> to vector<8x72xf32>
    %43 = vector.extract_strided_slice %37 {offsets = [24, 0], sizes = [8, 72], strides = [1, 1]} : vector<192x72xf32> to vector<8x72xf32>
    %44 = arith.maximumf %42, %43 : vector<8x72xf32>
    %c8_34 = arith.constant 8 : index
    %c0_35 = arith.constant 0 : index
    %45 = vector.load %arg15[%c8_34, %c0_35] : memref<96x72xf32, #tpu.memory_space<vmem>>, vector<8x72xf32>
    tpu.vector_store %arg15[%c8_34, %c0_35], %44 {strides = array<i32>} : memref<96x72xf32, #tpu.memory_space<vmem>>, vector<8x72xf32>,
    %46 = vector.extract_strided_slice %37 {offsets = [32, 0], sizes = [8, 72], strides = [1, 1]} : vector<192x72xf32> to vector<8x72xf32>
    %47 = vector.extract_strided_slice %37 {offsets = [40, 0], sizes = [8, 72], strides = [1, 1]} : vector<192x72xf32> to vector<8x72xf32>
    %48 = arith.maximumf %46, %47 : vector<8x72xf32>
    %c16_36 = arith.constant 16 : index
    %c0_37 = arith.constant 0 : index
    %49 = vector.load %arg15[%c16_36, %c0_37] : memref<96x72xf32, #tpu.memory_space<vmem>>, vector<8x72xf32>
    tpu.vector_store %arg15[%c16_36, %c0_37], %48 {strides = array<i32>} : memref<96x72xf32, #tpu.memory_space<vmem>>, vector<8x72xf32>,
    %50 = vector.extract_strided_slice %37 {offsets = [48, 0], sizes = [8, 72], strides = [1, 1]} : vector<192x72xf32> to vector<8x72xf32>
    %51 = vector.extract_strided_slice %37 {offsets = [56, 0], sizes = [8, 72], strides = [1, 1]} : vector<192x72xf32> to vector<8x72xf32>
    %52 = arith.maximumf %50, %51 : vector<8x72xf32>
    %c24_38 = arith.constant 24 : index
    %c0_39 = arith.constant 0 : index
    %53 = vector.load %arg15[%c24_38, %c0_39] : memref<96x72xf32, #tpu.memory_space<vmem>>, vector<8x72xf32>
    tpu.vector_store %arg15[%c24_38, %c0_39], %52 {strides = array<i32>} : memref<96x72xf32, #tpu.memory_space<vmem>>, vector<8x72xf32>,
    %54 = vector.extract_strided_slice %37 {offsets = [64, 0], sizes = [8, 72], strides = [1, 1]} : vector<192x72xf32> to vector<8x72xf32>
    %55 = vector.extract_strided_slice %37 {offsets = [72, 0], sizes = [8, 72], strides = [1, 1]} : vector<192x72xf32> to vector<8x72xf32>
    %56 = arith.maximumf %54, %55 : vector<8x72xf32>
    %c32_40 = arith.constant 32 : index
    %c0_41 = arith.constant 0 : index
    %57 = vector.load %arg15[%c32_40, %c0_41] : memref<96x72xf32, #tpu.memory_space<vmem>>, vector<8x72xf32>
    tpu.vector_store %arg15[%c32_40, %c0_41], %56 {strides = array<i32>} : memref<96x72xf32, #tpu.memory_space<vmem>>, vector<8x72xf32>,
    %58 = vector.extract_strided_slice %37 {offsets = [80, 0], sizes = [8, 72], strides = [1, 1]} : vector<192x72xf32> to vector<8x72xf32>
    %59 = vector.extract_strided_slice %37 {offsets = [88, 0], sizes = [8, 72], strides = [1, 1]} : vector<192x72xf32> to vector<8x72xf32>
    %60 = arith.maximumf %58, %59 : vector<8x72xf32>
    %c40 = arith.constant 40 : index
    %c0_42 = arith.constant 0 : index
    %61 = vector.load %arg15[%c40, %c0_42] : memref<96x72xf32, #tpu.memory_space<vmem>>, vector<8x72xf32>
    tpu.vector_store %arg15[%c40, %c0_42], %60 {strides = array<i32>} : memref<96x72xf32, #tpu.memory_space<vmem>>, vector<8x72xf32>,
    %62 = vector.extract_strided_slice %37 {offsets = [96, 0], sizes = [8, 72], strides = [1, 1]} : vector<192x72xf32> to vector<8x72xf32>
    %63 = vector.extract_strided_slice %37 {offsets = [104, 0], sizes = [8, 72], strides = [1, 1]} : vector<192x72xf32> to vector<8x72xf32>
    %64 = arith.maximumf %62, %63 : vector<8x72xf32>
    %c48 = arith.constant 48 : index
    %c0_43 = arith.constant 0 : index
    %65 = vector.load %arg15[%c48, %c0_43] : memref<96x72xf32, #tpu.memory_space<vmem>>, vector<8x72xf32>
    tpu.vector_store %arg15[%c48, %c0_43], %64 {strides = array<i32>} : memref<96x72xf32, #tpu.memory_space<vmem>>, vector<8x72xf32>,
    %66 = vector.extract_strided_slice %37 {offsets = [112, 0], sizes = [8, 72], strides = [1, 1]} : vector<192x72xf32> to vector<8x72xf32>
    %67 = vector.extract_strided_slice %37 {offsets = [120, 0], sizes = [8, 72], strides = [1, 1]} : vector<192x72xf32> to vector<8x72xf32>
    %68 = arith.maximumf %66, %67 : vector<8x72xf32>
    %c56 = arith.constant 56 : index
    %c0_44 = arith.constant 0 : index
    %69 = vector.load %arg15[%c56, %c0_44] : memref<96x72xf32, #tpu.memory_space<vmem>>, vector<8x72xf32>
    tpu.vector_store %arg15[%c56, %c0_44], %68 {strides = array<i32>} : memref<96x72xf32, #tpu.memory_space<vmem>>, vector<8x72xf32>,
    %70 = vector.extract_strided_slice %37 {offsets = [128, 0], sizes = [8, 72], strides = [1, 1]} : vector<192x72xf32> to vector<8x72xf32>
    %71 = vector.extract_strided_slice %37 {offsets = [136, 0], sizes = [8, 72], strides = [1, 1]} : vector<192x72xf32> to vector<8x72xf32>
    %72 = arith.maximumf %70, %71 : vector<8x72xf32>
    %c64 = arith.constant 64 : index
    %c0_45 = arith.constant 0 : index
    %73 = vector.load %arg15[%c64, %c0_45] : memref<96x72xf32, #tpu.memory_space<vmem>>, vector<8x72xf32>
    tpu.vector_store %arg15[%c64, %c0_45], %72 {strides = array<i32>} : memref<96x72xf32, #tpu.memory_space<vmem>>, vector<8x72xf32>,
    %74 = vector.extract_strided_slice %37 {offsets = [144, 0], sizes = [8, 72], strides = [1, 1]} : vector<192x72xf32> to vector<8x72xf32>
    %75 = vector.extract_strided_slice %37 {offsets = [152, 0], sizes = [8, 72], strides = [1, 1]} : vector<192x72xf32> to vector<8x72xf32>
    %76 = arith.maximumf %74, %75 : vector<8x72xf32>
    %c72 = arith.constant 72 : index
    %c0_46 = arith.constant 0 : index
    %77 = vector.load %arg15[%c72, %c0_46] : memref<96x72xf32, #tpu.memory_space<vmem>>, vector<8x72xf32>
    tpu.vector_store %arg15[%c72, %c0_46], %76 {strides = array<i32>} : memref<96x72xf32, #tpu.memory_space<vmem>>, vector<8x72xf32>,
    %78 = vector.extract_strided_slice %37 {offsets = [160, 0], sizes = [8, 72], strides = [1, 1]} : vector<192x72xf32> to vector<8x72xf32>
    %79 = vector.extract_strided_slice %37 {offsets = [168, 0], sizes = [8, 72], strides = [1, 1]} : vector<192x72xf32> to vector<8x72xf32>
    %80 = arith.maximumf %78, %79 : vector<8x72xf32>
    %c80 = arith.constant 80 : index
    %c0_47 = arith.constant 0 : index
    %81 = vector.load %arg15[%c80, %c0_47] : memref<96x72xf32, #tpu.memory_space<vmem>>, vector<8x72xf32>
    tpu.vector_store %arg15[%c80, %c0_47], %80 {strides = array<i32>} : memref<96x72xf32, #tpu.memory_space<vmem>>, vector<8x72xf32>,
    %82 = vector.extract_strided_slice %37 {offsets = [176, 0], sizes = [8, 72], strides = [1, 1]} : vector<192x72xf32> to vector<8x72xf32>
    %83 = vector.extract_strided_slice %37 {offsets = [184, 0], sizes = [8, 72], strides = [1, 1]} : vector<192x72xf32> to vector<8x72xf32>
    %84 = arith.maximumf %82, %83 : vector<8x72xf32>
    %c88 = arith.constant 88 : index
    %c0_48 = arith.constant 0 : index
    %85 = vector.load %arg15[%c88, %c0_48] : memref<96x72xf32, #tpu.memory_space<vmem>>, vector<8x72xf32>
    tpu.vector_store %arg15[%c88, %c0_48], %84 {strides = array<i32>} : memref<96x72xf32, #tpu.memory_space<vmem>>, vector<8x72xf32>,
    %cst_49 = arith.constant 0.000000e+00 : f32
    %86 = vector.broadcast %cst_49 : f32 to vector<80x160xf32>
    %c0_50 = arith.constant 0 : index
    %c0_51 = arith.constant 0 : index
    %87 = vector.load %arg15[%c0_50, %c0_51] : memref<96x72xf32, #tpu.memory_space<vmem>>, vector<80x72xf32>
    %c0_52 = arith.constant 0 : index
    %c0_53 = arith.constant 0 : index
    %c0_54 = arith.constant 0 : index
    %88 = vector.load %arg5[%c0_52, %c0_53, %c0_54] : memref<3x72x160xf32, #tpu.memory_space<vmem>>, vector<1x72x160xf32>
    %89 = vector.shape_cast %88 : vector<1x72x160xf32> to vector<72x160xf32>
    %cst_55 = arith.constant dense<0.000000e+00> : vector<80x160xf32>
    %90 = tpu.matmul %87, %89, %cst_55 {dimension_numbers = #tpu.dot_dimension_numbers<[1], [0], [0], [1], [0, 0, 1, 1], [], []>} : vector<80x72xf32>, vector<72x160xf32>, vector<80x160xf32> -> vector<80x160xf32>
    %91 = arith.addf %86, %90 : vector<80x160xf32>
    %c8_56 = arith.constant 8 : index
    %c0_57 = arith.constant 0 : index
    %92 = vector.load %arg15[%c8_56, %c0_57] : memref<96x72xf32, #tpu.memory_space<vmem>>, vector<80x72xf32>
    %c1_58 = arith.constant 1 : index
    %c0_59 = arith.constant 0 : index
    %c0_60 = arith.constant 0 : index
    %93 = vector.load %arg5[%c1_58, %c0_59, %c0_60] : memref<3x72x160xf32, #tpu.memory_space<vmem>>, vector<1x72x160xf32>
    %94 = vector.shape_cast %93 : vector<1x72x160xf32> to vector<72x160xf32>
    %cst_61 = arith.constant dense<0.000000e+00> : vector<80x160xf32>
    %95 = tpu.matmul %92, %94, %cst_61 {dimension_numbers = #tpu.dot_dimension_numbers<[1], [0], [0], [1], [0, 0, 1, 1], [], []>} : vector<80x72xf32>, vector<72x160xf32>, vector<80x160xf32> -> vector<80x160xf32>
    %96 = arith.addf %91, %95 : vector<80x160xf32>
    %c16_62 = arith.constant 16 : index
    %c0_63 = arith.constant 0 : index
    %97 = vector.load %arg15[%c16_62, %c0_63] : memref<96x72xf32, #tpu.memory_space<vmem>>, vector<80x72xf32>
    %c2_64 = arith.constant 2 : index
    %c0_65 = arith.constant 0 : index
    %c0_66 = arith.constant 0 : index
    %98 = vector.load %arg5[%c2_64, %c0_65, %c0_66] : memref<3x72x160xf32, #tpu.memory_space<vmem>>, vector<1x72x160xf32>
    %99 = vector.shape_cast %98 : vector<1x72x160xf32> to vector<72x160xf32>
    %cst_67 = arith.constant dense<0.000000e+00> : vector<80x160xf32>
    %100 = tpu.matmul %97, %99, %cst_67 {dimension_numbers = #tpu.dot_dimension_numbers<[1], [0], [0], [1], [0, 0, 1, 1], [], []>} : vector<80x72xf32>, vector<72x160xf32>, vector<80x160xf32> -> vector<80x160xf32>
    %101 = arith.addf %96, %100 : vector<80x160xf32>
    %c0_68 = arith.constant 0 : index
    %c0_69 = arith.constant 0 : index
    %102 = vector.load %arg6[%c0_68, %c0_69] : memref<1x160xf32, #tpu.memory_space<vmem>>, vector<1x160xf32>
    %103 = vector.broadcast %102 : vector<1x160xf32> to vector<80x160xf32>
    %104 = arith.addf %101, %103 : vector<80x160xf32>
    %cst_70 = arith.constant 0.000000e+00 : f32
    %105 = vector.broadcast %cst_70 : f32 to vector<80x160xf32>
    %106 = arith.maximumf %104, %105 : vector<80x160xf32>
    %c0_71 = arith.constant 0 : index
    %c0_72 = arith.constant 0 : index
    %c0_73 = arith.constant 0 : index
    %107 = vector.load %arg7[%c0_71, %c0_72, %c0_73] : memref<2x160x80xf32, #tpu.memory_space<vmem>>, vector<1x160x80xf32>
    %108 = vector.shape_cast %107 : vector<1x160x80xf32> to vector<160x80xf32>
    %cst_74 = arith.constant dense<0.000000e+00> : vector<80x80xf32>
    %109 = tpu.matmul %106, %108, %cst_74 {dimension_numbers = #tpu.dot_dimension_numbers<[1], [0], [0], [1], [0, 0, 1, 1], [], []>} : vector<80x160xf32>, vector<160x80xf32>, vector<80x80xf32> -> vector<80x80xf32>
    %c1_75 = arith.constant 1 : index
    %c0_76 = arith.constant 0 : index
    %c0_77 = arith.constant 0 : index
    %110 = vector.load %arg7[%c1_75, %c0_76, %c0_77] : memref<2x160x80xf32, #tpu.memory_space<vmem>>, vector<1x160x80xf32>
    %111 = vector.shape_cast %110 : vector<1x160x80xf32> to vector<160x80xf32>
    %cst_78 = arith.constant dense<0.000000e+00> : vector<80x80xf32>
    %112 = tpu.matmul %106, %111, %cst_78 {dimension_numbers = #tpu.dot_dimension_numbers<[1], [0], [0], [1], [0, 0, 1, 1], [], []>} : vector<80x160xf32>, vector<160x80xf32>, vector<80x80xf32> -> vector<80x80xf32>
    %113 = arith.maximumf %109, %112 : vector<80x80xf32>
    %cst_79 = arith.constant 0.000000e+00 : f32
    %114 = vector.broadcast %cst_79 : f32 to vector<8x120xf32>
    %115 = vector.extract_strided_slice %113 {offsets = [0, 0], sizes = [8, 80], strides = [1, 1]} : vector<80x80xf32> to vector<8x80xf32>
    %116 = vector.extract_strided_slice %113 {offsets = [8, 0], sizes = [8, 80], strides = [1, 1]} : vector<80x80xf32> to vector<8x80xf32>
    %117 = arith.maximumf %115, %116 : vector<8x80xf32>
    %c0_80 = arith.constant 0 : index
    %c0_81 = arith.constant 0 : index
    %c0_82 = arith.constant 0 : index
    %118 = vector.load %arg8[%c0_80, %c0_81, %c0_82] : memref<5x80x120xf32, #tpu.memory_space<vmem>>, vector<1x80x120xf32>
    %119 = vector.shape_cast %118 : vector<1x80x120xf32> to vector<80x120xf32>
    %cst_83 = arith.constant dense<0.000000e+00> : vector<8x120xf32>
    %120 = tpu.matmul %117, %119, %cst_83 {dimension_numbers = #tpu.dot_dimension_numbers<[1], [0], [0], [1], [0, 0, 1, 1], [], []>} : vector<8x80xf32>, vector<80x120xf32>, vector<8x120xf32> -> vector<8x120xf32>
    %121 = arith.addf %114, %120 : vector<8x120xf32>
    %122 = vector.extract_strided_slice %113 {offsets = [16, 0], sizes = [8, 80], strides = [1, 1]} : vector<80x80xf32> to vector<8x80xf32>
    %123 = vector.extract_strided_slice %113 {offsets = [24, 0], sizes = [8, 80], strides = [1, 1]} : vector<80x80xf32> to vector<8x80xf32>
    %124 = arith.maximumf %122, %123 : vector<8x80xf32>
    %c1_84 = arith.constant 1 : index
    %c0_85 = arith.constant 0 : index
    %c0_86 = arith.constant 0 : index
    %125 = vector.load %arg8[%c1_84, %c0_85, %c0_86] : memref<5x80x120xf32, #tpu.memory_space<vmem>>, vector<1x80x120xf32>
    %126 = vector.shape_cast %125 : vector<1x80x120xf32> to vector<80x120xf32>
    %cst_87 = arith.constant dense<0.000000e+00> : vector<8x120xf32>
    %127 = tpu.matmul %124, %126, %cst_87 {dimension_numbers = #tpu.dot_dimension_numbers<[1], [0], [0], [1], [0, 0, 1, 1], [], []>} : vector<8x80xf32>, vector<80x120xf32>, vector<8x120xf32> -> vector<8x120xf32>
    %128 = arith.addf %121, %127 : vector<8x120xf32>
    %129 = vector.extract_strided_slice %113 {offsets = [32, 0], sizes = [8, 80], strides = [1, 1]} : vector<80x80xf32> to vector<8x80xf32>
    %130 = vector.extract_strided_slice %113 {offsets = [40, 0], sizes = [8, 80], strides = [1, 1]} : vector<80x80xf32> to vector<8x80xf32>
    %131 = arith.maximumf %129, %130 : vector<8x80xf32>
    %c2_88 = arith.constant 2 : index
    %c0_89 = arith.constant 0 : index
    %c0_90 = arith.constant 0 : index
    %132 = vector.load %arg8[%c2_88, %c0_89, %c0_90] : memref<5x80x120xf32, #tpu.memory_space<vmem>>, vector<1x80x120xf32>
    %133 = vector.shape_cast %132 : vector<1x80x120xf32> to vector<80x120xf32>
    %cst_91 = arith.constant dense<0.000000e+00> : vector<8x120xf32>
    %134 = tpu.matmul %131, %133, %cst_91 {dimension_numbers = #tpu.dot_dimension_numbers<[1], [0], [0], [1], [0, 0, 1, 1], [], []>} : vector<8x80xf32>, vector<80x120xf32>, vector<8x120xf32> -> vector<8x120xf32>
    %135 = arith.addf %128, %134 : vector<8x120xf32>
    %136 = vector.extract_strided_slice %113 {offsets = [48, 0], sizes = [8, 80], strides = [1, 1]} : vector<80x80xf32> to vector<8x80xf32>
    %137 = vector.extract_strided_slice %113 {offsets = [56, 0], sizes = [8, 80], strides = [1, 1]} : vector<80x80xf32> to vector<8x80xf32>
    %138 = arith.maximumf %136, %137 : vector<8x80xf32>
    %c3_92 = arith.constant 3 : index
    %c0_93 = arith.constant 0 : index
    %c0_94 = arith.constant 0 : index
    %139 = vector.load %arg8[%c3_92, %c0_93, %c0_94] : memref<5x80x120xf32, #tpu.memory_space<vmem>>, vector<1x80x120xf32>
    %140 = vector.shape_cast %139 : vector<1x80x120xf32> to vector<80x120xf32>
    %cst_95 = arith.constant dense<0.000000e+00> : vector<8x120xf32>
    %141 = tpu.matmul %138, %140, %cst_95 {dimension_numbers = #tpu.dot_dimension_numbers<[1], [0], [0], [1], [0, 0, 1, 1], [], []>} : vector<8x80xf32>, vector<80x120xf32>, vector<8x120xf32> -> vector<8x120xf32>
    %142 = arith.addf %135, %141 : vector<8x120xf32>
    %143 = vector.extract_strided_slice %113 {offsets = [64, 0], sizes = [8, 80], strides = [1, 1]} : vector<80x80xf32> to vector<8x80xf32>
    %144 = vector.extract_strided_slice %113 {offsets = [72, 0], sizes = [8, 80], strides = [1, 1]} : vector<80x80xf32> to vector<8x80xf32>
    %145 = arith.maximumf %143, %144 : vector<8x80xf32>
    %c4_96 = arith.constant 4 : index
    %c0_97 = arith.constant 0 : index
    %c0_98 = arith.constant 0 : index
    %146 = vector.load %arg8[%c4_96, %c0_97, %c0_98] : memref<5x80x120xf32, #tpu.memory_space<vmem>>, vector<1x80x120xf32>
    %147 = vector.shape_cast %146 : vector<1x80x120xf32> to vector<80x120xf32>
    %cst_99 = arith.constant dense<0.000000e+00> : vector<8x120xf32>
    %148 = tpu.matmul %145, %147, %cst_99 {dimension_numbers = #tpu.dot_dimension_numbers<[1], [0], [0], [1], [0, 0, 1, 1], [], []>} : vector<8x80xf32>, vector<80x120xf32>, vector<8x120xf32> -> vector<8x120xf32>
    %149 = arith.addf %142, %148 : vector<8x120xf32>
    %c0_100 = arith.constant 0 : index
    %c0_101 = arith.constant 0 : index
    %150 = vector.load %arg9[%c0_100, %c0_101] : memref<1x120xf32, #tpu.memory_space<vmem>>, vector<1x120xf32>
    %151 = vector.broadcast %150 : vector<1x120xf32> to vector<8x120xf32>
    %152 = arith.addf %149, %151 : vector<8x120xf32>
    %cst_102 = arith.constant 0.000000e+00 : f32
    %153 = vector.broadcast %cst_102 : f32 to vector<8x120xf32>
    %154 = arith.maximumf %152, %153 : vector<8x120xf32>
    %c0_103 = arith.constant 0 : index
    %c0_104 = arith.constant 0 : index
    %155 = vector.load %arg10[%c0_103, %c0_104] : memref<120x60xf32, #tpu.memory_space<vmem>>, vector<120x60xf32>
    %cst_105 = arith.constant dense<0.000000e+00> : vector<8x60xf32>
    %156 = tpu.matmul %154, %155, %cst_105 {dimension_numbers = #tpu.dot_dimension_numbers<[1], [0], [0], [1], [0, 0, 1, 1], [], []>} : vector<8x120xf32>, vector<120x60xf32>, vector<8x60xf32> -> vector<8x60xf32>
    %c0_106 = arith.constant 0 : index
    %c0_107 = arith.constant 0 : index
    %157 = vector.load %arg11[%c0_106, %c0_107] : memref<1x60xf32, #tpu.memory_space<vmem>>, vector<1x60xf32>
    %158 = vector.broadcast %157 : vector<1x60xf32> to vector<8x60xf32>
    %159 = arith.addf %156, %158 : vector<8x60xf32>
    %cst_108 = arith.constant 0.000000e+00 : f32
    %160 = vector.broadcast %cst_108 : f32 to vector<8x60xf32>
    %161 = arith.maximumf %159, %160 : vector<8x60xf32>
    %c0_109 = arith.constant 0 : index
    %c0_110 = arith.constant 0 : index
    %162 = vector.load %arg12[%c0_109, %c0_110] : memref<60x128xf32, #tpu.memory_space<vmem>>, vector<60x128xf32>
    %cst_111 = arith.constant dense<0.000000e+00> : vector<8x128xf32>
    %163 = tpu.matmul %161, %162, %cst_111 {dimension_numbers = #tpu.dot_dimension_numbers<[1], [0], [0], [1], [0, 0, 1, 1], [], []>} : vector<8x60xf32>, vector<60x128xf32>, vector<8x128xf32> -> vector<8x128xf32>
    %c0_112 = arith.constant 0 : index
    %c0_113 = arith.constant 0 : index
    %164 = vector.load %arg13[%c0_112, %c0_113] : memref<1x128xf32, #tpu.memory_space<vmem>>, vector<1x128xf32>
    %165 = vector.broadcast %164 : vector<1x128xf32> to vector<8x128xf32>
    %166 = arith.addf %163, %165 : vector<8x128xf32>
    %cst_114 = arith.constant 0.000000e+00 : f32
    %167 = vector.broadcast %cst_114 : f32 to vector<8x128xf32>
    %168 = arith.maximumf %166, %167 : vector<8x128xf32>
    %c0_115 = arith.constant 0 : index
    %c0_116 = arith.constant 0 : index
    %169 = vector.load %arg14[%c0_115, %c0_116] : memref<8x128xf32, #tpu.memory_space<vmem>>, vector<8x128xf32>
    tpu.vector_store %arg14[%c0_115, %c0_116], %168 {strides = array<i32>} : memref<8x128xf32, #tpu.memory_space<vmem>>, vector<8x128xf32>,
    return
  }
  func.func @transform_0(%arg0: i32) -> (i32, i32) {
    %c0_i32 = arith.constant 0 : i32
    %c0_i32_0 = arith.constant 0 : i32
    return %arg0, %c0_i32 : i32, i32
  }
  func.func @transform_1(%arg0: i32) -> (i32, i32, i32) {
    %c0_i32 = arith.constant 0 : i32
    %c0_i32_0 = arith.constant 0 : i32
    %c0_i32_1 = arith.constant 0 : i32
    %c0_i32_2 = arith.constant 0 : i32
    return %c0_i32, %c0_i32_0, %c0_i32_1 : i32, i32, i32
  }
  func.func @transform_2(%arg0: i32) -> (i32, i32) {
    %c0_i32 = arith.constant 0 : i32
    %c0_i32_0 = arith.constant 0 : i32
    %c0_i32_1 = arith.constant 0 : i32
    return %c0_i32, %c0_i32_0 : i32, i32
  }
  func.func @transform_3(%arg0: i32) -> (i32, i32, i32) {
    %c0_i32 = arith.constant 0 : i32
    %c0_i32_0 = arith.constant 0 : i32
    %c0_i32_1 = arith.constant 0 : i32
    %c0_i32_2 = arith.constant 0 : i32
    return %c0_i32, %c0_i32_0, %c0_i32_1 : i32, i32, i32
  }
  func.func @transform_4(%arg0: i32) -> (i32, i32, i32) {
    %c0_i32 = arith.constant 0 : i32
    %c0_i32_0 = arith.constant 0 : i32
    %c0_i32_1 = arith.constant 0 : i32
    %c0_i32_2 = arith.constant 0 : i32
    return %c0_i32, %c0_i32_0, %c0_i32_1 : i32, i32, i32
  }
  func.func @transform_5(%arg0: i32) -> (i32, i32) {
    %c0_i32 = arith.constant 0 : i32
    %c0_i32_0 = arith.constant 0 : i32
    %c0_i32_1 = arith.constant 0 : i32
    return %c0_i32, %c0_i32_0 : i32, i32
  }
  func.func @transform_6(%arg0: i32) -> (i32, i32, i32) {
    %c0_i32 = arith.constant 0 : i32
    %c0_i32_0 = arith.constant 0 : i32
    %c0_i32_1 = arith.constant 0 : i32
    %c0_i32_2 = arith.constant 0 : i32
    return %c0_i32, %c0_i32_0, %c0_i32_1 : i32, i32, i32
  }
  func.func @transform_7(%arg0: i32) -> (i32, i32, i32) {
    %c0_i32 = arith.constant 0 : i32
    %c0_i32_0 = arith.constant 0 : i32
    %c0_i32_1 = arith.constant 0 : i32
    %c0_i32_2 = arith.constant 0 : i32
    return %c0_i32, %c0_i32_0, %c0_i32_1 : i32, i32, i32
  }
  func.func @transform_8(%arg0: i32) -> (i32, i32) {
    %c0_i32 = arith.constant 0 : i32
    %c0_i32_0 = arith.constant 0 : i32
    %c0_i32_1 = arith.constant 0 : i32
    return %c0_i32, %c0_i32_0 : i32, i32
  }
  func.func @transform_9(%arg0: i32) -> (i32, i32) {
    %c0_i32 = arith.constant 0 : i32
    %c0_i32_0 = arith.constant 0 : i32
    %c0_i32_1 = arith.constant 0 : i32
    return %c0_i32, %c0_i32_0 : i32, i32
  }
  func.func @transform_10(%arg0: i32) -> (i32, i32) {
    %c0_i32 = arith.constant 0 : i32
    %c0_i32_0 = arith.constant 0 : i32
    %c0_i32_1 = arith.constant 0 : i32
    return %c0_i32, %c0_i32_0 : i32, i32
  }
  func.func @transform_11(%arg0: i32) -> (i32, i32) {
    %c0_i32 = arith.constant 0 : i32
    %c0_i32_0 = arith.constant 0 : i32
    %c0_i32_1 = arith.constant 0 : i32
    return %c0_i32, %c0_i32_0 : i32, i32
  }
  func.func @transform_12(%arg0: i32) -> (i32, i32) {
    %c0_i32 = arith.constant 0 : i32
    %c0_i32_0 = arith.constant 0 : i32
    %c0_i32_1 = arith.constant 0 : i32
    return %c0_i32, %c0_i32_0 : i32, i32
  }
  func.func @transform_13(%arg0: i32) -> (i32, i32) {
    %c0_i32 = arith.constant 0 : i32
    %c0_i32_0 = arith.constant 0 : i32
    return %arg0, %c0_i32 : i32, i32
  }
}

</mosaic_0001>

<llo_original>
// kernel: net_forward.1
$region0: #{net_forward.1}
  #allocation0 [shape = 'u32[]', space=smem, size = 0x4, offset = 0x4, fixed_abs, tag = 'smem constant byte address 0x4 - core index']
  #allocation1 [shape = 'u32[72,128]{1,0:T(1,128)}', space=vmem, size = 0x9000, scoped, tag = 'internal scratch']
  #allocation2 [shape = 'f32[96,72]{1,0:T(8,128)}', space=vmem, size = 0xc000, scoped, tag = 'scratch operand']
  %s0 = inlined_call_operand.vmem [shape: f32[448,28], index: 0, kind: input, shape index: {}]
  %s1 = inlined_call_operand.vmem [shape: f32[5,28,144], index: 1, kind: input, shape index: {}]
  %s2 = inlined_call_operand.vmem [shape: f32[1,144], index: 2, kind: input, shape index: {}]
  %s3 = inlined_call_operand.vmem [shape: f32[2,144,72], index: 3, kind: input, shape index: {}]
  %s4 = inlined_call_operand.vmem [shape: f32[3,72,160], index: 4, kind: input, shape index: {}]
  %s5 = inlined_call_operand.vmem [shape: f32[1,160], index: 5, kind: input, shape index: {}]
  %s6 = inlined_call_operand.vmem [shape: f32[2,160,80], index: 6, kind: input, shape index: {}]
  %s7 = inlined_call_operand.vmem [shape: f32[5,80,120], index: 7, kind: input, shape index: {}]
  %s8 = inlined_call_operand.vmem [shape: f32[1,120], index: 8, kind: input, shape index: {}]
  %s9 = inlined_call_operand.vmem [shape: f32[120,60], index: 9, kind: input, shape index: {}]
  %s10 = inlined_call_operand.vmem [shape: f32[1,60], index: 10, kind: input, shape index: {}]
  %s11 = inlined_call_operand.vmem [shape: f32[60,128], index: 11, kind: input, shape index: {}]
  %s12 = inlined_call_operand.vmem [shape: f32[1,128], index: 12, kind: input, shape index: {}]
  %s13 = inlined_call_operand.hbm [shape: f32[16,128], index: 13, kind: output, shape index: {}]
  %s14 = sld [smem:[#allocation0]]
  $region85: #{net_forward.1} parent=0
    _
  %s16 = ssub.s32 1, %s14
  %s17 = scalar_select 0, %s16, %s14
  $region1: #{net_forward.1} parent=0
    #allocation3 [shape = 'u8[8192]{0}', space=vmem, size = 0x2000, scoped, tag = 'output window, operand 0']
    #allocation4 [shape = 's32[2]{0}', space=sflag, size = 0x8, scoped, tag = 'scoped memory for net_forward.1']
    %18 = vsyncpa [#allocation4], 0
    %s19 = scalar_lea.sflag [#allocation4], 1
    %20 = vsyncpa %s19, 0
    loop: start=0, step=1, limit=4
    $region2: #{net_forward.1} parent=1 // loop_pre_header
      _
    $region3: #{net_forward.1} parent=1 // loop_header
      %s22 = sphi 0, %s26
      %p23 = scmp.ge.s32.totalorder %s22, 4
      %s32 = sphi 0, %s34
      %s35 = sphi 0, %s32
      %s36 = sphi 0, %s35
      %s52 = sphi 0, %s36
      %s56 = sphi 0, %s56
      %s58 = sphi 0, %s56
      %s59 = sphi 0, %s58
      %s73 = sphi 0, %s59
      %s77 = sphi 0, %s77
      %s79 = sphi 0, %s77
      %s80 = sphi 0, %s79
      %s94 = sphi 0, %s80
      %s98 = sphi 0, %s98
      %s100 = sphi 0, %s98
      %s101 = sphi 0, %s100
      %s115 = sphi 0, %s101
      %s119 = sphi 0, %s119
      %s121 = sphi 0, %s119
      %s122 = sphi 0, %s121
      %s136 = sphi 0, %s122
      %s140 = sphi 0, %s140
      %s142 = sphi 0, %s140
      %s143 = sphi 0, %s142
      %s157 = sphi 0, %s143
      %s161 = sphi 0, %s161
      %s163 = sphi 0, %s161
      %s164 = sphi 0, %s163
      %s178 = sphi 0, %s164
      %s182 = sphi 0, %s182
      %s184 = sphi 0, %s182
      %s185 = sphi 0, %s184
      %s199 = sphi 0, %s185
      %s203 = sphi 0, %s203
      %s205 = sphi 0, %s203
      %s206 = sphi 0, %s205
      %s220 = sphi 0, %s206
      %s224 = sphi 0, %s224
      %s226 = sphi 0, %s224
      %s227 = sphi 0, %s226
      %s241 = sphi 0, %s227
      %s245 = sphi 0, %s245
      %s247 = sphi 0, %s245
      %s248 = sphi 0, %s247
      %s262 = sphi 0, %s248
      %s266 = sphi 0, %s266
      %s268 = sphi 0, %s266
      %s269 = sphi 0, %s268
      %s283 = sphi 0, %s269
      %s287 = sphi 0, %s287
      %s289 = sphi 0, %s287
      %s290 = sphi 0, %s289
      %s304 = sphi 0, %s290
      %s310 = sphi 0, %s312
      %s313 = sphi 0, %s310
      %s314 = sphi 0, %s313
      %s330 = sphi 0, %s314
    $region4: #{net_forward.1} parent=1 // loop_header_branch
      %25 = sbr.rel (%p23) target = $region8
    $region5: #{net_forward.1} parent=1 // loop_body
      %s27 = ssub.s32 %s22, 1
      %s28 = ssub.s32 %s22, 2
      %s29 = sadd.s32 %s22, 1
      %s30 = ssub.s32 %s22, %s29
      %p31 = scmp.eq.s32.totalorder %s30, 0
      %s33 = sadd.s32 %s32, 1
      %s34 = scalar_select %p31, %s32, %s33
      %p37 = pneg %p31
      %p38 = scmp.eq.s32.totalorder %s22, 1
      %p39 = por %p37, %p38
      %p40 = scmp.ne.s32.totalorder %s32, %s35
      %p41 = scmp.eq.s32.totalorder %s22, 0
      %p42 = por %p40, %p41
      %p43 = scmp.ne.s32.totalorder %s32, %s35
      %p44 = scmp.eq.s32.totalorder %s27, 1
      %p45 = por %p43, %p44
      %p46 = scmp.ne.s32.totalorder %s35, %s36
      %p47 = scmp.eq.s32.totalorder %s27, 0
      %p48 = por %p46, %p47
      %p49 = scmp.ne.s32.totalorder %s35, %s36
      %p50 = scmp.eq.s32.totalorder %s28, 1
      %p51 = por %p49, %p50
      %p53 = scmp.ne.s32.totalorder %s36, %s52
      %p54 = scmp.eq.s32.totalorder %s28, 0
      %p55 = por %p53, %p54
      %s57 = sadd.s32 %s56, 1
      %p60 = scmp.eq.s32.totalorder %s22, 1
      %p61 = scmp.ne.s32.totalorder %s56, %s58
      %p62 = scmp.eq.s32.totalorder %s22, 0
      %p63 = por %p61, %p62
      %p64 = scmp.ne.s32.totalorder %s56, %s58
      %p65 = scmp.eq.s32.totalorder %s27, 1
      %p66 = por %p64, %p65
      %p67 = scmp.ne.s32.totalorder %s58, %s59
      %p68 = scmp.eq.s32.totalorder %s27, 0
      %p69 = por %p67, %p68
      %p70 = scmp.ne.s32.totalorder %s58, %s59
      %p71 = scmp.eq.s32.totalorder %s28, 1
      %p72 = por %p70, %p71
      %p74 = scmp.ne.s32.totalorder %s59, %s73
      %p75 = scmp.eq.s32.totalorder %s28, 0
      %p76 = por %p74, %p75
      %s78 = sadd.s32 %s77, 1
      %p81 = scmp.eq.s32.totalorder %s22, 1
      %p82 = scmp.ne.s32.totalorder %s77, %s79
      %p83 = scmp.eq.s32.totalorder %s22, 0
      %p84 = por %p82, %p83
      %p85 = scmp.ne.s32.totalorder %s77, %s79
      %p86 = scmp.eq.s32.totalorder %s27, 1
      %p87 = por %p85, %p86
      %p88 = scmp.ne.s32.totalorder %s79, %s80
      %p89 = scmp.eq.s32.totalorder %s27, 0
      %p90 = por %p88, %p89
      %p91 = scmp.ne.s32.totalorder %s79, %s80
      %p92 = scmp.eq.s32.totalorder %s28, 1
      %p93 = por %p91, %p92
      %p95 = scmp.ne.s32.totalorder %s80, %s94
      %p96 = scmp.eq.s32.totalorder %s28, 0
      %p97 = por %p95, %p96
      %s99 = sadd.s32 %s98, 1
      %p102 = scmp.eq.s32.totalorder %s22, 1
      %p103 = scmp.ne.s32.totalorder %s98, %s100
      %p104 = scmp.eq.s32.totalorder %s22, 0
      %p105 = por %p103, %p104
      %p106 = scmp.ne.s32.totalorder %s98, %s100
      %p107 = scmp.eq.s32.totalorder %s27, 1
      %p108 = por %p106, %p107
      %p109 = scmp.ne.s32.totalorder %s100, %s101
      %p110 = scmp.eq.s32.totalorder %s27, 0
      %p111 = por %p109, %p110
      %p112 = scmp.ne.s32.totalorder %s100, %s101
      %p113 = scmp.eq.s32.totalorder %s28, 1
      %p114 = por %p112, %p113
      %p116 = scmp.ne.s32.totalorder %s101, %s115
      %p117 = scmp.eq.s32.totalorder %s28, 0
      %p118 = por %p116, %p117
      %s120 = sadd.s32 %s119, 1
      %p123 = scmp.eq.s32.totalorder %s22, 1
      %p124 = scmp.ne.s32.totalorder %s119, %s121
      %p125 = scmp.eq.s32.totalorder %s22, 0
      %p126 = por %p124, %p125
      %p127 = scmp.ne.s32.totalorder %s119, %s121
      %p128 = scmp.eq.s32.totalorder %s27, 1
      %p129 = por %p127, %p128
      %p130 = scmp.ne.s32.totalorder %s121, %s122
      %p131 = scmp.eq.s32.totalorder %s27, 0
      %p132 = por %p130, %p131
      %p133 = scmp.ne.s32.totalorder %s121, %s122
      %p134 = scmp.eq.s32.totalorder %s28, 1
      %p135 = por %p133, %p134
      %p137 = scmp.ne.s32.totalorder %s122, %s136
      %p138 = scmp.eq.s32.totalorder %s28, 0
      %p139 = por %p137, %p138
      %s141 = sadd.s32 %s140, 1
      %p144 = scmp.eq.s32.totalorder %s22, 1
      %p145 = scmp.ne.s32.totalorder %s140, %s142
      %p146 = scmp.eq.s32.totalorder %s22, 0
      %p147 = por %p145, %p146
      %p148 = scmp.ne.s32.totalorder %s140, %s142
      %p149 = scmp.eq.s32.totalorder %s27, 1
      %p150 = por %p148, %p149
      %p151 = scmp.ne.s32.totalorder %s142, %s143
      %p152 = scmp.eq.s32.totalorder %s27, 0
      %p153 = por %p151, %p152
      %p154 = scmp.ne.s32.totalorder %s142, %s143
      %p155 = scmp.eq.s32.totalorder %s28, 1
      %p156 = por %p154, %p155
      %p158 = scmp.ne.s32.totalorder %s143, %s157
      %p159 = scmp.eq.s32.totalorder %s28, 0
      %p160 = por %p158, %p159
      %s162 = sadd.s32 %s161, 1
      %p165 = scmp.eq.s32.totalorder %s22, 1
      %p166 = scmp.ne.s32.totalorder %s161, %s163
      %p167 = scmp.eq.s32.totalorder %s22, 0
      %p168 = por %p166, %p167
      %p169 = scmp.ne.s32.totalorder %s161, %s163
      %p170 = scmp.eq.s32.totalorder %s27, 1
      %p171 = por %p169, %p170
      %p172 = scmp.ne.s32.totalorder %s163, %s164
      %p173 = scmp.eq.s32.totalorder %s27, 0
      %p174 = por %p172, %p173
      %p175 = scmp.ne.s32.totalorder %s163, %s164
      %p176 = scmp.eq.s32.totalorder %s28, 1
      %p177 = por %p175, %p176
      %p179 = scmp.ne.s32.totalorder %s164, %s178
      %p180 = scmp.eq.s32.totalorder %s28, 0
      %p181 = por %p179, %p180
      %s183 = sadd.s32 %s182, 1
      %p186 = scmp.eq.s32.totalorder %s22, 1
      %p187 = scmp.ne.s32.totalorder %s182, %s184
      %p188 = scmp.eq.s32.totalorder %s22, 0
      %p189 = por %p187, %p188
      %p190 = scmp.ne.s32.totalorder %s182, %s184
      %p191 = scmp.eq.s32.totalorder %s27, 1
      %p192 = por %p190, %p191
      %p193 = scmp.ne.s32.totalorder %s184, %s185
      %p194 = scmp.eq.s32.totalorder %s27, 0
      %p195 = por %p193, %p194
      %p196 = scmp.ne.s32.totalorder %s184, %s185
      %p197 = scmp.eq.s32.totalorder %s28, 1
      %p198 = por %p196, %p197
      %p200 = scmp.ne.s32.totalorder %s185, %s199
      %p201 = scmp.eq.s32.totalorder %s28, 0
      %p202 = por %p200, %p201
      %s204 = sadd.s32 %s203, 1
      %p207 = scmp.eq.s32.totalorder %s22, 1
      %p208 = scmp.ne.s32.totalorder %s203, %s205
      %p209 = scmp.eq.s32.totalorder %s22, 0
      %p210 = por %p208, %p209
      %p211 = scmp.ne.s32.totalorder %s203, %s205
      %p212 = scmp.eq.s32.totalorder %s27, 1
      %p213 = por %p211, %p212
      %p214 = scmp.ne.s32.totalorder %s205, %s206
      %p215 = scmp.eq.s32.totalorder %s27, 0
      %p216 = por %p214, %p215
      %p217 = scmp.ne.s32.totalorder %s205, %s206
      %p218 = scmp.eq.s32.totalorder %s28, 1
      %p219 = por %p217, %p218
      %p221 = scmp.ne.s32.totalorder %s206, %s220
      %p222 = scmp.eq.s32.totalorder %s28, 0
      %p223 = por %p221, %p222
      %s225 = sadd.s32 %s224, 1
      %p228 = scmp.eq.s32.totalorder %s22, 1
      %p229 = scmp.ne.s32.totalorder %s224, %s226
      %p230 = scmp.eq.s32.totalorder %s22, 0
      %p231 = por %p229, %p230
      %p232 = scmp.ne.s32.totalorder %s224, %s226
      %p233 = scmp.eq.s32.totalorder %s27, 1
      %p234 = por %p232, %p233
      %p235 = scmp.ne.s32.totalorder %s226, %s227
      %p236 = scmp.eq.s32.totalorder %s27, 0
      %p237 = por %p235, %p236
      %p238 = scmp.ne.s32.totalorder %s226, %s227
      %p239 = scmp.eq.s32.totalorder %s28, 1
      %p240 = por %p238, %p239
      %p242 = scmp.ne.s32.totalorder %s227, %s241
      %p243 = scmp.eq.s32.totalorder %s28, 0
      %p244 = por %p242, %p243
      %s246 = sadd.s32 %s245, 1
      %p249 = scmp.eq.s32.totalorder %s22, 1
      %p250 = scmp.ne.s32.totalorder %s245, %s247
      %p251 = scmp.eq.s32.totalorder %s22, 0
      %p252 = por %p250, %p251
      %p253 = scmp.ne.s32.totalorder %s245, %s247
      %p254 = scmp.eq.s32.totalorder %s27, 1
      %p255 = por %p253, %p254
      %p256 = scmp.ne.s32.totalorder %s247, %s248
      %p257 = scmp.eq.s32.totalorder %s27, 0
      %p258 = por %p256, %p257
      %p259 = scmp.ne.s32.totalorder %s247, %s248
      %p260 = scmp.eq.s32.totalorder %s28, 1
      %p261 = por %p259, %p260
      %p263 = scmp.ne.s32.totalorder %s248, %s262
      %p264 = scmp.eq.s32.totalorder %s28, 0
      %p265 = por %p263, %p264
      %s267 = sadd.s32 %s266, 1
      %p270 = scmp.eq.s32.totalorder %s22, 1
      %p271 = scmp.ne.s32.totalorder %s266, %s268
      %p272 = scmp.eq.s32.totalorder %s22, 0
      %p273 = por %p271, %p272
      %p274 = scmp.ne.s32.totalorder %s266, %s268
      %p275 = scmp.eq.s32.totalorder %s27, 1
      %p276 = por %p274, %p275
      %p277 = scmp.ne.s32.totalorder %s268, %s269
      %p278 = scmp.eq.s32.totalorder %s27, 0
      %p279 = por %p277, %p278
      %p280 = scmp.ne.s32.totalorder %s268, %s269
      %p281 = scmp.eq.s32.totalorder %s28, 1
      %p282 = por %p280, %p281
      %p284 = scmp.ne.s32.totalorder %s269, %s283
      %p285 = scmp.eq.s32.totalorder %s28, 0
      %p286 = por %p284, %p285
      %s288 = sadd.s32 %s287, 1
      %p291 = scmp.eq.s32.totalorder %s22, 1
      %p292 = scmp.ne.s32.totalorder %s287, %s289
      %p293 = scmp.eq.s32.totalorder %s22, 0
      %p294 = por %p292, %p293
      %p295 = scmp.ne.s32.totalorder %s287, %s289
      %p296 = scmp.eq.s32.totalorder %s27, 1
      %p297 = por %p295, %p296
      %p298 = scmp.ne.s32.totalorder %s289, %s290
      %p299 = scmp.eq.s32.totalorder %s27, 0
      %p300 = por %p298, %p299
      %p301 = scmp.ne.s32.totalorder %s289, %s290
      %p302 = scmp.eq.s32.totalorder %s28, 1
      %p303 = por %p301, %p302
      %p305 = scmp.ne.s32.totalorder %s290, %s304
      %p306 = scmp.eq.s32.totalorder %s28, 0
      %p307 = por %p305, %p306
      %s308 = ssub.s32 %s22, %s29
      %p309 = scmp.eq.s32.totalorder %s308, 0
      %s311 = sadd.s32 %s310, 1
      %s312 = scalar_select %p309, %s310, %s311
      %p315 = pneg %p309
      %p316 = scmp.eq.s32.totalorder %s22, 1
      %p317 = por %p315, %p316
      %p318 = scmp.ne.s32.totalorder %s310, %s313
      %p319 = scmp.eq.s32.totalorder %s22, 0
      %p320 = por %p318, %p319
      %p321 = scmp.ne.s32.totalorder %s310, %s313
      %p322 = scmp.eq.s32.totalorder %s27, 1
      %p323 = por %p321, %p322
      %p324 = scmp.ne.s32.totalorder %s313, %s314
      %p325 = scmp.eq.s32.totalorder %s27, 0
      %p326 = por %p324, %p325
      %p327 = scmp.ne.s32.totalorder %s313, %s314
      %p328 = scmp.eq.s32.totalorder %s28, 1
      %p329 = por %p327, %p328
      %p331 = scmp.ne.s32.totalorder %s314, %s330
      %p332 = scmp.eq.s32.totalorder %s28, 0
      %p333 = por %p331, %p332
      %p334 = scmp.le.s32.totalorder 1, %s22
      %p335 = scmp.lt.s32.totalorder %s22, 3
      %p336 = pnand %p334, %p335
      %p337 = pneg %p336
      // Predicated region
      $region9: #{net_forward.1} parent=5 // pred_check
        _
      $region10: #{net_forward.1} parent=5 // pred_check_branch
        %339 = sbr.rel (%p336) target = $region12
      $region11: #{net_forward.1} parent=5 // pred_region
        %s340 = ssub.s32 %s22, 1
        // Predicated region
        $region13: #{net_forward.1} parent=11 // pred_check
          %p341 = pneg %p69
        $region14: #{net_forward.1} parent=11 // pred_check_branch
          %343 = sbr.rel (%p341) target = $region16
        $region15: #{net_forward.1} parent=11 // pred_region
          _
        $region16: #{net_forward.1} parent=11 // pred_fallthru
          _
        // Predicated region
        $region17: #{net_forward.1} parent=11 // pred_check
          %p344 = pneg %p90
        $region18: #{net_forward.1} parent=11 // pred_check_branch
          %346 = sbr.rel (%p344) target = $region20
        $region19: #{net_forward.1} parent=11 // pred_region
          _
        $region20: #{net_forward.1} parent=11 // pred_fallthru
          _
        // Predicated region
        $region21: #{net_forward.1} parent=11 // pred_check
          %p347 = pneg %p111
        $region22: #{net_forward.1} parent=11 // pred_check_branch
          %349 = sbr.rel (%p347) target = $region24
        $region23: #{net_forward.1} parent=11 // pred_region
          _
        $region24: #{net_forward.1} parent=11 // pred_fallthru
          _
        // Predicated region
        $region25: #{net_forward.1} parent=11 // pred_check
          %p350 = pneg %p132
        $region26: #{net_forward.1} parent=11 // pred_check_branch
          %352 = sbr.rel (%p350) target = $region28
        $region27: #{net_forward.1} parent=11 // pred_region
          _
        $region28: #{net_forward.1} parent=11 // pred_fallthru
          _
        // Predicated region
        $region29: #{net_forward.1} parent=11 // pred_check
          %p353 = pneg %p153
        $region30: #{net_forward.1} parent=11 // pred_check_branch
          %355 = sbr.rel (%p353) target = $region32
        $region31: #{net_forward.1} parent=11 // pred_region
          _
        $region32: #{net_forward.1} parent=11 // pred_fallthru
          _
        // Predicated region
        $region33: #{net_forward.1} parent=11 // pred_check
          %p356 = pneg %p174
        $region34: #{net_forward.1} parent=11 // pred_check_branch
          %358 = sbr.rel (%p356) target = $region36
        $region35: #{net_forward.1} parent=11 // pred_region
          _
        $region36: #{net_forward.1} parent=11 // pred_fallthru
          _
        // Predicated region
        $region37: #{net_forward.1} parent=11 // pred_check
          %p359 = pneg %p195
        $region38: #{net_forward.1} parent=11 // pred_check_branch
          %361 = sbr.rel (%p359) target = $region40
        $region39: #{net_forward.1} parent=11 // pred_region
          _
        $region40: #{net_forward.1} parent=11 // pred_fallthru
          _
        // Predicated region
        $region41: #{net_forward.1} parent=11 // pred_check
          %p362 = pneg %p216
        $region42: #{net_forward.1} parent=11 // pred_check_branch
          %364 = sbr.rel (%p362) target = $region44
        $region43: #{net_forward.1} parent=11 // pred_region
          _
        $region44: #{net_forward.1} parent=11 // pred_fallthru
          _
        // Predicated region
        $region45: #{net_forward.1} parent=11 // pred_check
          %p365 = pneg %p237
        $region46: #{net_forward.1} parent=11 // pred_check_branch
          %367 = sbr.rel (%p365) target = $region48
        $region47: #{net_forward.1} parent=11 // pred_region
          _
        $region48: #{net_forward.1} parent=11 // pred_fallthru
          _
        // Predicated region
        $region49: #{net_forward.1} parent=11 // pred_check
          %p368 = pneg %p258
        $region50: #{net_forward.1} parent=11 // pred_check_branch
          %370 = sbr.rel (%p368) target = $region52
        $region51: #{net_forward.1} parent=11 // pred_region
          _
        $region52: #{net_forward.1} parent=11 // pred_fallthru
          _
        // Predicated region
        $region53: #{net_forward.1} parent=11 // pred_check
          %p371 = pneg %p279
        $region54: #{net_forward.1} parent=11 // pred_check_branch
          %373 = sbr.rel (%p371) target = $region56
        $region55: #{net_forward.1} parent=11 // pred_region
          _
        $region56: #{net_forward.1} parent=11 // pred_fallthru
          _
        // Predicated region
        $region57: #{net_forward.1} parent=11 // pred_check
          %p374 = pneg %p300
        $region58: #{net_forward.1} parent=11 // pred_check_branch
          %376 = sbr.rel (%p374) target = $region60
        $region59: #{net_forward.1} parent=11 // pred_region
          _
        $region60: #{net_forward.1} parent=11 // pred_fallthru
          _
      $region12: #{net_forward.1} parent=5 // pred_fallthru
        _
      %p377 = scmp.lt.s32.totalorder %s22, 2
      // Predicated region
      $region61: #{net_forward.1} parent=5 // pred_check
        %p378 = pneg %p377
      $region62: #{net_forward.1} parent=5 // pred_check_branch
        %380 = sbr.rel (%p378) target = $region64
      $region63: #{net_forward.1} parent=5 // pred_region
        // Predicated region
        $region65: #{net_forward.1} parent=63 // pred_check
          %p381 = pneg %p42
        $region66: #{net_forward.1} parent=63 // pred_check_branch
          %383 = sbr.rel (%p381) target = $region68
        $region67: #{net_forward.1} parent=63 // pred_region
          %s384 = smul.u32 28, %s22
          %p385 = scmp.lt.s32.totalorder %s384, 55
          %s386 = scalar_select %p385, %s384, 55
          %s387 = smul.addr %s386, 8
          %s388 = scalar_lea.vmem %s0, %s387
          %s389 = smul.u32 28, %s22
        $region68: #{net_forward.1} parent=63 // pred_fallthru
          _
      $region64: #{net_forward.1} parent=5 // pred_fallthru
        _
      %p390 = scmp.le.s32.totalorder 1, %s22
      %p391 = scmp.lt.s32.totalorder %s22, 3
      %p392 = pnand %p390, %p391
      %p393 = pneg %p392
      // Predicated region
      $region69: #{net_forward.1} parent=5 // pred_check
        _
      $region70: #{net_forward.1} parent=5 // pred_check_branch
        %395 = sbr.rel (%p392) target = $region72
      $region71: #{net_forward.1} parent=5 // pred_region
        %s396 = ssub.s32 %s22, 1
        %s397 = smul.u32 28, %s27
        %p398 = scmp.lt.s32.totalorder %s397, 55
        %s399 = scalar_select %p398, %s397, 55
        %s400 = smul.addr %s399, 8
        %s401 = scalar_lea.vmem %s0, %s400
        %p402 = pneg %p48
        %p403 = pneg %p45
        %p404 = pneg %p69
        %p405 = pneg %p66
        %p406 = pneg %p90
        %p407 = pneg %p87
        %p408 = pneg %p111
        %p409 = pneg %p108
        %p410 = pneg %p132
        %p411 = pneg %p129
        %p412 = pneg %p153
        %p413 = pneg %p150
        %p414 = pneg %p174
        %p415 = pneg %p171
        %p416 = pneg %p195
        %p417 = pneg %p192
        %p418 = pneg %p216
        %p419 = pneg %p213
        %p420 = pneg %p237
        %p421 = pneg %p234
        %p422 = pneg %p258
        %p423 = pneg %p255
        %p424 = pneg %p279
        %p425 = pneg %p276
        %p426 = pneg %p300
        %p427 = pneg %p297
        %p428 = pneg %p326
        %p429 = pneg %p323
        %s430 = sand.u32 %s313, 1
        %s431 = scalar_lea.sflag [#allocation4], %s430
        %s432 = sand.u32 %s313, 1
        %s433 = smul.addr %s432, 8
        %s434 = scalar_lea.vmem [#allocation3], %s433
        %s435 = smul.u32 28, %s27
        %p436 = scmp.lt.s32.totalorder %s435, 55
        %s437 = scalar_select %p436, %s435, 55
        %s438 = smul.addr %s437, 8
        %s439 = scalar_lea.vmem %s0, %s438
        %s440 = smul.u32 28, %s27
        %v441 = vld [vmem:[%s439] sm:$0xff]
        %v442 = vld [vmem:[%s439 + $0x8] sm:$0xff]
        %v443 = vld [vmem:[%s439 + $0x10] sm:$0xff]
        %v444 = vld [vmem:[%s439 + $0x18] sm:$0xff]
        %v445 = vld [vmem:[%s439 + $0x20] sm:$0xff]
        %v446 = vld [vmem:[%s439 + $0x28] sm:$0xff]
        %v447 = vld [vmem:[%s439 + $0x30] sm:$0xff]
        %v448 = vld [vmem:[%s439 + $0x38] sm:$0xff]
        %v449 = vld [vmem:[%s439 + $0x40] sm:$0xff]
        %v450 = vld [vmem:[%s439 + $0x48] sm:$0xff]
        %v451 = vld [vmem:[%s439 + $0x50] sm:$0xff]
        %v452 = vld [vmem:[%s439 + $0x58] sm:$0xff]
        %v453 = vld [vmem:[%s439 + $0x60] sm:$0xff]
        %v454 = vld [vmem:[%s439 + $0x68] sm:$0xff]
        %v455 = vld [vmem:[%s439 + $0x70] sm:$0xff]
        %v456 = vld [vmem:[%s439 + $0x78] sm:$0xff]
        %v457 = vld [vmem:[%s439 + $0x80] sm:$0xff]
        %v458 = vld [vmem:[%s439 + $0x88] sm:$0xff]
        %v459 = vld [vmem:[%s439 + $0x90] sm:$0xff]
        %v460 = vld [vmem:[%s439 + $0x98] sm:$0xff]
        %v461 = vld [vmem:[%s439 + $0xa0] sm:$0xff]
        %v462 = vld [vmem:[%s439 + $0xa8] sm:$0xff]
        %v463 = vld [vmem:[%s439 + $0xb0] sm:$0xff]
        %v464 = vld [vmem:[%s439 + $0xb8] sm:$0xff]
        %v465 = vld [vmem:[%s1] sm:$0xff]
        %v466 = vld [vmem:[%s1 + $0x8] sm:$0xff]
        %v467 = vld [vmem:[%s1 + $0x10] sm:$0xff]
        %v468 = vld [vmem:[%s1 + $0x18] sm:$0xff]
        %v469 = vld [vmem:[%s1 + $0x20] sm:$0xff]
        %v470 = vld [vmem:[%s1 + $0x28] sm:$0xff]
        %v471 = vld [vmem:[%s1 + $0x30] sm:$0xf]
        %v472 = vld [vmem:[%s1 + $0x38] sm:$0xf]
        %v473 = vld [vmem:[%s439 + $0xc0] sm:$0xff]
        %s474 = scalar_lea.vmem %s1, 64
        %v475 = vld [vmem:[%s474] sm:$0xff]
        %v476 = vld [vmem:[%s474 + $0x8] sm:$0xff]
        %v477 = vld [vmem:[%s474 + $0x10] sm:$0xff]
        %v478 = vld [vmem:[%s474 + $0x18] sm:$0xff]
        %v479 = vld [vmem:[%s474 + $0x20] sm:$0xff]
        %v480 = vld [vmem:[%s474 + $0x28] sm:$0xff]
        %v481 = vld [vmem:[%s474 + $0x30] sm:$0xf]
        %v482 = vld [vmem:[%s474 + $0x38] sm:$0xf]
        %vm483 = vcmask 228352
        %v485 = vsel %vm483, %v442, 0
        %v488 = vsel %vm483, %v443, 0
        %v491 = vsel %vm483, %v444, 0
        %v494 = vsel %vm483, %v445, 0
        %v497 = vsel %vm483, %v446, 0
        %v500 = vsel %vm483, %v447, 0
        %v503 = vsel %vm483, %v448, 0
        %v506 = vsel %vm483, %v449, 0
        %v509 = vsel %vm483, %v450, 0
        %v512 = vsel %vm483, %v451, 0
        %v515 = vsel %vm483, %v452, 0
        %v518 = vsel %vm483, %v453, 0
        %v521 = vsel %vm483, %v454, 0
        %v524 = vsel %vm483, %v455, 0
        %v527 = vsel %vm483, %v456, 0
        %v530 = vsel %vm483, %v457, 0
        %v533 = vsel %vm483, %v458, 0
        %v536 = vsel %vm483, %v459, 0
        %v539 = vsel %vm483, %v460, 0
        %v542 = vsel %vm483, %v461, 0
        %v545 = vsel %vm483, %v462, 0
        %v548 = vsel %vm483, %v463, 0
        %v551 = vsel %vm483, %v464, 0
        %v554 = vsel %vm483, %v473, 0
        %vm556 = vcmask 1043456
        %v558 = vsel %vm556, %v481, 0
        %v561 = vsel %vm556, %v482, 0
        %563 = vmatpush.msra.mxu0 0.0
        %564 = vmatpush.msra.mxu0 0.0
        %565 = vmatpush.msra.mxu0 0.0
        %566 = vmatpush.msra.mxu0 0.0
        %567 = vmatpush.msra.mxu0 0.0
        %568 = vmatpush.msra.mxu0 0.0
        %569 = vmatpush.msra.mxu0 0.0
        %570 = vmatpush.msra.mxu0 0.0
        %571 = vmatpush.msra.mxu0 0.0
        %572 = vmatpush.msra.mxu0 0.0
        %573 = vmatpush.msra.mxu0 0.0
        %574 = vmatpush.msra.mxu0 0.0
        %575 = vmatpush.msra.mxu0 %v558
        %576 = vmatpush.msra.mxu0 %v479
        %577 = vmatpush.msra.mxu0 %v477
        %578 = vmatpush.msra.mxu0 %v475
        %579 = vmatmul.f32.gmra.mxu0 %v485
        %v580 = vpop.f32.mrf.mxu0
        %v581 = vadd.f32 0.0, %v580
        %582 = vmatmul.f32.gmra.mxu0 %v488
        %v583 = vpop.f32.mrf.mxu0
        %v584 = vadd.f32 0.0, %v583
        %585 = vmatmul.f32.gmra.mxu0 %v491
        %v586 = vpop.f32.mrf.mxu0
        %v587 = vadd.f32 0.0, %v586
        %588 = vmatmul.f32.gmra.mxu0 %v494
        %v589 = vpop.f32.mrf.mxu0
        %v590 = vadd.f32 0.0, %v589
        %591 = vmatmul.f32.gmra.mxu0 %v497
        %v592 = vpop.f32.mrf.mxu0
        %v593 = vadd.f32 0.0, %v592
        %594 = vmatmul.f32.gmra.mxu0 %v500
        %v595 = vpop.f32.mrf.mxu0
        %v596 = vadd.f32 0.0, %v595
        %597 = vmatmul.f32.gmra.mxu0 %v503
        %v598 = vpop.f32.mrf.mxu0
        %v599 = vadd.f32 0.0, %v598
        %600 = vmatmul.f32.gmra.mxu0 %v506
        %v601 = vpop.f32.mrf.mxu0
        %v602 = vadd.f32 0.0, %v601
        %603 = vmatmul.f32.gmra.mxu0 %v509
        %v604 = vpop.f32.mrf.mxu0
        %v605 = vadd.f32 0.0, %v604
        %606 = vmatmul.f32.gmra.mxu0 %v512
        %v607 = vpop.f32.mrf.mxu0
        %v608 = vadd.f32 0.0, %v607
        %609 = vmatmul.f32.gmra.mxu0 %v515
        %v610 = vpop.f32.mrf.mxu0
        %v611 = vadd.f32 0.0, %v610
        %612 = vmatmul.f32.gmra.mxu0 %v518
        %v613 = vpop.f32.mrf.mxu0
        %v614 = vadd.f32 0.0, %v613
        %615 = vmatmul.f32.gmra.mxu0 %v521
        %v616 = vpop.f32.mrf.mxu0
        %v617 = vadd.f32 0.0, %v616
        %618 = vmatmul.f32.gmra.mxu0 %v524
        %v619 = vpop.f32.mrf.mxu0
        %v620 = vadd.f32 0.0, %v619
        %621 = vmatmul.f32.gmra.mxu0 %v527
        %v622 = vpop.f32.mrf.mxu0
        %v623 = vadd.f32 0.0, %v622
        %624 = vmatmul.f32.gmra.mxu0 %v530
        %v625 = vpop.f32.mrf.mxu0
        %v626 = vadd.f32 0.0, %v625
        %627 = vmatmul.f32.gmra.mxu0 %v533
        %v628 = vpop.f32.mrf.mxu0
        %v629 = vadd.f32 0.0, %v628
        %630 = vmatmul.f32.gmra.mxu0 %v536
        %v631 = vpop.f32.mrf.mxu0
        %v632 = vadd.f32 0.0, %v631
        %633 = vmatmul.f32.gmra.mxu0 %v539
        %v634 = vpop.f32.mrf.mxu0
        %v635 = vadd.f32 0.0, %v634
        %636 = vmatmul.f32.gmra.mxu0 %v542
        %v637 = vpop.f32.mrf.mxu0
        %v638 = vadd.f32 0.0, %v637
        %639 = vmatmul.f32.gmra.mxu0 %v545
        %v640 = vpop.f32.mrf.mxu0
        %v641 = vadd.f32 0.0, %v640
        %642 = vmatmul.f32.gmra.mxu0 %v548
        %v643 = vpop.f32.mrf.mxu0
        %v644 = vadd.f32 0.0, %v643
        %645 = vmatmul.f32.gmra.mxu0 %v551
        %v646 = vpop.f32.mrf.mxu0
        %v647 = vadd.f32 0.0, %v646
        %648 = vmatmul.f32.gmra.mxu0 %v554
        %v649 = vpop.f32.mrf.mxu0
        %v650 = vadd.f32 0.0, %v649
        %651 = vdwg.mxu0
        %652 = vmatpush.msra.mxu0 0.0
        %653 = vmatpush.msra.mxu0 0.0
        %654 = vmatpush.msra.mxu0 0.0
        %655 = vmatpush.msra.mxu0 0.0
        %656 = vmatpush.msra.mxu0 0.0
        %657 = vmatpush.msra.mxu0 0.0
        %658 = vmatpush.msra.mxu0 0.0
        %659 = vmatpush.msra.mxu0 0.0
        %660 = vmatpush.msra.mxu0 0.0
        %661 = vmatpush.msra.mxu0 0.0
        %662 = vmatpush.msra.mxu0 0.0
        %663 = vmatpush.msra.mxu0 0.0
        %664 = vmatpush.msra.mxu0 %v561
        %665 = vmatpush.msra.mxu0 %v480
        %666 = vmatpush.msra.mxu0 %v478
        %667 = vmatpush.msra.mxu0 %v476
        %668 = vmatmul.f32.gmra.mxu0 %v485
        %v669 = vpop.f32.mrf.mxu0
        %v670 = vadd.f32 0.0, %v669
        %671 = vmatmul.f32.gmra.mxu0 %v488
        %v672 = vpop.f32.mrf.mxu0
        %v673 = vadd.f32 0.0, %v672
        %674 = vmatmul.f32.gmra.mxu0 %v491
        %v675 = vpop.f32.mrf.mxu0
        %v676 = vadd.f32 0.0, %v675
        %677 = vmatmul.f32.gmra.mxu0 %v494
        %v678 = vpop.f32.mrf.mxu0
        %v679 = vadd.f32 0.0, %v678
        %680 = vmatmul.f32.gmra.mxu0 %v497
        %v681 = vpop.f32.mrf.mxu0
        %v682 = vadd.f32 0.0, %v681
        %683 = vmatmul.f32.gmra.mxu0 %v500
        %v684 = vpop.f32.mrf.mxu0
        %v685 = vadd.f32 0.0, %v684
        %686 = vmatmul.f32.gmra.mxu0 %v503
        %v687 = vpop.f32.mrf.mxu0
        %v688 = vadd.f32 0.0, %v687
        %689 = vmatmul.f32.gmra.mxu0 %v506
        %v690 = vpop.f32.mrf.mxu0
        %v691 = vadd.f32 0.0, %v690
        %692 = vmatmul.f32.gmra.mxu0 %v509
        %v693 = vpop.f32.mrf.mxu0
        %v694 = vadd.f32 0.0, %v693
        %695 = vmatmul.f32.gmra.mxu0 %v512
        %v696 = vpop.f32.mrf.mxu0
        %v697 = vadd.f32 0.0, %v696
        %698 = vmatmul.f32.gmra.mxu0 %v515
        %v699 = vpop.f32.mrf.mxu0
        %v700 = vadd.f32 0.0, %v699
        %701 = vmatmul.f32.gmra.mxu0 %v518
        %v702 = vpop.f32.mrf.mxu0
        %v703 = vadd.f32 0.0, %v702
        %704 = vmatmul.f32.gmra.mxu0 %v521
        %v705 = vpop.f32.mrf.mxu0
        %v706 = vadd.f32 0.0, %v705
        %707 = vmatmul.f32.gmra.mxu0 %v524
        %v708 = vpop.f32.mrf.mxu0
        %v709 = vadd.f32 0.0, %v708
        %710 = vmatmul.f32.gmra.mxu0 %v527
        %v711 = vpop.f32.mrf.mxu0
        %v712 = vadd.f32 0.0, %v711
        %713 = vmatmul.f32.gmra.mxu0 %v530
        %v714 = vpop.f32.mrf.mxu0
        %v715 = vadd.f32 0.0, %v714
        %716 = vmatmul.f32.gmra.mxu0 %v533
        %v717 = vpop.f32.mrf.mxu0
        %v718 = vadd.f32 0.0, %v717
        %719 = vmatmul.f32.gmra.mxu0 %v536
        %v720 = vpop.f32.mrf.mxu0
        %v721 = vadd.f32 0.0, %v720
        %722 = vmatmul.f32.gmra.mxu0 %v539
        %v723 = vpop.f32.mrf.mxu0
        %v724 = vadd.f32 0.0, %v723
        %725 = vmatmul.f32.gmra.mxu0 %v542
        %v726 = vpop.f32.mrf.mxu0
        %v727 = vadd.f32 0.0, %v726
        %728 = vmatmul.f32.gmra.mxu0 %v545
        %v729 = vpop.f32.mrf.mxu0
        %v730 = vadd.f32 0.0, %v729
        %731 = vmatmul.f32.gmra.mxu0 %v548
        %v732 = vpop.f32.mrf.mxu0
        %v733 = vadd.f32 0.0, %v732
        %734 = vmatmul.f32.gmra.mxu0 %v551
        %v735 = vpop.f32.mrf.mxu0
        %v736 = vadd.f32 0.0, %v735
        %737 = vmatmul.f32.gmra.mxu0 %v554
        %v738 = vpop.f32.mrf.mxu0
        %v739 = vadd.f32 0.0, %v738
        %740 = vdwg.mxu0
        %v742 = vsel %vm483, %v441, 0
        %v745 = vsel %vm556, %v471, 0
        %v748 = vsel %vm556, %v472, 0
        %750 = vmatpush.msra.mxu0 0.0
        %751 = vmatpush.msra.mxu0 0.0
        %752 = vmatpush.msra.mxu0 0.0
        %753 = vmatpush.msra.mxu0 0.0
        %754 = vmatpush.msra.mxu0 0.0
        %755 = vmatpush.msra.mxu0 0.0
        %756 = vmatpush.msra.mxu0 0.0
        %757 = vmatpush.msra.mxu0 0.0
        %758 = vmatpush.msra.mxu0 0.0
        %759 = vmatpush.msra.mxu0 0.0
        %760 = vmatpush.msra.mxu0 0.0
        %761 = vmatpush.msra.mxu0 0.0
        %762 = vmatpush.msra.mxu0 %v745
        %763 = vmatpush.msra.mxu0 %v469
        %764 = vmatpush.msra.mxu0 %v467
        %765 = vmatpush.msra.mxu0 %v465
        %766 = vmatmul.f32.gmra.mxu0 %v742
        %v767 = vpop.f32.mrf.mxu0
        %v768 = vadd.f32 %v581, %v767
        %769 = vmatmul.f32.gmra.mxu0 %v485
        %v770 = vpop.f32.mrf.mxu0
        %v771 = vadd.f32 %v584, %v770
        %772 = vmatmul.f32.gmra.mxu0 %v488
        %v773 = vpop.f32.mrf.mxu0
        %v774 = vadd.f32 %v587, %v773
        %775 = vmatmul.f32.gmra.mxu0 %v491
        %v776 = vpop.f32.mrf.mxu0
        %v777 = vadd.f32 %v590, %v776
        %778 = vmatmul.f32.gmra.mxu0 %v494
        %v779 = vpop.f32.mrf.mxu0
        %v780 = vadd.f32 %v593, %v779
        %781 = vmatmul.f32.gmra.mxu0 %v497
        %v782 = vpop.f32.mrf.mxu0
        %v783 = vadd.f32 %v596, %v782
        %784 = vmatmul.f32.gmra.mxu0 %v500
        %v785 = vpop.f32.mrf.mxu0
        %v786 = vadd.f32 %v599, %v785
        %787 = vmatmul.f32.gmra.mxu0 %v503
        %v788 = vpop.f32.mrf.mxu0
        %v789 = vadd.f32 %v602, %v788
        %790 = vmatmul.f32.gmra.mxu0 %v506
        %v791 = vpop.f32.mrf.mxu0
        %v792 = vadd.f32 %v605, %v791
        %793 = vmatmul.f32.gmra.mxu0 %v509
        %v794 = vpop.f32.mrf.mxu0
        %v795 = vadd.f32 %v608, %v794
        %796 = vmatmul.f32.gmra.mxu0 %v512
        %v797 = vpop.f32.mrf.mxu0
        %v798 = vadd.f32 %v611, %v797
        %799 = vmatmul.f32.gmra.mxu0 %v515
        %v800 = vpop.f32.mrf.mxu0
        %v801 = vadd.f32 %v614, %v800
        %802 = vmatmul.f32.gmra.mxu0 %v518
        %v803 = vpop.f32.mrf.mxu0
        %v804 = vadd.f32 %v617, %v803
        %805 = vmatmul.f32.gmra.mxu0 %v521
        %v806 = vpop.f32.mrf.mxu0
        %v807 = vadd.f32 %v620, %v806
        %808 = vmatmul.f32.gmra.mxu0 %v524
        %v809 = vpop.f32.mrf.mxu0
        %v810 = vadd.f32 %v623, %v809
        %811 = vmatmul.f32.gmra.mxu0 %v527
        %v812 = vpop.f32.mrf.mxu0
        %v813 = vadd.f32 %v626, %v812
        %814 = vmatmul.f32.gmra.mxu0 %v530
        %v815 = vpop.f32.mrf.mxu0
        %v816 = vadd.f32 %v629, %v815
        %817 = vmatmul.f32.gmra.mxu0 %v533
        %v818 = vpop.f32.mrf.mxu0
        %v819 = vadd.f32 %v632, %v818
        %820 = vmatmul.f32.gmra.mxu0 %v536
        %v821 = vpop.f32.mrf.mxu0
        %v822 = vadd.f32 %v635, %v821
        %823 = vmatmul.f32.gmra.mxu0 %v539
        %v824 = vpop.f32.mrf.mxu0
        %v825 = vadd.f32 %v638, %v824
        %826 = vmatmul.f32.gmra.mxu0 %v542
        %v827 = vpop.f32.mrf.mxu0
        %v828 = vadd.f32 %v641, %v827
        %829 = vmatmul.f32.gmra.mxu0 %v545
        %v830 = vpop.f32.mrf.mxu0
        %v831 = vadd.f32 %v644, %v830
        %832 = vmatmul.f32.gmra.mxu0 %v548
        %v833 = vpop.f32.mrf.mxu0
        %v834 = vadd.f32 %v647, %v833
        %835 = vmatmul.f32.gmra.mxu0 %v551
        %v836 = vpop.f32.mrf.mxu0
        %v837 = vadd.f32 %v650, %v836
        %838 = vdwg.mxu0
        %839 = vmatpush.msra.mxu0 0.0
        %840 = vmatpush.msra.mxu0 0.0
        %841 = vmatpush.msra.mxu0 0.0
        %842 = vmatpush.msra.mxu0 0.0
        %843 = vmatpush.msra.mxu0 0.0
        %844 = vmatpush.msra.mxu0 0.0
        %845 = vmatpush.msra.mxu0 0.0
        %846 = vmatpush.msra.mxu0 0.0
        %847 = vmatpush.msra.mxu0 0.0
        %848 = vmatpush.msra.mxu0 0.0
        %849 = vmatpush.msra.mxu0 0.0
        %850 = vmatpush.msra.mxu0 0.0
        %851 = vmatpush.msra.mxu0 %v748
        %852 = vmatpush.msra.mxu0 %v470
        %853 = vmatpush.msra.mxu0 %v468
        %854 = vmatpush.msra.mxu0 %v466
        %855 = vmatmul.f32.gmra.mxu0 %v742
        %v856 = vpop.f32.mrf.mxu0
        %v857 = vadd.f32 %v670, %v856
        %858 = vmatmul.f32.gmra.mxu0 %v485
        %v859 = vpop.f32.mrf.mxu0
        %v860 = vadd.f32 %v673, %v859
        %861 = vmatmul.f32.gmra.mxu0 %v488
        %v862 = vpop.f32.mrf.mxu0
        %v863 = vadd.f32 %v676, %v862
        %864 = vmatmul.f32.gmra.mxu0 %v491
        %v865 = vpop.f32.mrf.mxu0
        %v866 = vadd.f32 %v679, %v865
        %867 = vmatmul.f32.gmra.mxu0 %v494
        %v868 = vpop.f32.mrf.mxu0
        %v869 = vadd.f32 %v682, %v868
        %870 = vmatmul.f32.gmra.mxu0 %v497
        %v871 = vpop.f32.mrf.mxu0
        %v872 = vadd.f32 %v685, %v871
        %873 = vmatmul.f32.gmra.mxu0 %v500
        %v874 = vpop.f32.mrf.mxu0
        %v875 = vadd.f32 %v688, %v874
        %876 = vmatmul.f32.gmra.mxu0 %v503
        %v877 = vpop.f32.mrf.mxu0
        %v878 = vadd.f32 %v691, %v877
        %879 = vmatmul.f32.gmra.mxu0 %v506
        %v880 = vpop.f32.mrf.mxu0
        %v881 = vadd.f32 %v694, %v880
        %882 = vmatmul.f32.gmra.mxu0 %v509
        %v883 = vpop.f32.mrf.mxu0
        %v884 = vadd.f32 %v697, %v883
        %885 = vmatmul.f32.gmra.mxu0 %v512
        %v886 = vpop.f32.mrf.mxu0
        %v887 = vadd.f32 %v700, %v886
        %888 = vmatmul.f32.gmra.mxu0 %v515
        %v889 = vpop.f32.mrf.mxu0
        %v890 = vadd.f32 %v703, %v889
        %891 = vmatmul.f32.gmra.mxu0 %v518
        %v892 = vpop.f32.mrf.mxu0
        %v893 = vadd.f32 %v706, %v892
        %894 = vmatmul.f32.gmra.mxu0 %v521
        %v895 = vpop.f32.mrf.mxu0
        %v896 = vadd.f32 %v709, %v895
        %897 = vmatmul.f32.gmra.mxu0 %v524
        %v898 = vpop.f32.mrf.mxu0
        %v899 = vadd.f32 %v712, %v898
        %900 = vmatmul.f32.gmra.mxu0 %v527
        %v901 = vpop.f32.mrf.mxu0
        %v902 = vadd.f32 %v715, %v901
        %903 = vmatmul.f32.gmra.mxu0 %v530
        %v904 = vpop.f32.mrf.mxu0
        %v905 = vadd.f32 %v718, %v904
        %906 = vmatmul.f32.gmra.mxu0 %v533
        %v907 = vpop.f32.mrf.mxu0
        %v908 = vadd.f32 %v721, %v907
        %909 = vmatmul.f32.gmra.mxu0 %v536
        %v910 = vpop.f32.mrf.mxu0
        %v911 = vadd.f32 %v724, %v910
        %912 = vmatmul.f32.gmra.mxu0 %v539
        %v913 = vpop.f32.mrf.mxu0
        %v914 = vadd.f32 %v727, %v913
        %915 = vmatmul.f32.gmra.mxu0 %v542
        %v916 = vpop.f32.mrf.mxu0
        %v917 = vadd.f32 %v730, %v916
        %918 = vmatmul.f32.gmra.mxu0 %v545
        %v919 = vpop.f32.mrf.mxu0
        %v920 = vadd.f32 %v733, %v919
        %921 = vmatmul.f32.gmra.mxu0 %v548
        %v922 = vpop.f32.mrf.mxu0
        %v923 = vadd.f32 %v736, %v922
        %924 = vmatmul.f32.gmra.mxu0 %v551
        %v925 = vpop.f32.mrf.mxu0
        %v926 = vadd.f32 %v739, %v925
        %927 = vdwg.mxu0
        %v928 = vld [vmem:[%s439 + $0x10] sm:$0xff]
        %v929 = vld [vmem:[%s439 + $0x18] sm:$0xff]
        %v930 = vld [vmem:[%s439 + $0x20] sm:$0xff]
        %v931 = vld [vmem:[%s439 + $0x28] sm:$0xff]
        %v932 = vld [vmem:[%s439 + $0x30] sm:$0xff]
        %v933 = vld [vmem:[%s439 + $0x38] sm:$0xff]
        %v934 = vld [vmem:[%s439 + $0x40] sm:$0xff]
        %v935 = vld [vmem:[%s439 + $0x48] sm:$0xff]
        %v936 = vld [vmem:[%s439 + $0x50] sm:$0xff]
        %v937 = vld [vmem:[%s439 + $0x58] sm:$0xff]
        %v938 = vld [vmem:[%s439 + $0x60] sm:$0xff]
        %v939 = vld [vmem:[%s439 + $0x68] sm:$0xff]
        %v940 = vld [vmem:[%s439 + $0x70] sm:$0xff]
        %v941 = vld [vmem:[%s439 + $0x78] sm:$0xff]
        %v942 = vld [vmem:[%s439 + $0x80] sm:$0xff]
        %v943 = vld [vmem:[%s439 + $0x88] sm:$0xff]
        %v944 = vld [vmem:[%s439 + $0x90] sm:$0xff]
        %v945 = vld [vmem:[%s439 + $0x98] sm:$0xff]
        %v946 = vld [vmem:[%s439 + $0xa0] sm:$0xff]
        %v947 = vld [vmem:[%s439 + $0xa8] sm:$0xff]
        %v948 = vld [vmem:[%s439 + $0xb0] sm:$0xff]
        %v949 = vld [vmem:[%s439 + $0xb8] sm:$0xff]
        %v950 = vld [vmem:[%s439 + $0xc0] sm:$0xff]
        %v951 = vld [vmem:[%s439 + $0xc8] sm:$0xff]
        %s952 = scalar_lea.vmem %s1, 128
        %v953 = vld [vmem:[%s952] sm:$0xff]
        %v954 = vld [vmem:[%s952 + $0x8] sm:$0xff]
        %v955 = vld [vmem:[%s952 + $0x10] sm:$0xff]
        %v956 = vld [vmem:[%s952 + $0x18] sm:$0xff]
        %v957 = vld [vmem:[%s952 + $0x20] sm:$0xff]
        %v958 = vld [vmem:[%s952 + $0x28] sm:$0xff]
        %v959 = vld [vmem:[%s952 + $0x30] sm:$0xf]
        %v960 = vld [vmem:[%s952 + $0x38] sm:$0xf]
        %v962 = vsel %vm483, %v928, 0
        %v965 = vsel %vm483, %v929, 0
        %v968 = vsel %vm483, %v930, 0
        %v971 = vsel %vm483, %v931, 0
        %v974 = vsel %vm483, %v932, 0
        %v977 = vsel %vm483, %v933, 0
        %v980 = vsel %vm483, %v934, 0
        %v983 = vsel %vm483, %v935, 0
        %v986 = vsel %vm483, %v936, 0
        %v989 = vsel %vm483, %v937, 0
        %v992 = vsel %vm483, %v938, 0
        %v995 = vsel %vm483, %v939, 0
        %v998 = vsel %vm483, %v940, 0
        %v1001 = vsel %vm483, %v941, 0
        %v1004 = vsel %vm483, %v942, 0
        %v1007 = vsel %vm483, %v943, 0
        %v1010 = vsel %vm483, %v944, 0
        %v1013 = vsel %vm483, %v945, 0
        %v1016 = vsel %vm483, %v946, 0
        %v1019 = vsel %vm483, %v947, 0
        %v1022 = vsel %vm483, %v948, 0
        %v1025 = vsel %vm483, %v949, 0
        %v1028 = vsel %vm483, %v950, 0
        %v1031 = vsel %vm483, %v951, 0
        %v1034 = vsel %vm556, %v959, 0
        %v1037 = vsel %vm556, %v960, 0
        %1039 = vmatpush.msra.mxu0 0.0
        %1040 = vmatpush.msra.mxu0 0.0
        %1041 = vmatpush.msra.mxu0 0.0
        %1042 = vmatpush.msra.mxu0 0.0
        %1043 = vmatpush.msra.mxu0 0.0
        %1044 = vmatpush.msra.mxu0 0.0
        %1045 = vmatpush.msra.mxu0 0.0
        %1046 = vmatpush.msra.mxu0 0.0
        %1047 = vmatpush.msra.mxu0 0.0
        %1048 = vmatpush.msra.mxu0 0.0
        %1049 = vmatpush.msra.mxu0 0.0
        %1050 = vmatpush.msra.mxu0 0.0
        %1051 = vmatpush.msra.mxu0 %v1034
        %1052 = vmatpush.msra.mxu0 %v957
        %1053 = vmatpush.msra.mxu0 %v955
        %1054 = vmatpush.msra.mxu0 %v953
        %1055 = vmatmul.f32.gmra.mxu0 %v962
        %v1056 = vpop.f32.mrf.mxu0
        %v1057 = vadd.f32 0.0, %v1056
        %1058 = vmatmul.f32.gmra.mxu0 %v965
        %v1059 = vpop.f32.mrf.mxu0
        %v1060 = vadd.f32 0.0, %v1059
        %1061 = vmatmul.f32.gmra.mxu0 %v968
        %v1062 = vpop.f32.mrf.mxu0
        %v1063 = vadd.f32 0.0, %v1062
        %1064 = vmatmul.f32.gmra.mxu0 %v971
        %v1065 = vpop.f32.mrf.mxu0
        %v1066 = vadd.f32 0.0, %v1065
        %1067 = vmatmul.f32.gmra.mxu0 %v974
        %v1068 = vpop.f32.mrf.mxu0
        %v1069 = vadd.f32 0.0, %v1068
        %1070 = vmatmul.f32.gmra.mxu0 %v977
        %v1071 = vpop.f32.mrf.mxu0
        %v1072 = vadd.f32 0.0, %v1071
        %1073 = vmatmul.f32.gmra.mxu0 %v980
        %v1074 = vpop.f32.mrf.mxu0
        %v1075 = vadd.f32 0.0, %v1074
        %1076 = vmatmul.f32.gmra.mxu0 %v983
        %v1077 = vpop.f32.mrf.mxu0
        %v1078 = vadd.f32 0.0, %v1077
        %1079 = vmatmul.f32.gmra.mxu0 %v986
        %v1080 = vpop.f32.mrf.mxu0
        %v1081 = vadd.f32 0.0, %v1080
        %1082 = vmatmul.f32.gmra.mxu0 %v989
        %v1083 = vpop.f32.mrf.mxu0
        %v1084 = vadd.f32 0.0, %v1083
        %1085 = vmatmul.f32.gmra.mxu0 %v992
        %v1086 = vpop.f32.mrf.mxu0
        %v1087 = vadd.f32 0.0, %v1086
        %1088 = vmatmul.f32.gmra.mxu0 %v995
        %v1089 = vpop.f32.mrf.mxu0
        %v1090 = vadd.f32 0.0, %v1089
        %1091 = vmatmul.f32.gmra.mxu0 %v998
        %v1092 = vpop.f32.mrf.mxu0
        %v1093 = vadd.f32 0.0, %v1092
        %1094 = vmatmul.f32.gmra.mxu0 %v1001
        %v1095 = vpop.f32.mrf.mxu0
        %v1096 = vadd.f32 0.0, %v1095
        %1097 = vmatmul.f32.gmra.mxu0 %v1004
        %v1098 = vpop.f32.mrf.mxu0
        %v1099 = vadd.f32 0.0, %v1098
        %1100 = vmatmul.f32.gmra.mxu0 %v1007
        %v1101 = vpop.f32.mrf.mxu0
        %v1102 = vadd.f32 0.0, %v1101
        %1103 = vmatmul.f32.gmra.mxu0 %v1010
        %v1104 = vpop.f32.mrf.mxu0
        %v1105 = vadd.f32 0.0, %v1104
        %1106 = vmatmul.f32.gmra.mxu0 %v1013
        %v1107 = vpop.f32.mrf.mxu0
        %v1108 = vadd.f32 0.0, %v1107
        %1109 = vmatmul.f32.gmra.mxu0 %v1016
        %v1110 = vpop.f32.mrf.mxu0
        %v1111 = vadd.f32 0.0, %v1110
        %1112 = vmatmul.f32.gmra.mxu0 %v1019
        %v1113 = vpop.f32.mrf.mxu0
        %v1114 = vadd.f32 0.0, %v1113
        %1115 = vmatmul.f32.gmra.mxu0 %v1022
        %v1116 = vpop.f32.mrf.mxu0
        %v1117 = vadd.f32 0.0, %v1116
        %1118 = vmatmul.f32.gmra.mxu0 %v1025
        %v1119 = vpop.f32.mrf.mxu0
        %v1120 = vadd.f32 0.0, %v1119
        %1121 = vmatmul.f32.gmra.mxu0 %v1028
        %v1122 = vpop.f32.mrf.mxu0
        %v1123 = vadd.f32 0.0, %v1122
        %1124 = vmatmul.f32.gmra.mxu0 %v1031
        %v1125 = vpop.f32.mrf.mxu0
        %v1126 = vadd.f32 0.0, %v1125
        %1127 = vdwg.mxu0
        %1128 = vmatpush.msra.mxu0 0.0
        %1129 = vmatpush.msra.mxu0 0.0
        %1130 = vmatpush.msra.mxu0 0.0
        %1131 = vmatpush.msra.mxu0 0.0
        %1132 = vmatpush.msra.mxu0 0.0
        %1133 = vmatpush.msra.mxu0 0.0
        %1134 = vmatpush.msra.mxu0 0.0
        %1135 = vmatpush.msra.mxu0 0.0
        %1136 = vmatpush.msra.mxu0 0.0
        %1137 = vmatpush.msra.mxu0 0.0
        %1138 = vmatpush.msra.mxu0 0.0
        %1139 = vmatpush.msra.mxu0 0.0
        %1140 = vmatpush.msra.mxu0 %v1037
        %1141 = vmatpush.msra.mxu0 %v958
        %1142 = vmatpush.msra.mxu0 %v956
        %1143 = vmatpush.msra.mxu0 %v954
        %1144 = vmatmul.f32.gmra.mxu0 %v962
        %v1145 = vpop.f32.mrf.mxu0
        %v1146 = vadd.f32 0.0, %v1145
        %1147 = vmatmul.f32.gmra.mxu0 %v965
        %v1148 = vpop.f32.mrf.mxu0
        %v1149 = vadd.f32 0.0, %v1148
        %1150 = vmatmul.f32.gmra.mxu0 %v968
        %v1151 = vpop.f32.mrf.mxu0
        %v1152 = vadd.f32 0.0, %v1151
        %1153 = vmatmul.f32.gmra.mxu0 %v971
        %v1154 = vpop.f32.mrf.mxu0
        %v1155 = vadd.f32 0.0, %v1154
        %1156 = vmatmul.f32.gmra.mxu0 %v974
        %v1157 = vpop.f32.mrf.mxu0
        %v1158 = vadd.f32 0.0, %v1157
        %1159 = vmatmul.f32.gmra.mxu0 %v977
        %v1160 = vpop.f32.mrf.mxu0
        %v1161 = vadd.f32 0.0, %v1160
        %1162 = vmatmul.f32.gmra.mxu0 %v980
        %v1163 = vpop.f32.mrf.mxu0
        %v1164 = vadd.f32 0.0, %v1163
        %1165 = vmatmul.f32.gmra.mxu0 %v983
        %v1166 = vpop.f32.mrf.mxu0
        %v1167 = vadd.f32 0.0, %v1166
        %1168 = vmatmul.f32.gmra.mxu0 %v986
        %v1169 = vpop.f32.mrf.mxu0
        %v1170 = vadd.f32 0.0, %v1169
        %1171 = vmatmul.f32.gmra.mxu0 %v989
        %v1172 = vpop.f32.mrf.mxu0
        %v1173 = vadd.f32 0.0, %v1172
        %1174 = vmatmul.f32.gmra.mxu0 %v992
        %v1175 = vpop.f32.mrf.mxu0
        %v1176 = vadd.f32 0.0, %v1175
        %1177 = vmatmul.f32.gmra.mxu0 %v995
        %v1178 = vpop.f32.mrf.mxu0
        %v1179 = vadd.f32 0.0, %v1178
        %1180 = vmatmul.f32.gmra.mxu0 %v998
        %v1181 = vpop.f32.mrf.mxu0
        %v1182 = vadd.f32 0.0, %v1181
        %1183 = vmatmul.f32.gmra.mxu0 %v1001
        %v1184 = vpop.f32.mrf.mxu0
        %v1185 = vadd.f32 0.0, %v1184
        %1186 = vmatmul.f32.gmra.mxu0 %v1004
        %v1187 = vpop.f32.mrf.mxu0
        %v1188 = vadd.f32 0.0, %v1187
        %1189 = vmatmul.f32.gmra.mxu0 %v1007
        %v1190 = vpop.f32.mrf.mxu0
        %v1191 = vadd.f32 0.0, %v1190
        %1192 = vmatmul.f32.gmra.mxu0 %v1010
        %v1193 = vpop.f32.mrf.mxu0
        %v1194 = vadd.f32 0.0, %v1193
        %1195 = vmatmul.f32.gmra.mxu0 %v1013
        %v1196 = vpop.f32.mrf.mxu0
        %v1197 = vadd.f32 0.0, %v1196
        %1198 = vmatmul.f32.gmra.mxu0 %v1016
        %v1199 = vpop.f32.mrf.mxu0
        %v1200 = vadd.f32 0.0, %v1199
        %1201 = vmatmul.f32.gmra.mxu0 %v1019
        %v1202 = vpop.f32.mrf.mxu0
        %v1203 = vadd.f32 0.0, %v1202
        %1204 = vmatmul.f32.gmra.mxu0 %v1022
        %v1205 = vpop.f32.mrf.mxu0
        %v1206 = vadd.f32 0.0, %v1205
        %1207 = vmatmul.f32.gmra.mxu0 %v1025
        %v1208 = vpop.f32.mrf.mxu0
        %v1209 = vadd.f32 0.0, %v1208
        %1210 = vmatmul.f32.gmra.mxu0 %v1028
        %v1211 = vpop.f32.mrf.mxu0
        %v1212 = vadd.f32 0.0, %v1211
        %1213 = vmatmul.f32.gmra.mxu0 %v1031
        %v1214 = vpop.f32.mrf.mxu0
        %v1215 = vadd.f32 0.0, %v1214
        %1216 = vdwg.mxu0
        %v1217 = vadd.f32 %v768, %v1057
        %v1218 = vadd.f32 %v857, %v1146
        %v1219 = vadd.f32 %v771, %v1060
        %v1220 = vadd.f32 %v860, %v1149
        %v1221 = vadd.f32 %v774, %v1063
        %v1222 = vadd.f32 %v863, %v1152
        %v1223 = vadd.f32 %v777, %v1066
        %v1224 = vadd.f32 %v866, %v1155
        %v1225 = vadd.f32 %v780, %v1069
        %v1226 = vadd.f32 %v869, %v1158
        %v1227 = vadd.f32 %v783, %v1072
        %v1228 = vadd.f32 %v872, %v1161
        %v1229 = vadd.f32 %v786, %v1075
        %v1230 = vadd.f32 %v875, %v1164
        %v1231 = vadd.f32 %v789, %v1078
        %v1232 = vadd.f32 %v878, %v1167
        %v1233 = vadd.f32 %v792, %v1081
        %v1234 = vadd.f32 %v881, %v1170
        %v1235 = vadd.f32 %v795, %v1084
        %v1236 = vadd.f32 %v884, %v1173
        %v1237 = vadd.f32 %v798, %v1087
        %v1238 = vadd.f32 %v887, %v1176
        %v1239 = vadd.f32 %v801, %v1090
        %v1240 = vadd.f32 %v890, %v1179
        %v1241 = vadd.f32 %v804, %v1093
        %v1242 = vadd.f32 %v893, %v1182
        %v1243 = vadd.f32 %v807, %v1096
        %v1244 = vadd.f32 %v896, %v1185
        %v1245 = vadd.f32 %v810, %v1099
        %v1246 = vadd.f32 %v899, %v1188
        %v1247 = vadd.f32 %v813, %v1102
        %v1248 = vadd.f32 %v902, %v1191
        %v1249 = vadd.f32 %v816, %v1105
        %v1250 = vadd.f32 %v905, %v1194
        %v1251 = vadd.f32 %v819, %v1108
        %v1252 = vadd.f32 %v908, %v1197
        %v1253 = vadd.f32 %v822, %v1111
        %v1254 = vadd.f32 %v911, %v1200
        %v1255 = vadd.f32 %v825, %v1114
        %v1256 = vadd.f32 %v914, %v1203
        %v1257 = vadd.f32 %v828, %v1117
        %v1258 = vadd.f32 %v917, %v1206
        %v1259 = vadd.f32 %v831, %v1120
        %v1260 = vadd.f32 %v920, %v1209
        %v1261 = vadd.f32 %v834, %v1123
        %v1262 = vadd.f32 %v923, %v1212
        %v1263 = vadd.f32 %v837, %v1126
        %v1264 = vadd.f32 %v926, %v1215
        %v1265 = vld [vmem:[%s439 + $0x18] sm:$0xff]
        %v1266 = vld [vmem:[%s439 + $0x20] sm:$0xff]
        %v1267 = vld [vmem:[%s439 + $0x28] sm:$0xff]
        %v1268 = vld [vmem:[%s439 + $0x30] sm:$0xff]
        %v1269 = vld [vmem:[%s439 + $0x38] sm:$0xff]
        %v1270 = vld [vmem:[%s439 + $0x40] sm:$0xff]
        %v1271 = vld [vmem:[%s439 + $0x48] sm:$0xff]
        %v1272 = vld [vmem:[%s439 + $0x50] sm:$0xff]
        %v1273 = vld [vmem:[%s439 + $0x58] sm:$0xff]
        %v1274 = vld [vmem:[%s439 + $0x60] sm:$0xff]
        %v1275 = vld [vmem:[%s439 + $0x68] sm:$0xff]
        %v1276 = vld [vmem:[%s439 + $0x70] sm:$0xff]
        %v1277 = vld [vmem:[%s439 + $0x78] sm:$0xff]
        %v1278 = vld [vmem:[%s439 + $0x80] sm:$0xff]
        %v1279 = vld [vmem:[%s439 + $0x88] sm:$0xff]
        %v1280 = vld [vmem:[%s439 + $0x90] sm:$0xff]
        %v1281 = vld [vmem:[%s439 + $0x98] sm:$0xff]
        %v1282 = vld [vmem:[%s439 + $0xa0] sm:$0xff]
        %v1283 = vld [vmem:[%s439 + $0xa8] sm:$0xff]
        %v1284 = vld [vmem:[%s439 + $0xb0] sm:$0xff]
        %v1285 = vld [vmem:[%s439 + $0xb8] sm:$0xff]
        %v1286 = vld [vmem:[%s439 + $0xc0] sm:$0xff]
        %v1287 = vld [vmem:[%s439 + $0xc8] sm:$0xff]
        %v1288 = vld [vmem:[%s439 + $0xd0] sm:$0xff]
        %s1289 = scalar_lea.vmem %s1, 192
        %v1290 = vld [vmem:[%s1289] sm:$0xff]
        %v1291 = vld [vmem:[%s1289 + $0x8] sm:$0xff]
        %v1292 = vld [vmem:[%s1289 + $0x10] sm:$0xff]
        %v1293 = vld [vmem:[%s1289 + $0x18] sm:$0xff]
        %v1294 = vld [vmem:[%s1289 + $0x20] sm:$0xff]
        %v1295 = vld [vmem:[%s1289 + $0x28] sm:$0xff]
        %v1296 = vld [vmem:[%s1289 + $0x30] sm:$0xf]
        %v1297 = vld [vmem:[%s1289 + $0x38] sm:$0xf]
        %v1299 = vsel %vm483, %v1265, 0
        %v1302 = vsel %vm483, %v1266, 0
        %v1305 = vsel %vm483, %v1267, 0
        %v1308 = vsel %vm483, %v1268, 0
        %v1311 = vsel %vm483, %v1269, 0
        %v1314 = vsel %vm483, %v1270, 0
        %v1317 = vsel %vm483, %v1271, 0
        %v1320 = vsel %vm483, %v1272, 0
        %v1323 = vsel %vm483, %v1273, 0
        %v1326 = vsel %vm483, %v1274, 0
        %v1329 = vsel %vm483, %v1275, 0
        %v1332 = vsel %vm483, %v1276, 0
        %v1335 = vsel %vm483, %v1277, 0
        %v1338 = vsel %vm483, %v1278, 0
        %v1341 = vsel %vm483, %v1279, 0
        %v1344 = vsel %vm483, %v1280, 0
        %v1347 = vsel %vm483, %v1281, 0
        %v1350 = vsel %vm483, %v1282, 0
        %v1353 = vsel %vm483, %v1283, 0
        %v1356 = vsel %vm483, %v1284, 0
        %v1359 = vsel %vm483, %v1285, 0
        %v1362 = vsel %vm483, %v1286, 0
        %v1365 = vsel %vm483, %v1287, 0
        %v1368 = vsel %vm483, %v1288, 0
        %v1371 = vsel %vm556, %v1296, 0
        %v1374 = vsel %vm556, %v1297, 0
        %1376 = vmatpush.msra.mxu0 0.0
        %1377 = vmatpush.msra.mxu0 0.0
        %1378 = vmatpush.msra.mxu0 0.0
        %1379 = vmatpush.msra.mxu0 0.0
        %1380 = vmatpush.msra.mxu0 0.0
        %1381 = vmatpush.msra.mxu0 0.0
        %1382 = vmatpush.msra.mxu0 0.0
        %1383 = vmatpush.msra.mxu0 0.0
        %1384 = vmatpush.msra.mxu0 0.0
        %1385 = vmatpush.msra.mxu0 0.0
        %1386 = vmatpush.msra.mxu0 0.0
        %1387 = vmatpush.msra.mxu0 0.0
        %1388 = vmatpush.msra.mxu0 %v1371
        %1389 = vmatpush.msra.mxu0 %v1294
        %1390 = vmatpush.msra.mxu0 %v1292
        %1391 = vmatpush.msra.mxu0 %v1290
        %1392 = vmatmul.f32.gmra.mxu0 %v1299
        %v1393 = vpop.f32.mrf.mxu0
        %v1394 = vadd.f32 0.0, %v1393
        %1395 = vmatmul.f32.gmra.mxu0 %v1302
        %v1396 = vpop.f32.mrf.mxu0
        %v1397 = vadd.f32 0.0, %v1396
        %1398 = vmatmul.f32.gmra.mxu0 %v1305
        %v1399 = vpop.f32.mrf.mxu0
        %v1400 = vadd.f32 0.0, %v1399
        %1401 = vmatmul.f32.gmra.mxu0 %v1308
        %v1402 = vpop.f32.mrf.mxu0
        %v1403 = vadd.f32 0.0, %v1402
        %1404 = vmatmul.f32.gmra.mxu0 %v1311
        %v1405 = vpop.f32.mrf.mxu0
        %v1406 = vadd.f32 0.0, %v1405
        %1407 = vmatmul.f32.gmra.mxu0 %v1314
        %v1408 = vpop.f32.mrf.mxu0
        %v1409 = vadd.f32 0.0, %v1408
        %1410 = vmatmul.f32.gmra.mxu0 %v1317
        %v1411 = vpop.f32.mrf.mxu0
        %v1412 = vadd.f32 0.0, %v1411
        %1413 = vmatmul.f32.gmra.mxu0 %v1320
        %v1414 = vpop.f32.mrf.mxu0
        %v1415 = vadd.f32 0.0, %v1414
        %1416 = vmatmul.f32.gmra.mxu0 %v1323
        %v1417 = vpop.f32.mrf.mxu0
        %v1418 = vadd.f32 0.0, %v1417
        %1419 = vmatmul.f32.gmra.mxu0 %v1326
        %v1420 = vpop.f32.mrf.mxu0
        %v1421 = vadd.f32 0.0, %v1420
        %1422 = vmatmul.f32.gmra.mxu0 %v1329
        %v1423 = vpop.f32.mrf.mxu0
        %v1424 = vadd.f32 0.0, %v1423
        %1425 = vmatmul.f32.gmra.mxu0 %v1332
        %v1426 = vpop.f32.mrf.mxu0
        %v1427 = vadd.f32 0.0, %v1426
        %1428 = vmatmul.f32.gmra.mxu0 %v1335
        %v1429 = vpop.f32.mrf.mxu0
        %v1430 = vadd.f32 0.0, %v1429
        %1431 = vmatmul.f32.gmra.mxu0 %v1338
        %v1432 = vpop.f32.mrf.mxu0
        %v1433 = vadd.f32 0.0, %v1432
        %1434 = vmatmul.f32.gmra.mxu0 %v1341
        %v1435 = vpop.f32.mrf.mxu0
        %v1436 = vadd.f32 0.0, %v1435
        %1437 = vmatmul.f32.gmra.mxu0 %v1344
        %v1438 = vpop.f32.mrf.mxu0
        %v1439 = vadd.f32 0.0, %v1438
        %1440 = vmatmul.f32.gmra.mxu0 %v1347
        %v1441 = vpop.f32.mrf.mxu0
        %v1442 = vadd.f32 0.0, %v1441
        %1443 = vmatmul.f32.gmra.mxu0 %v1350
        %v1444 = vpop.f32.mrf.mxu0
        %v1445 = vadd.f32 0.0, %v1444
        %1446 = vmatmul.f32.gmra.mxu0 %v1353
        %v1447 = vpop.f32.mrf.mxu0
        %v1448 = vadd.f32 0.0, %v1447
        %1449 = vmatmul.f32.gmra.mxu0 %v1356
        %v1450 = vpop.f32.mrf.mxu0
        %v1451 = vadd.f32 0.0, %v1450
        %1452 = vmatmul.f32.gmra.mxu0 %v1359
        %v1453 = vpop.f32.mrf.mxu0
        %v1454 = vadd.f32 0.0, %v1453
        %1455 = vmatmul.f32.gmra.mxu0 %v1362
        %v1456 = vpop.f32.mrf.mxu0
        %v1457 = vadd.f32 0.0, %v1456
        %1458 = vmatmul.f32.gmra.mxu0 %v1365
        %v1459 = vpop.f32.mrf.mxu0
        %v1460 = vadd.f32 0.0, %v1459
        %1461 = vmatmul.f32.gmra.mxu0 %v1368
        %v1462 = vpop.f32.mrf.mxu0
        %v1463 = vadd.f32 0.0, %v1462
        %1464 = vdwg.mxu0
        %1465 = vmatpush.msra.mxu0 0.0
        %1466 = vmatpush.msra.mxu0 0.0
        %1467 = vmatpush.msra.mxu0 0.0
        %1468 = vmatpush.msra.mxu0 0.0
        %1469 = vmatpush.msra.mxu0 0.0
        %1470 = vmatpush.msra.mxu0 0.0
        %1471 = vmatpush.msra.mxu0 0.0
        %1472 = vmatpush.msra.mxu0 0.0
        %1473 = vmatpush.msra.mxu0 0.0
        %1474 = vmatpush.msra.mxu0 0.0
        %1475 = vmatpush.msra.mxu0 0.0
        %1476 = vmatpush.msra.mxu0 0.0
        %1477 = vmatpush.msra.mxu0 %v1374
        %1478 = vmatpush.msra.mxu0 %v1295
        %1479 = vmatpush.msra.mxu0 %v1293
        %1480 = vmatpush.msra.mxu0 %v1291
        %1481 = vmatmul.f32.gmra.mxu0 %v1299
        %v1482 = vpop.f32.mrf.mxu0
        %v1483 = vadd.f32 0.0, %v1482
        %1484 = vmatmul.f32.gmra.mxu0 %v1302
        %v1485 = vpop.f32.mrf.mxu0
        %v1486 = vadd.f32 0.0, %v1485
        %1487 = vmatmul.f32.gmra.mxu0 %v1305
        %v1488 = vpop.f32.mrf.mxu0
        %v1489 = vadd.f32 0.0, %v1488
        %1490 = vmatmul.f32.gmra.mxu0 %v1308
        %v1491 = vpop.f32.mrf.mxu0
        %v1492 = vadd.f32 0.0, %v1491
        %1493 = vmatmul.f32.gmra.mxu0 %v1311
        %v1494 = vpop.f32.mrf.mxu0
        %v1495 = vadd.f32 0.0, %v1494
        %1496 = vmatmul.f32.gmra.mxu0 %v1314
        %v1497 = vpop.f32.mrf.mxu0
        %v1498 = vadd.f32 0.0, %v1497
        %1499 = vmatmul.f32.gmra.mxu0 %v1317
        %v1500 = vpop.f32.mrf.mxu0
        %v1501 = vadd.f32 0.0, %v1500
        %1502 = vmatmul.f32.gmra.mxu0 %v1320
        %v1503 = vpop.f32.mrf.mxu0
        %v1504 = vadd.f32 0.0, %v1503
        %1505 = vmatmul.f32.gmra.mxu0 %v1323
        %v1506 = vpop.f32.mrf.mxu0
        %v1507 = vadd.f32 0.0, %v1506
        %1508 = vmatmul.f32.gmra.mxu0 %v1326
        %v1509 = vpop.f32.mrf.mxu0
        %v1510 = vadd.f32 0.0, %v1509
        %1511 = vmatmul.f32.gmra.mxu0 %v1329
        %v1512 = vpop.f32.mrf.mxu0
        %v1513 = vadd.f32 0.0, %v1512
        %1514 = vmatmul.f32.gmra.mxu0 %v1332
        %v1515 = vpop.f32.mrf.mxu0
        %v1516 = vadd.f32 0.0, %v1515
        %1517 = vmatmul.f32.gmra.mxu0 %v1335
        %v1518 = vpop.f32.mrf.mxu0
        %v1519 = vadd.f32 0.0, %v1518
        %1520 = vmatmul.f32.gmra.mxu0 %v1338
        %v1521 = vpop.f32.mrf.mxu0
        %v1522 = vadd.f32 0.0, %v1521
        %1523 = vmatmul.f32.gmra.mxu0 %v1341
        %v1524 = vpop.f32.mrf.mxu0
        %v1525 = vadd.f32 0.0, %v1524
        %1526 = vmatmul.f32.gmra.mxu0 %v1344
        %v1527 = vpop.f32.mrf.mxu0
        %v1528 = vadd.f32 0.0, %v1527
        %1529 = vmatmul.f32.gmra.mxu0 %v1347
        %v1530 = vpop.f32.mrf.mxu0
        %v1531 = vadd.f32 0.0, %v1530
        %1532 = vmatmul.f32.gmra.mxu0 %v1350
        %v1533 = vpop.f32.mrf.mxu0
        %v1534 = vadd.f32 0.0, %v1533
        %1535 = vmatmul.f32.gmra.mxu0 %v1353
        %v1536 = vpop.f32.mrf.mxu0
        %v1537 = vadd.f32 0.0, %v1536
        %1538 = vmatmul.f32.gmra.mxu0 %v1356
        %v1539 = vpop.f32.mrf.mxu0
        %v1540 = vadd.f32 0.0, %v1539
        %1541 = vmatmul.f32.gmra.mxu0 %v1359
        %v1542 = vpop.f32.mrf.mxu0
        %v1543 = vadd.f32 0.0, %v1542
        %1544 = vmatmul.f32.gmra.mxu0 %v1362
        %v1545 = vpop.f32.mrf.mxu0
        %v1546 = vadd.f32 0.0, %v1545
        %1547 = vmatmul.f32.gmra.mxu0 %v1365
        %v1548 = vpop.f32.mrf.mxu0
        %v1549 = vadd.f32 0.0, %v1548
        %1550 = vmatmul.f32.gmra.mxu0 %v1368
        %v1551 = vpop.f32.mrf.mxu0
        %v1552 = vadd.f32 0.0, %v1551
        %1553 = vdwg.mxu0
        %v1554 = vadd.f32 %v1217, %v1394
        %v1555 = vadd.f32 %v1218, %v1483
        %v1556 = vadd.f32 %v1219, %v1397
        %v1557 = vadd.f32 %v1220, %v1486
        %v1558 = vadd.f32 %v1221, %v1400
        %v1559 = vadd.f32 %v1222, %v1489
        %v1560 = vadd.f32 %v1223, %v1403
        %v1561 = vadd.f32 %v1224, %v1492
        %v1562 = vadd.f32 %v1225, %v1406
        %v1563 = vadd.f32 %v1226, %v1495
        %v1564 = vadd.f32 %v1227, %v1409
        %v1565 = vadd.f32 %v1228, %v1498
        %v1566 = vadd.f32 %v1229, %v1412
        %v1567 = vadd.f32 %v1230, %v1501
        %v1568 = vadd.f32 %v1231, %v1415
        %v1569 = vadd.f32 %v1232, %v1504
        %v1570 = vadd.f32 %v1233, %v1418
        %v1571 = vadd.f32 %v1234, %v1507
        %v1572 = vadd.f32 %v1235, %v1421
        %v1573 = vadd.f32 %v1236, %v1510
        %v1574 = vadd.f32 %v1237, %v1424
        %v1575 = vadd.f32 %v1238, %v1513
        %v1576 = vadd.f32 %v1239, %v1427
        %v1577 = vadd.f32 %v1240, %v1516
        %v1578 = vadd.f32 %v1241, %v1430
        %v1579 = vadd.f32 %v1242, %v1519
        %v1580 = vadd.f32 %v1243, %v1433
        %v1581 = vadd.f32 %v1244, %v1522
        %v1582 = vadd.f32 %v1245, %v1436
        %v1583 = vadd.f32 %v1246, %v1525
        %v1584 = vadd.f32 %v1247, %v1439
        %v1585 = vadd.f32 %v1248, %v1528
        %v1586 = vadd.f32 %v1249, %v1442
        %v1587 = vadd.f32 %v1250, %v1531
        %v1588 = vadd.f32 %v1251, %v1445
        %v1589 = vadd.f32 %v1252, %v1534
        %v1590 = vadd.f32 %v1253, %v1448
        %v1591 = vadd.f32 %v1254, %v1537
        %v1592 = vadd.f32 %v1255, %v1451
        %v1593 = vadd.f32 %v1256, %v1540
        %v1594 = vadd.f32 %v1257, %v1454
        %v1595 = vadd.f32 %v1258, %v1543
        %v1596 = vadd.f32 %v1259, %v1457
        %v1597 = vadd.f32 %v1260, %v1546
        %v1598 = vadd.f32 %v1261, %v1460
        %v1599 = vadd.f32 %v1262, %v1549
        %v1600 = vadd.f32 %v1263, %v1463
        %v1601 = vadd.f32 %v1264, %v1552
        %v1602 = vld [vmem:[%s439 + $0x20] sm:$0xff]
        %v1603 = vld [vmem:[%s439 + $0x28] sm:$0xff]
        %v1604 = vld [vmem:[%s439 + $0x30] sm:$0xff]
        %v1605 = vld [vmem:[%s439 + $0x38] sm:$0xff]
        %v1606 = vld [vmem:[%s439 + $0x40] sm:$0xff]
        %v1607 = vld [vmem:[%s439 + $0x48] sm:$0xff]
        %v1608 = vld [vmem:[%s439 + $0x50] sm:$0xff]
        %v1609 = vld [vmem:[%s439 + $0x58] sm:$0xff]
        %v1610 = vld [vmem:[%s439 + $0x60] sm:$0xff]
        %v1611 = vld [vmem:[%s439 + $0x68] sm:$0xff]
        %v1612 = vld [vmem:[%s439 + $0x70] sm:$0xff]
        %v1613 = vld [vmem:[%s439 + $0x78] sm:$0xff]
        %v1614 = vld [vmem:[%s439 + $0x80] sm:$0xff]
        %v1615 = vld [vmem:[%s439 + $0x88] sm:$0xff]
        %v1616 = vld [vmem:[%s439 + $0x90] sm:$0xff]
        %v1617 = vld [vmem:[%s439 + $0x98] sm:$0xff]
        %v1618 = vld [vmem:[%s439 + $0xa0] sm:$0xff]
        %v1619 = vld [vmem:[%s439 + $0xa8] sm:$0xff]
        %v1620 = vld [vmem:[%s439 + $0xb0] sm:$0xff]
        %v1621 = vld [vmem:[%s439 + $0xb8] sm:$0xff]
        %v1622 = vld [vmem:[%s439 + $0xc0] sm:$0xff]
        %v1623 = vld [vmem:[%s439 + $0xc8] sm:$0xff]
        %v1624 = vld [vmem:[%s439 + $0xd0] sm:$0xff]
        %v1625 = vld [vmem:[%s439 + $0xd8] sm:$0xff]
        %s1626 = scalar_lea.vmem %s1, 256
        %v1627 = vld [vmem:[%s1626] sm:$0xff]
        %v1628 = vld [vmem:[%s1626 + $0x8] sm:$0xff]
        %v1629 = vld [vmem:[%s1626 + $0x10] sm:$0xff]
        %v1630 = vld [vmem:[%s1626 + $0x18] sm:$0xff]
        %v1631 = vld [vmem:[%s1626 + $0x20] sm:$0xff]
        %v1632 = vld [vmem:[%s1626 + $0x28] sm:$0xff]
        %v1633 = vld [vmem:[%s1626 + $0x30] sm:$0xf]
        %v1634 = vld [vmem:[%s1626 + $0x38] sm:$0xf]
        %v1636 = vsel %vm483, %v1602, 0
        %v1639 = vsel %vm483, %v1603, 0
        %v1642 = vsel %vm483, %v1604, 0
        %v1645 = vsel %vm483, %v1605, 0
        %v1648 = vsel %vm483, %v1606, 0
        %v1651 = vsel %vm483, %v1607, 0
        %v1654 = vsel %vm483, %v1608, 0
        %v1657 = vsel %vm483, %v1609, 0
        %v1660 = vsel %vm483, %v1610, 0
        %v1663 = vsel %vm483, %v1611, 0
        %v1666 = vsel %vm483, %v1612, 0
        %v1669 = vsel %vm483, %v1613, 0
        %v1672 = vsel %vm483, %v1614, 0
        %v1675 = vsel %vm483, %v1615, 0
        %v1678 = vsel %vm483, %v1616, 0
        %v1681 = vsel %vm483, %v1617, 0
        %v1684 = vsel %vm483, %v1618, 0
        %v1687 = vsel %vm483, %v1619, 0
        %v1690 = vsel %vm483, %v1620, 0
        %v1693 = vsel %vm483, %v1621, 0
        %v1696 = vsel %vm483, %v1622, 0
        %v1699 = vsel %vm483, %v1623, 0
        %v1702 = vsel %vm483, %v1624, 0
        %v1705 = vsel %vm483, %v1625, 0
        %v1708 = vsel %vm556, %v1633, 0
        %v1711 = vsel %vm556, %v1634, 0
        %1713 = vmatpush.msra.mxu0 0.0
        %1714 = vmatpush.msra.mxu0 0.0
        %1715 = vmatpush.msra.mxu0 0.0
        %1716 = vmatpush.msra.mxu0 0.0
        %1717 = vmatpush.msra.mxu0 0.0
        %1718 = vmatpush.msra.mxu0 0.0
        %1719 = vmatpush.msra.mxu0 0.0
        %1720 = vmatpush.msra.mxu0 0.0
        %1721 = vmatpush.msra.mxu0 0.0
        %1722 = vmatpush.msra.mxu0 0.0
        %1723 = vmatpush.msra.mxu0 0.0
        %1724 = vmatpush.msra.mxu0 0.0
        %1725 = vmatpush.msra.mxu0 %v1708
        %1726 = vmatpush.msra.mxu0 %v1631
        %1727 = vmatpush.msra.mxu0 %v1629
        %1728 = vmatpush.msra.mxu0 %v1627
        %1729 = vmatmul.f32.gmra.mxu0 %v1636
        %v1730 = vpop.f32.mrf.mxu0
        %v1731 = vadd.f32 0.0, %v1730
        %1732 = vmatmul.f32.gmra.mxu0 %v1639
        %v1733 = vpop.f32.mrf.mxu0
        %v1734 = vadd.f32 0.0, %v1733
        %1735 = vmatmul.f32.gmra.mxu0 %v1642
        %v1736 = vpop.f32.mrf.mxu0
        %v1737 = vadd.f32 0.0, %v1736
        %1738 = vmatmul.f32.gmra.mxu0 %v1645
        %v1739 = vpop.f32.mrf.mxu0
        %v1740 = vadd.f32 0.0, %v1739
        %1741 = vmatmul.f32.gmra.mxu0 %v1648
        %v1742 = vpop.f32.mrf.mxu0
        %v1743 = vadd.f32 0.0, %v1742
        %1744 = vmatmul.f32.gmra.mxu0 %v1651
        %v1745 = vpop.f32.mrf.mxu0
        %v1746 = vadd.f32 0.0, %v1745
        %1747 = vmatmul.f32.gmra.mxu0 %v1654
        %v1748 = vpop.f32.mrf.mxu0
        %v1749 = vadd.f32 0.0, %v1748
        %1750 = vmatmul.f32.gmra.mxu0 %v1657
        %v1751 = vpop.f32.mrf.mxu0
        %v1752 = vadd.f32 0.0, %v1751
        %1753 = vmatmul.f32.gmra.mxu0 %v1660
        %v1754 = vpop.f32.mrf.mxu0
        %v1755 = vadd.f32 0.0, %v1754
        %1756 = vmatmul.f32.gmra.mxu0 %v1663
        %v1757 = vpop.f32.mrf.mxu0
        %v1758 = vadd.f32 0.0, %v1757
        %1759 = vmatmul.f32.gmra.mxu0 %v1666
        %v1760 = vpop.f32.mrf.mxu0
        %v1761 = vadd.f32 0.0, %v1760
        %1762 = vmatmul.f32.gmra.mxu0 %v1669
        %v1763 = vpop.f32.mrf.mxu0
        %v1764 = vadd.f32 0.0, %v1763
        %1765 = vmatmul.f32.gmra.mxu0 %v1672
        %v1766 = vpop.f32.mrf.mxu0
        %v1767 = vadd.f32 0.0, %v1766
        %1768 = vmatmul.f32.gmra.mxu0 %v1675
        %v1769 = vpop.f32.mrf.mxu0
        %v1770 = vadd.f32 0.0, %v1769
        %1771 = vmatmul.f32.gmra.mxu0 %v1678
        %v1772 = vpop.f32.mrf.mxu0
        %v1773 = vadd.f32 0.0, %v1772
        %1774 = vmatmul.f32.gmra.mxu0 %v1681
        %v1775 = vpop.f32.mrf.mxu0
        %v1776 = vadd.f32 0.0, %v1775
        %1777 = vmatmul.f32.gmra.mxu0 %v1684
        %v1778 = vpop.f32.mrf.mxu0
        %v1779 = vadd.f32 0.0, %v1778
        %1780 = vmatmul.f32.gmra.mxu0 %v1687
        %v1781 = vpop.f32.mrf.mxu0
        %v1782 = vadd.f32 0.0, %v1781
        %1783 = vmatmul.f32.gmra.mxu0 %v1690
        %v1784 = vpop.f32.mrf.mxu0
        %v1785 = vadd.f32 0.0, %v1784
        %1786 = vmatmul.f32.gmra.mxu0 %v1693
        %v1787 = vpop.f32.mrf.mxu0
        %v1788 = vadd.f32 0.0, %v1787
        %1789 = vmatmul.f32.gmra.mxu0 %v1696
        %v1790 = vpop.f32.mrf.mxu0
        %v1791 = vadd.f32 0.0, %v1790
        %1792 = vmatmul.f32.gmra.mxu0 %v1699
        %v1793 = vpop.f32.mrf.mxu0
        %v1794 = vadd.f32 0.0, %v1793
        %1795 = vmatmul.f32.gmra.mxu0 %v1702
        %v1796 = vpop.f32.mrf.mxu0
        %v1797 = vadd.f32 0.0, %v1796
        %1798 = vmatmul.f32.gmra.mxu0 %v1705
        %v1799 = vpop.f32.mrf.mxu0
        %v1800 = vadd.f32 0.0, %v1799
        %1801 = vdwg.mxu0
        %1802 = vmatpush.msra.mxu0 0.0
        %1803 = vmatpush.msra.mxu0 0.0
        %1804 = vmatpush.msra.mxu0 0.0
        %1805 = vmatpush.msra.mxu0 0.0
        %1806 = vmatpush.msra.mxu0 0.0
        %1807 = vmatpush.msra.mxu0 0.0
        %1808 = vmatpush.msra.mxu0 0.0
        %1809 = vmatpush.msra.mxu0 0.0
        %1810 = vmatpush.msra.mxu0 0.0
        %1811 = vmatpush.msra.mxu0 0.0
        %1812 = vmatpush.msra.mxu0 0.0
        %1813 = vmatpush.msra.mxu0 0.0
        %1814 = vmatpush.msra.mxu0 %v1711
        %1815 = vmatpush.msra.mxu0 %v1632
        %1816 = vmatpush.msra.mxu0 %v1630
        %1817 = vmatpush.msra.mxu0 %v1628
        %1818 = vmatmul.f32.gmra.mxu0 %v1636
        %v1819 = vpop.f32.mrf.mxu0
        %v1820 = vadd.f32 0.0, %v1819
        %1821 = vmatmul.f32.gmra.mxu0 %v1639
        %v1822 = vpop.f32.mrf.mxu0
        %v1823 = vadd.f32 0.0, %v1822
        %1824 = vmatmul.f32.gmra.mxu0 %v1642
        %v1825 = vpop.f32.mrf.mxu0
        %v1826 = vadd.f32 0.0, %v1825
        %1827 = vmatmul.f32.gmra.mxu0 %v1645
        %v1828 = vpop.f32.mrf.mxu0
        %v1829 = vadd.f32 0.0, %v1828
        %1830 = vmatmul.f32.gmra.mxu0 %v1648
        %v1831 = vpop.f32.mrf.mxu0
        %v1832 = vadd.f32 0.0, %v1831
        %1833 = vmatmul.f32.gmra.mxu0 %v1651
        %v1834 = vpop.f32.mrf.mxu0
        %v1835 = vadd.f32 0.0, %v1834
        %1836 = vmatmul.f32.gmra.mxu0 %v1654
        %v1837 = vpop.f32.mrf.mxu0
        %v1838 = vadd.f32 0.0, %v1837
        %1839 = vmatmul.f32.gmra.mxu0 %v1657
        %v1840 = vpop.f32.mrf.mxu0
        %v1841 = vadd.f32 0.0, %v1840
        %1842 = vmatmul.f32.gmra.mxu0 %v1660
        %v1843 = vpop.f32.mrf.mxu0
        %v1844 = vadd.f32 0.0, %v1843
        %1845 = vmatmul.f32.gmra.mxu0 %v1663
        %v1846 = vpop.f32.mrf.mxu0
        %v1847 = vadd.f32 0.0, %v1846
        %1848 = vmatmul.f32.gmra.mxu0 %v1666
        %v1849 = vpop.f32.mrf.mxu0
        %v1850 = vadd.f32 0.0, %v1849
        %1851 = vmatmul.f32.gmra.mxu0 %v1669
        %v1852 = vpop.f32.mrf.mxu0
        %v1853 = vadd.f32 0.0, %v1852
        %1854 = vmatmul.f32.gmra.mxu0 %v1672
        %v1855 = vpop.f32.mrf.mxu0
        %v1856 = vadd.f32 0.0, %v1855
        %1857 = vmatmul.f32.gmra.mxu0 %v1675
        %v1858 = vpop.f32.mrf.mxu0
        %v1859 = vadd.f32 0.0, %v1858
        %1860 = vmatmul.f32.gmra.mxu0 %v1678
        %v1861 = vpop.f32.mrf.mxu0
        %v1862 = vadd.f32 0.0, %v1861
        %1863 = vmatmul.f32.gmra.mxu0 %v1681
        %v1864 = vpop.f32.mrf.mxu0
        %v1865 = vadd.f32 0.0, %v1864
        %1866 = vmatmul.f32.gmra.mxu0 %v1684
        %v1867 = vpop.f32.mrf.mxu0
        %v1868 = vadd.f32 0.0, %v1867
        %1869 = vmatmul.f32.gmra.mxu0 %v1687
        %v1870 = vpop.f32.mrf.mxu0
        %v1871 = vadd.f32 0.0, %v1870
        %1872 = vmatmul.f32.gmra.mxu0 %v1690
        %v1873 = vpop.f32.mrf.mxu0
        %v1874 = vadd.f32 0.0, %v1873
        %1875 = vmatmul.f32.gmra.mxu0 %v1693
        %v1876 = vpop.f32.mrf.mxu0
        %v1877 = vadd.f32 0.0, %v1876
        %1878 = vmatmul.f32.gmra.mxu0 %v1696
        %v1879 = vpop.f32.mrf.mxu0
        %v1880 = vadd.f32 0.0, %v1879
        %1881 = vmatmul.f32.gmra.mxu0 %v1699
        %v1882 = vpop.f32.mrf.mxu0
        %v1883 = vadd.f32 0.0, %v1882
        %1884 = vmatmul.f32.gmra.mxu0 %v1702
        %v1885 = vpop.f32.mrf.mxu0
        %v1886 = vadd.f32 0.0, %v1885
        %1887 = vmatmul.f32.gmra.mxu0 %v1705
        %v1888 = vpop.f32.mrf.mxu0
        %v1889 = vadd.f32 0.0, %v1888
        %1890 = vdwg.mxu0
        %v1891 = vadd.f32 %v1554, %v1731
        %v1892 = vadd.f32 %v1555, %v1820
        %v1893 = vadd.f32 %v1556, %v1734
        %v1894 = vadd.f32 %v1557, %v1823
        %v1895 = vadd.f32 %v1558, %v1737
        %v1896 = vadd.f32 %v1559, %v1826
        %v1897 = vadd.f32 %v1560, %v1740
        %v1898 = vadd.f32 %v1561, %v1829
        %v1899 = vadd.f32 %v1562, %v1743
        %v1900 = vadd.f32 %v1563, %v1832
        %v1901 = vadd.f32 %v1564, %v1746
        %v1902 = vadd.f32 %v1565, %v1835
        %v1903 = vadd.f32 %v1566, %v1749
        %v1904 = vadd.f32 %v1567, %v1838
        %v1905 = vadd.f32 %v1568, %v1752
        %v1906 = vadd.f32 %v1569, %v1841
        %v1907 = vadd.f32 %v1570, %v1755
        %v1908 = vadd.f32 %v1571, %v1844
        %v1909 = vadd.f32 %v1572, %v1758
        %v1910 = vadd.f32 %v1573, %v1847
        %v1911 = vadd.f32 %v1574, %v1761
        %v1912 = vadd.f32 %v1575, %v1850
        %v1913 = vadd.f32 %v1576, %v1764
        %v1914 = vadd.f32 %v1577, %v1853
        %v1915 = vadd.f32 %v1578, %v1767
        %v1916 = vadd.f32 %v1579, %v1856
        %v1917 = vadd.f32 %v1580, %v1770
        %v1918 = vadd.f32 %v1581, %v1859
        %v1919 = vadd.f32 %v1582, %v1773
        %v1920 = vadd.f32 %v1583, %v1862
        %v1921 = vadd.f32 %v1584, %v1776
        %v1922 = vadd.f32 %v1585, %v1865
        %v1923 = vadd.f32 %v1586, %v1779
        %v1924 = vadd.f32 %v1587, %v1868
        %v1925 = vadd.f32 %v1588, %v1782
        %v1926 = vadd.f32 %v1589, %v1871
        %v1927 = vadd.f32 %v1590, %v1785
        %v1928 = vadd.f32 %v1591, %v1874
        %v1929 = vadd.f32 %v1592, %v1788
        %v1930 = vadd.f32 %v1593, %v1877
        %v1931 = vadd.f32 %v1594, %v1791
        %v1932 = vadd.f32 %v1595, %v1880
        %v1933 = vadd.f32 %v1596, %v1794
        %v1934 = vadd.f32 %v1597, %v1883
        %v1935 = vadd.f32 %v1598, %v1797
        %v1936 = vadd.f32 %v1599, %v1886
        %v1937 = vadd.f32 %v1600, %v1800
        %v1938 = vadd.f32 %v1601, %v1889
        %v1939 = vld [vmem:[%s2] sm:$0x3]
        %v1941 = vperm.slane %v1939, 0
        %v1942 = vperm.slane %v1939, 1
        %v1945 = vadd.f32 %v1891, %v1941
        %v1946 = vadd.f32 %v1892, %v1942
        %v1947 = vadd.f32 %v1893, %v1941
        %v1948 = vadd.f32 %v1894, %v1942
        %v1949 = vadd.f32 %v1895, %v1941
        %v1950 = vadd.f32 %v1896, %v1942
        %v1951 = vadd.f32 %v1897, %v1941
        %v1952 = vadd.f32 %v1898, %v1942
        %v1953 = vadd.f32 %v1899, %v1941
        %v1954 = vadd.f32 %v1900, %v1942
        %v1955 = vadd.f32 %v1901, %v1941
        %v1956 = vadd.f32 %v1902, %v1942
        %v1957 = vadd.f32 %v1903, %v1941
        %v1958 = vadd.f32 %v1904, %v1942
        %v1959 = vadd.f32 %v1905, %v1941
        %v1960 = vadd.f32 %v1906, %v1942
        %v1961 = vadd.f32 %v1907, %v1941
        %v1962 = vadd.f32 %v1908, %v1942
        %v1963 = vadd.f32 %v1909, %v1941
        %v1964 = vadd.f32 %v1910, %v1942
        %v1965 = vadd.f32 %v1911, %v1941
        %v1966 = vadd.f32 %v1912, %v1942
        %v1967 = vadd.f32 %v1913, %v1941
        %v1968 = vadd.f32 %v1914, %v1942
        %v1969 = vadd.f32 %v1915, %v1941
        %v1970 = vadd.f32 %v1916, %v1942
        %v1971 = vadd.f32 %v1917, %v1941
        %v1972 = vadd.f32 %v1918, %v1942
        %v1973 = vadd.f32 %v1919, %v1941
        %v1974 = vadd.f32 %v1920, %v1942
        %v1975 = vadd.f32 %v1921, %v1941
        %v1976 = vadd.f32 %v1922, %v1942
        %v1977 = vadd.f32 %v1923, %v1941
        %v1978 = vadd.f32 %v1924, %v1942
        %v1979 = vadd.f32 %v1925, %v1941
        %v1980 = vadd.f32 %v1926, %v1942
        %v1981 = vadd.f32 %v1927, %v1941
        %v1982 = vadd.f32 %v1928, %v1942
        %v1983 = vadd.f32 %v1929, %v1941
        %v1984 = vadd.f32 %v1930, %v1942
        %v1985 = vadd.f32 %v1931, %v1941
        %v1986 = vadd.f32 %v1932, %v1942
        %v1987 = vadd.f32 %v1933, %v1941
        %v1988 = vadd.f32 %v1934, %v1942
        %v1989 = vadd.f32 %v1935, %v1941
        %v1990 = vadd.f32 %v1936, %v1942
        %v1991 = vadd.f32 %v1937, %v1941
        %v1992 = vadd.f32 %v1938, %v1942
        %v1993 = vmax.f32 %v1945, 0.0
        %v1994 = vmax.f32 %v1946, 0.0
        %v1995 = vmax.f32 %v1947, 0.0
        %v1996 = vmax.f32 %v1948, 0.0
        %v1997 = vmax.f32 %v1949, 0.0
        %v1998 = vmax.f32 %v1950, 0.0
        %v1999 = vmax.f32 %v1951, 0.0
        %v2000 = vmax.f32 %v1952, 0.0
        %v2001 = vmax.f32 %v1953, 0.0
        %v2002 = vmax.f32 %v1954, 0.0
        %v2003 = vmax.f32 %v1955, 0.0
        %v2004 = vmax.f32 %v1956, 0.0
        %v2005 = vmax.f32 %v1957, 0.0
        %v2006 = vmax.f32 %v1958, 0.0
        %v2007 = vmax.f32 %v1959, 0.0
        %v2008 = vmax.f32 %v1960, 0.0
        %v2009 = vmax.f32 %v1961, 0.0
        %v2010 = vmax.f32 %v1962, 0.0
        %v2011 = vmax.f32 %v1963, 0.0
        %v2012 = vmax.f32 %v1964, 0.0
        %v2013 = vmax.f32 %v1965, 0.0
        %v2014 = vmax.f32 %v1966, 0.0
        %v2015 = vmax.f32 %v1967, 0.0
        %v2016 = vmax.f32 %v1968, 0.0
        %v2017 = vmax.f32 %v1969, 0.0
        %v2018 = vmax.f32 %v1970, 0.0
        %v2019 = vmax.f32 %v1971, 0.0
        %v2020 = vmax.f32 %v1972, 0.0
        %v2021 = vmax.f32 %v1973, 0.0
        %v2022 = vmax.f32 %v1974, 0.0
        %v2023 = vmax.f32 %v1975, 0.0
        %v2024 = vmax.f32 %v1976, 0.0
        %v2025 = vmax.f32 %v1977, 0.0
        %v2026 = vmax.f32 %v1978, 0.0
        %v2027 = vmax.f32 %v1979, 0.0
        %v2028 = vmax.f32 %v1980, 0.0
        %v2029 = vmax.f32 %v1981, 0.0
        %v2030 = vmax.f32 %v1982, 0.0
        %v2031 = vmax.f32 %v1983, 0.0
        %v2032 = vmax.f32 %v1984, 0.0
        %v2033 = vmax.f32 %v1985, 0.0
        %v2034 = vmax.f32 %v1986, 0.0
        %v2035 = vmax.f32 %v1987, 0.0
        %v2036 = vmax.f32 %v1988, 0.0
        %v2037 = vmax.f32 %v1989, 0.0
        %v2038 = vmax.f32 %v1990, 0.0
        %v2039 = vmax.f32 %v1991, 0.0
        %v2040 = vmax.f32 %v1992, 0.0
        %v2041 = vld [vmem:[%s3] sm:$0xff]
        %v2042 = vld [vmem:[%s3 + $0x8] sm:$0xff]
        %v2043 = vld [vmem:[%s3 + $0x10] sm:$0xff]
        %v2044 = vld [vmem:[%s3 + $0x18] sm:$0xff]
        %v2045 = vld [vmem:[%s3 + $0x20] sm:$0xff]
        %v2046 = vld [vmem:[%s3 + $0x28] sm:$0xff]
        %v2047 = vld [vmem:[%s3 + $0x30] sm:$0xff]
        %v2048 = vld [vmem:[%s3 + $0x38] sm:$0xff]
        %v2049 = vld [vmem:[%s3 + $0x40] sm:$0xff]
        %v2050 = vld [vmem:[%s3 + $0x48] sm:$0xff]
        %v2051 = vld [vmem:[%s3 + $0x50] sm:$0xff]
        %v2052 = vld [vmem:[%s3 + $0x58] sm:$0xff]
        %v2053 = vld [vmem:[%s3 + $0x60] sm:$0xff]
        %v2054 = vld [vmem:[%s3 + $0x68] sm:$0xff]
        %v2055 = vld [vmem:[%s3 + $0x70] sm:$0xff]
        %v2056 = vld [vmem:[%s3 + $0x78] sm:$0xff]
        %v2057 = vld [vmem:[%s3 + $0x80] sm:$0xff]
        %v2058 = vld [vmem:[%s3 + $0x88] sm:$0xff]
        %vm2059 = vcmask 130048
        %v2061 = vsel %vm2059, %v1994, 0
        %v2064 = vsel %vm2059, %v1996, 0
        %v2067 = vsel %vm2059, %v1998, 0
        %v2070 = vsel %vm2059, %v2000, 0
        %v2073 = vsel %vm2059, %v2002, 0
        %v2076 = vsel %vm2059, %v2004, 0
        %v2079 = vsel %vm2059, %v2006, 0
        %v2082 = vsel %vm2059, %v2008, 0
        %v2085 = vsel %vm2059, %v2010, 0
        %v2088 = vsel %vm2059, %v2012, 0
        %v2091 = vsel %vm2059, %v2014, 0
        %v2094 = vsel %vm2059, %v2016, 0
        %v2097 = vsel %vm2059, %v2018, 0
        %v2100 = vsel %vm2059, %v2020, 0
        %v2103 = vsel %vm2059, %v2022, 0
        %v2106 = vsel %vm2059, %v2024, 0
        %v2109 = vsel %vm2059, %v2026, 0
        %v2112 = vsel %vm2059, %v2028, 0
        %v2115 = vsel %vm2059, %v2030, 0
        %v2118 = vsel %vm2059, %v2032, 0
        %v2121 = vsel %vm2059, %v2034, 0
        %v2124 = vsel %vm2059, %v2036, 0
        %v2127 = vsel %vm2059, %v2038, 0
        %v2130 = vsel %vm2059, %v2040, 0
        %2132 = vmatpush.msra.mxu0 %v2056
        %2133 = vmatpush.msra.mxu0 %v2055
        %2134 = vmatpush.msra.mxu0 %v2054
        %2135 = vmatpush.msra.mxu0 %v2053
        %2136 = vmatpush.msra.mxu0 %v2052
        %2137 = vmatpush.msra.mxu0 %v2051
        %2138 = vmatpush.msra.mxu0 %v2050
        %2139 = vmatpush.msra.mxu0 %v2049
        %2140 = vmatpush.msra.mxu0 %v2048
        %2141 = vmatpush.msra.mxu0 %v2047
        %2142 = vmatpush.msra.mxu0 %v2046
        %2143 = vmatpush.msra.mxu0 %v2045
        %2144 = vmatpush.msra.mxu0 %v2044
        %2145 = vmatpush.msra.mxu0 %v2043
        %2146 = vmatpush.msra.mxu0 %v2042
        %2147 = vmatpush.msra.mxu0 %v2041
        %2148 = vmatmul.f32.gmra.mxu0 %v1993
        %v2149 = vpop.f32.mrf.mxu0
        %v2150 = vadd.f32 0.0, %v2149
        %2151 = vmatmul.f32.gmra.mxu0 %v1995
        %v2152 = vpop.f32.mrf.mxu0
        %v2153 = vadd.f32 0.0, %v2152
        %2154 = vmatmul.f32.gmra.mxu0 %v1997
        %v2155 = vpop.f32.mrf.mxu0
        %v2156 = vadd.f32 0.0, %v2155
        %2157 = vmatmul.f32.gmra.mxu0 %v1999
        %v2158 = vpop.f32.mrf.mxu0
        %v2159 = vadd.f32 0.0, %v2158
        %2160 = vmatmul.f32.gmra.mxu0 %v2001
        %v2161 = vpop.f32.mrf.mxu0
        %v2162 = vadd.f32 0.0, %v2161
        %2163 = vmatmul.f32.gmra.mxu0 %v2003
        %v2164 = vpop.f32.mrf.mxu0
        %v2165 = vadd.f32 0.0, %v2164
        %2166 = vmatmul.f32.gmra.mxu0 %v2005
        %v2167 = vpop.f32.mrf.mxu0
        %v2168 = vadd.f32 0.0, %v2167
        %2169 = vmatmul.f32.gmra.mxu0 %v2007
        %v2170 = vpop.f32.mrf.mxu0
        %v2171 = vadd.f32 0.0, %v2170
        %2172 = vmatmul.f32.gmra.mxu0 %v2009
        %v2173 = vpop.f32.mrf.mxu0
        %v2174 = vadd.f32 0.0, %v2173
        %2175 = vmatmul.f32.gmra.mxu0 %v2011
        %v2176 = vpop.f32.mrf.mxu0
        %v2177 = vadd.f32 0.0, %v2176
        %2178 = vmatmul.f32.gmra.mxu0 %v2013
        %v2179 = vpop.f32.mrf.mxu0
        %v2180 = vadd.f32 0.0, %v2179
        %2181 = vmatmul.f32.gmra.mxu0 %v2015
        %v2182 = vpop.f32.mrf.mxu0
        %v2183 = vadd.f32 0.0, %v2182
        %2184 = vmatmul.f32.gmra.mxu0 %v2017
        %v2185 = vpop.f32.mrf.mxu0
        %v2186 = vadd.f32 0.0, %v2185
        %2187 = vmatmul.f32.gmra.mxu0 %v2019
        %v2188 = vpop.f32.mrf.mxu0
        %v2189 = vadd.f32 0.0, %v2188
        %2190 = vmatmul.f32.gmra.mxu0 %v2021
        %v2191 = vpop.f32.mrf.mxu0
        %v2192 = vadd.f32 0.0, %v2191
        %2193 = vmatmul.f32.gmra.mxu0 %v2023
        %v2194 = vpop.f32.mrf.mxu0
        %v2195 = vadd.f32 0.0, %v2194
        %2196 = vmatmul.f32.gmra.mxu0 %v2025
        %v2197 = vpop.f32.mrf.mxu0
        %v2198 = vadd.f32 0.0, %v2197
        %2199 = vmatmul.f32.gmra.mxu0 %v2027
        %v2200 = vpop.f32.mrf.mxu0
        %v2201 = vadd.f32 0.0, %v2200
        %2202 = vmatmul.f32.gmra.mxu0 %v2029
        %v2203 = vpop.f32.mrf.mxu0
        %v2204 = vadd.f32 0.0, %v2203
        %2205 = vmatmul.f32.gmra.mxu0 %v2031
        %v2206 = vpop.f32.mrf.mxu0
        %v2207 = vadd.f32 0.0, %v2206
        %2208 = vmatmul.f32.gmra.mxu0 %v2033
        %v2209 = vpop.f32.mrf.mxu0
        %v2210 = vadd.f32 0.0, %v2209
        %2211 = vmatmul.f32.gmra.mxu0 %v2035
        %v2212 = vpop.f32.mrf.mxu0
        %v2213 = vadd.f32 0.0, %v2212
        %2214 = vmatmul.f32.gmra.mxu0 %v2037
        %v2215 = vpop.f32.mrf.mxu0
        %v2216 = vadd.f32 0.0, %v2215
        %2217 = vmatmul.f32.gmra.mxu0 %v2039
        %v2218 = vpop.f32.mrf.mxu0
        %v2219 = vadd.f32 0.0, %v2218
        %2220 = vdwg.mxu0
        %2221 = vmatpush.msra.mxu0 0.0
        %2222 = vmatpush.msra.mxu0 0.0
        %2223 = vmatpush.msra.mxu0 0.0
        %2224 = vmatpush.msra.mxu0 0.0
        %2225 = vmatpush.msra.mxu0 0.0
        %2226 = vmatpush.msra.mxu0 0.0
        %2227 = vmatpush.msra.mxu0 0.0
        %2228 = vmatpush.msra.mxu0 0.0
        %2229 = vmatpush.msra.mxu0 0.0
        %2230 = vmatpush.msra.mxu0 0.0
        %2231 = vmatpush.msra.mxu0 0.0
        %2232 = vmatpush.msra.mxu0 0.0
        %2233 = vmatpush.msra.mxu0 0.0
        %2234 = vmatpush.msra.mxu0 0.0
        %2235 = vmatpush.msra.mxu0 %v2058
        %2236 = vmatpush.msra.mxu0 %v2057
        %2237 = vmatmul.f32.gmra.mxu0 %v2061
        %v2238 = vpop.f32.mrf.mxu0
        %v2239 = vadd.f32 %v2150, %v2238
        %2240 = vmatmul.f32.gmra.mxu0 %v2064
        %v2241 = vpop.f32.mrf.mxu0
        %v2242 = vadd.f32 %v2153, %v2241
        %2243 = vmatmul.f32.gmra.mxu0 %v2067
        %v2244 = vpop.f32.mrf.mxu0
        %v2245 = vadd.f32 %v2156, %v2244
        %2246 = vmatmul.f32.gmra.mxu0 %v2070
        %v2247 = vpop.f32.mrf.mxu0
        %v2248 = vadd.f32 %v2159, %v2247
        %2249 = vmatmul.f32.gmra.mxu0 %v2073
        %v2250 = vpop.f32.mrf.mxu0
        %v2251 = vadd.f32 %v2162, %v2250
        %2252 = vmatmul.f32.gmra.mxu0 %v2076
        %v2253 = vpop.f32.mrf.mxu0
        %v2254 = vadd.f32 %v2165, %v2253
        %2255 = vmatmul.f32.gmra.mxu0 %v2079
        %v2256 = vpop.f32.mrf.mxu0
        %v2257 = vadd.f32 %v2168, %v2256
        %2258 = vmatmul.f32.gmra.mxu0 %v2082
        %v2259 = vpop.f32.mrf.mxu0
        %v2260 = vadd.f32 %v2171, %v2259
        %2261 = vmatmul.f32.gmra.mxu0 %v2085
        %v2262 = vpop.f32.mrf.mxu0
        %v2263 = vadd.f32 %v2174, %v2262
        %2264 = vmatmul.f32.gmra.mxu0 %v2088
        %v2265 = vpop.f32.mrf.mxu0
        %v2266 = vadd.f32 %v2177, %v2265
        %2267 = vmatmul.f32.gmra.mxu0 %v2091
        %v2268 = vpop.f32.mrf.mxu0
        %v2269 = vadd.f32 %v2180, %v2268
        %2270 = vmatmul.f32.gmra.mxu0 %v2094
        %v2271 = vpop.f32.mrf.mxu0
        %v2272 = vadd.f32 %v2183, %v2271
        %2273 = vmatmul.f32.gmra.mxu0 %v2097
        %v2274 = vpop.f32.mrf.mxu0
        %v2275 = vadd.f32 %v2186, %v2274
        %2276 = vmatmul.f32.gmra.mxu0 %v2100
        %v2277 = vpop.f32.mrf.mxu0
        %v2278 = vadd.f32 %v2189, %v2277
        %2279 = vmatmul.f32.gmra.mxu0 %v2103
        %v2280 = vpop.f32.mrf.mxu0
        %v2281 = vadd.f32 %v2192, %v2280
        %2282 = vmatmul.f32.gmra.mxu0 %v2106
        %v2283 = vpop.f32.mrf.mxu0
        %v2284 = vadd.f32 %v2195, %v2283
        %2285 = vmatmul.f32.gmra.mxu0 %v2109
        %v2286 = vpop.f32.mrf.mxu0
        %v2287 = vadd.f32 %v2198, %v2286
        %2288 = vmatmul.f32.gmra.mxu0 %v2112
        %v2289 = vpop.f32.mrf.mxu0
        %v2290 = vadd.f32 %v2201, %v2289
        %2291 = vmatmul.f32.gmra.mxu0 %v2115
        %v2292 = vpop.f32.mrf.mxu0
        %v2293 = vadd.f32 %v2204, %v2292
        %2294 = vmatmul.f32.gmra.mxu0 %v2118
        %v2295 = vpop.f32.mrf.mxu0
        %v2296 = vadd.f32 %v2207, %v2295
        %2297 = vmatmul.f32.gmra.mxu0 %v2121
        %v2298 = vpop.f32.mrf.mxu0
        %v2299 = vadd.f32 %v2210, %v2298
        %2300 = vmatmul.f32.gmra.mxu0 %v2124
        %v2301 = vpop.f32.mrf.mxu0
        %v2302 = vadd.f32 %v2213, %v2301
        %2303 = vmatmul.f32.gmra.mxu0 %v2127
        %v2304 = vpop.f32.mrf.mxu0
        %v2305 = vadd.f32 %v2216, %v2304
        %2306 = vmatmul.f32.gmra.mxu0 %v2130
        %v2307 = vpop.f32.mrf.mxu0
        %v2308 = vadd.f32 %v2219, %v2307
        %2309 = vdwg.mxu0
        %s2310 = scalar_lea.vmem %s3, 144
        %v2311 = vld [vmem:[%s2310] sm:$0xff]
        %v2312 = vld [vmem:[%s2310 + $0x8] sm:$0xff]
        %v2313 = vld [vmem:[%s2310 + $0x10] sm:$0xff]
        %v2314 = vld [vmem:[%s2310 + $0x18] sm:$0xff]
        %v2315 = vld [vmem:[%s2310 + $0x20] sm:$0xff]
        %v2316 = vld [vmem:[%s2310 + $0x28] sm:$0xff]
        %v2317 = vld [vmem:[%s2310 + $0x30] sm:$0xff]
        %v2318 = vld [vmem:[%s2310 + $0x38] sm:$0xff]
        %v2319 = vld [vmem:[%s2310 + $0x40] sm:$0xff]
        %v2320 = vld [vmem:[%s2310 + $0x48] sm:$0xff]
        %v2321 = vld [vmem:[%s2310 + $0x50] sm:$0xff]
        %v2322 = vld [vmem:[%s2310 + $0x58] sm:$0xff]
        %v2323 = vld [vmem:[%s2310 + $0x60] sm:$0xff]
        %v2324 = vld [vmem:[%s2310 + $0x68] sm:$0xff]
        %v2325 = vld [vmem:[%s2310 + $0x70] sm:$0xff]
        %v2326 = vld [vmem:[%s2310 + $0x78] sm:$0xff]
        %v2327 = vld [vmem:[%s2310 + $0x80] sm:$0xff]
        %v2328 = vld [vmem:[%s2310 + $0x88] sm:$0xff]
        %2329 = vmatpush.msra.mxu0 %v2326
        %2330 = vmatpush.msra.mxu0 %v2325
        %2331 = vmatpush.msra.mxu0 %v2324
        %2332 = vmatpush.msra.mxu0 %v2323
        %2333 = vmatpush.msra.mxu0 %v2322
        %2334 = vmatpush.msra.mxu0 %v2321
        %2335 = vmatpush.msra.mxu0 %v2320
        %2336 = vmatpush.msra.mxu0 %v2319
        %2337 = vmatpush.msra.mxu0 %v2318
        %2338 = vmatpush.msra.mxu0 %v2317
        %2339 = vmatpush.msra.mxu0 %v2316
        %2340 = vmatpush.msra.mxu0 %v2315
        %2341 = vmatpush.msra.mxu0 %v2314
        %2342 = vmatpush.msra.mxu0 %v2313
        %2343 = vmatpush.msra.mxu0 %v2312
        %2344 = vmatpush.msra.mxu0 %v2311
        %2345 = vmatmul.f32.gmra.mxu0 %v1993
        %v2346 = vpop.f32.mrf.mxu0
        %v2347 = vadd.f32 0.0, %v2346
        %2348 = vmatmul.f32.gmra.mxu0 %v1995
        %v2349 = vpop.f32.mrf.mxu0
        %v2350 = vadd.f32 0.0, %v2349
        %2351 = vmatmul.f32.gmra.mxu0 %v1997
        %v2352 = vpop.f32.mrf.mxu0
        %v2353 = vadd.f32 0.0, %v2352
        %2354 = vmatmul.f32.gmra.mxu0 %v1999
        %v2355 = vpop.f32.mrf.mxu0
        %v2356 = vadd.f32 0.0, %v2355
        %2357 = vmatmul.f32.gmra.mxu0 %v2001
        %v2358 = vpop.f32.mrf.mxu0
        %v2359 = vadd.f32 0.0, %v2358
        %2360 = vmatmul.f32.gmra.mxu0 %v2003
        %v2361 = vpop.f32.mrf.mxu0
        %v2362 = vadd.f32 0.0, %v2361
        %2363 = vmatmul.f32.gmra.mxu0 %v2005
        %v2364 = vpop.f32.mrf.mxu0
        %v2365 = vadd.f32 0.0, %v2364
        %2366 = vmatmul.f32.gmra.mxu0 %v2007
        %v2367 = vpop.f32.mrf.mxu0
        %v2368 = vadd.f32 0.0, %v2367
        %2369 = vmatmul.f32.gmra.mxu0 %v2009
        %v2370 = vpop.f32.mrf.mxu0
        %v2371 = vadd.f32 0.0, %v2370
        %2372 = vmatmul.f32.gmra.mxu0 %v2011
        %v2373 = vpop.f32.mrf.mxu0
        %v2374 = vadd.f32 0.0, %v2373
        %2375 = vmatmul.f32.gmra.mxu0 %v2013
        %v2376 = vpop.f32.mrf.mxu0
        %v2377 = vadd.f32 0.0, %v2376
        %2378 = vmatmul.f32.gmra.mxu0 %v2015
        %v2379 = vpop.f32.mrf.mxu0
        %v2380 = vadd.f32 0.0, %v2379
        %2381 = vmatmul.f32.gmra.mxu0 %v2017
        %v2382 = vpop.f32.mrf.mxu0
        %v2383 = vadd.f32 0.0, %v2382
        %2384 = vmatmul.f32.gmra.mxu0 %v2019
        %v2385 = vpop.f32.mrf.mxu0
        %v2386 = vadd.f32 0.0, %v2385
        %2387 = vmatmul.f32.gmra.mxu0 %v2021
        %v2388 = vpop.f32.mrf.mxu0
        %v2389 = vadd.f32 0.0, %v2388
        %2390 = vmatmul.f32.gmra.mxu0 %v2023
        %v2391 = vpop.f32.mrf.mxu0
        %v2392 = vadd.f32 0.0, %v2391
        %2393 = vmatmul.f32.gmra.mxu0 %v2025
        %v2394 = vpop.f32.mrf.mxu0
        %v2395 = vadd.f32 0.0, %v2394
        %2396 = vmatmul.f32.gmra.mxu0 %v2027
        %v2397 = vpop.f32.mrf.mxu0
        %v2398 = vadd.f32 0.0, %v2397
        %2399 = vmatmul.f32.gmra.mxu0 %v2029
        %v2400 = vpop.f32.mrf.mxu0
        %v2401 = vadd.f32 0.0, %v2400
        %2402 = vmatmul.f32.gmra.mxu0 %v2031
        %v2403 = vpop.f32.mrf.mxu0
        %v2404 = vadd.f32 0.0, %v2403
        %2405 = vmatmul.f32.gmra.mxu0 %v2033
        %v2406 = vpop.f32.mrf.mxu0
        %v2407 = vadd.f32 0.0, %v2406
        %2408 = vmatmul.f32.gmra.mxu0 %v2035
        %v2409 = vpop.f32.mrf.mxu0
        %v2410 = vadd.f32 0.0, %v2409
        %2411 = vmatmul.f32.gmra.mxu0 %v2037
        %v2412 = vpop.f32.mrf.mxu0
        %v2413 = vadd.f32 0.0, %v2412
        %2414 = vmatmul.f32.gmra.mxu0 %v2039
        %v2415 = vpop.f32.mrf.mxu0
        %v2416 = vadd.f32 0.0, %v2415
        %2417 = vdwg.mxu0
        %2418 = vmatpush.msra.mxu0 0.0
        %2419 = vmatpush.msra.mxu0 0.0
        %2420 = vmatpush.msra.mxu0 0.0
        %2421 = vmatpush.msra.mxu0 0.0
        %2422 = vmatpush.msra.mxu0 0.0
        %2423 = vmatpush.msra.mxu0 0.0
        %2424 = vmatpush.msra.mxu0 0.0
        %2425 = vmatpush.msra.mxu0 0.0
        %2426 = vmatpush.msra.mxu0 0.0
        %2427 = vmatpush.msra.mxu0 0.0
        %2428 = vmatpush.msra.mxu0 0.0
        %2429 = vmatpush.msra.mxu0 0.0
        %2430 = vmatpush.msra.mxu0 0.0
        %2431 = vmatpush.msra.mxu0 0.0
        %2432 = vmatpush.msra.mxu0 %v2328
        %2433 = vmatpush.msra.mxu0 %v2327
        %2434 = vmatmul.f32.gmra.mxu0 %v2061
        %v2435 = vpop.f32.mrf.mxu0
        %v2436 = vadd.f32 %v2347, %v2435
        %2437 = vmatmul.f32.gmra.mxu0 %v2064
        %v2438 = vpop.f32.mrf.mxu0
        %v2439 = vadd.f32 %v2350, %v2438
        %2440 = vmatmul.f32.gmra.mxu0 %v2067
        %v2441 = vpop.f32.mrf.mxu0
        %v2442 = vadd.f32 %v2353, %v2441
        %2443 = vmatmul.f32.gmra.mxu0 %v2070
        %v2444 = vpop.f32.mrf.mxu0
        %v2445 = vadd.f32 %v2356, %v2444
        %2446 = vmatmul.f32.gmra.mxu0 %v2073
        %v2447 = vpop.f32.mrf.mxu0
        %v2448 = vadd.f32 %v2359, %v2447
        %2449 = vmatmul.f32.gmra.mxu0 %v2076
        %v2450 = vpop.f32.mrf.mxu0
        %v2451 = vadd.f32 %v2362, %v2450
        %2452 = vmatmul.f32.gmra.mxu0 %v2079
        %v2453 = vpop.f32.mrf.mxu0
        %v2454 = vadd.f32 %v2365, %v2453
        %2455 = vmatmul.f32.gmra.mxu0 %v2082
        %v2456 = vpop.f32.mrf.mxu0
        %v2457 = vadd.f32 %v2368, %v2456
        %2458 = vmatmul.f32.gmra.mxu0 %v2085
        %v2459 = vpop.f32.mrf.mxu0
        %v2460 = vadd.f32 %v2371, %v2459
        %2461 = vmatmul.f32.gmra.mxu0 %v2088
        %v2462 = vpop.f32.mrf.mxu0
        %v2463 = vadd.f32 %v2374, %v2462
        %2464 = vmatmul.f32.gmra.mxu0 %v2091
        %v2465 = vpop.f32.mrf.mxu0
        %v2466 = vadd.f32 %v2377, %v2465
        %2467 = vmatmul.f32.gmra.mxu0 %v2094
        %v2468 = vpop.f32.mrf.mxu0
        %v2469 = vadd.f32 %v2380, %v2468
        %2470 = vmatmul.f32.gmra.mxu0 %v2097
        %v2471 = vpop.f32.mrf.mxu0
        %v2472 = vadd.f32 %v2383, %v2471
        %2473 = vmatmul.f32.gmra.mxu0 %v2100
        %v2474 = vpop.f32.mrf.mxu0
        %v2475 = vadd.f32 %v2386, %v2474
        %2476 = vmatmul.f32.gmra.mxu0 %v2103
        %v2477 = vpop.f32.mrf.mxu0
        %v2478 = vadd.f32 %v2389, %v2477
        %2479 = vmatmul.f32.gmra.mxu0 %v2106
        %v2480 = vpop.f32.mrf.mxu0
        %v2481 = vadd.f32 %v2392, %v2480
        %2482 = vmatmul.f32.gmra.mxu0 %v2109
        %v2483 = vpop.f32.mrf.mxu0
        %v2484 = vadd.f32 %v2395, %v2483
        %2485 = vmatmul.f32.gmra.mxu0 %v2112
        %v2486 = vpop.f32.mrf.mxu0
        %v2487 = vadd.f32 %v2398, %v2486
        %2488 = vmatmul.f32.gmra.mxu0 %v2115
        %v2489 = vpop.f32.mrf.mxu0
        %v2490 = vadd.f32 %v2401, %v2489
        %2491 = vmatmul.f32.gmra.mxu0 %v2118
        %v2492 = vpop.f32.mrf.mxu0
        %v2493 = vadd.f32 %v2404, %v2492
        %2494 = vmatmul.f32.gmra.mxu0 %v2121
        %v2495 = vpop.f32.mrf.mxu0
        %v2496 = vadd.f32 %v2407, %v2495
        %2497 = vmatmul.f32.gmra.mxu0 %v2124
        %v2498 = vpop.f32.mrf.mxu0
        %v2499 = vadd.f32 %v2410, %v2498
        %2500 = vmatmul.f32.gmra.mxu0 %v2127
        %v2501 = vpop.f32.mrf.mxu0
        %v2502 = vadd.f32 %v2413, %v2501
        %2503 = vmatmul.f32.gmra.mxu0 %v2130
        %v2504 = vpop.f32.mrf.mxu0
        %v2505 = vadd.f32 %v2416, %v2504
        %2506 = vdwg.mxu0
        %v2507 = vmax.f32 %v2239, %v2436
        %v2508 = vmax.f32 %v2242, %v2439
        %v2509 = vmax.f32 %v2245, %v2442
        %v2510 = vmax.f32 %v2248, %v2445
        %v2511 = vmax.f32 %v2251, %v2448
        %v2512 = vmax.f32 %v2254, %v2451
        %v2513 = vmax.f32 %v2257, %v2454
        %v2514 = vmax.f32 %v2260, %v2457
        %v2515 = vmax.f32 %v2263, %v2460
        %v2516 = vmax.f32 %v2266, %v2463
        %v2517 = vmax.f32 %v2269, %v2466
        %v2518 = vmax.f32 %v2272, %v2469
        %v2519 = vmax.f32 %v2275, %v2472
        %v2520 = vmax.f32 %v2278, %v2475
        %v2521 = vmax.f32 %v2281, %v2478
        %v2522 = vmax.f32 %v2284, %v2481
        %v2523 = vmax.f32 %v2287, %v2484
        %v2524 = vmax.f32 %v2290, %v2487
        %v2525 = vmax.f32 %v2293, %v2490
        %v2526 = vmax.f32 %v2296, %v2493
        %v2527 = vmax.f32 %v2299, %v2496
        %v2528 = vmax.f32 %v2302, %v2499
        %v2529 = vmax.f32 %v2305, %v2502
        %v2530 = vmax.f32 %v2308, %v2505
        %v2531 = vmax.f32 %v2507, %v2508
        %vm2532 = vcmask 588800
        %2533 = vst.msk [vmem:[#allocation2] sm:$0xff] %vm2532, %v2531
        %v2534 = vmax.f32 %v2509, %v2510
        %2535 = vst.msk [vmem:[#allocation2 + $0x8] sm:$0xff] %vm2532, %v2534
        %v2536 = vmax.f32 %v2511, %v2512
        %2537 = vst.msk [vmem:[#allocation2 + $0x10] sm:$0xff] %vm2532, %v2536
        %v2538 = vmax.f32 %v2513, %v2514
        %2539 = vst.msk [vmem:[#allocation2 + $0x18] sm:$0xff] %vm2532, %v2538
        %v2540 = vmax.f32 %v2515, %v2516
        %2541 = vst.msk [vmem:[#allocation2 + $0x20] sm:$0xff] %vm2532, %v2540
        %v2542 = vmax.f32 %v2517, %v2518
        %2543 = vst.msk [vmem:[#allocation2 + $0x28] sm:$0xff] %vm2532, %v2542
        %v2544 = vmax.f32 %v2519, %v2520
        %2545 = vst.msk [vmem:[#allocation2 + $0x30] sm:$0xff] %vm2532, %v2544
        %v2546 = vmax.f32 %v2521, %v2522
        %2547 = vst.msk [vmem:[#allocation2 + $0x38] sm:$0xff] %vm2532, %v2546
        %v2548 = vmax.f32 %v2523, %v2524
        %2549 = vst.msk [vmem:[#allocation2 + $0x40] sm:$0xff] %vm2532, %v2548
        %v2550 = vmax.f32 %v2525, %v2526
        %2551 = vst.msk [vmem:[#allocation2 + $0x48] sm:$0xff] %vm2532, %v2550
        %v2552 = vmax.f32 %v2527, %v2528
        %2553 = vst.msk [vmem:[#allocation2 + $0x50] sm:$0xff] %vm2532, %v2552
        %v2554 = vmax.f32 %v2529, %v2530
        %2555 = vst.msk [vmem:[#allocation2 + $0x58] sm:$0xff] %vm2532, %v2554
        %v2556 = vld [vmem:[#allocation2] sm:$0xff]
        %v2557 = vld [vmem:[#allocation2 + $0x8] sm:$0xff]
        %v2558 = vld [vmem:[#allocation2 + $0x10] sm:$0xff]
        %v2559 = vld [vmem:[#allocation2 + $0x18] sm:$0xff]
        %v2560 = vld [vmem:[#allocation2 + $0x20] sm:$0xff]
        %v2561 = vld [vmem:[#allocation2 + $0x28] sm:$0xff]
        %v2562 = vld [vmem:[#allocation2 + $0x30] sm:$0xff]
        %v2563 = vld [vmem:[#allocation2 + $0x38] sm:$0xff]
        %v2564 = vld [vmem:[#allocation2 + $0x40] sm:$0xff]
        %v2565 = vld [vmem:[#allocation2 + $0x48] sm:$0xff]
        %v2566 = vld [vmem:[%s4] sm:$0xff]
        %v2567 = vld [vmem:[%s4 + $0x8] sm:$0xff]
        %v2568 = vld [vmem:[%s4 + $0x10] sm:$0xff]
        %v2569 = vld [vmem:[%s4 + $0x18] sm:$0xff]
        %v2570 = vld [vmem:[%s4 + $0x20] sm:$0xff]
        %v2571 = vld [vmem:[%s4 + $0x28] sm:$0xff]
        %v2572 = vld [vmem:[%s4 + $0x30] sm:$0xff]
        %v2573 = vld [vmem:[%s4 + $0x38] sm:$0xff]
        %v2574 = vld [vmem:[%s4 + $0x40] sm:$0xff]
        %v2575 = vld [vmem:[%s4 + $0x48] sm:$0xff]
        %v2576 = vld [vmem:[%s4 + $0x50] sm:$0xff]
        %v2577 = vld [vmem:[%s4 + $0x58] sm:$0xff]
        %v2578 = vld [vmem:[%s4 + $0x60] sm:$0xff]
        %v2579 = vld [vmem:[%s4 + $0x68] sm:$0xff]
        %v2580 = vld [vmem:[%s4 + $0x70] sm:$0xff]
        %v2581 = vld [vmem:[%s4 + $0x78] sm:$0xff]
        %v2582 = vld [vmem:[%s4 + $0x80] sm:$0xff]
        %v2583 = vld [vmem:[%s4 + $0x88] sm:$0xff]
        %v2584 = vld [vmem:[#allocation2 + $0x50] sm:$0xff]
        %s2585 = scalar_lea.vmem %s4, 144
        %v2586 = vld [vmem:[%s2585] sm:$0xff]
        %v2587 = vld [vmem:[%s2585 + $0x8] sm:$0xff]
        %v2588 = vld [vmem:[%s2585 + $0x10] sm:$0xff]
        %v2589 = vld [vmem:[%s2585 + $0x18] sm:$0xff]
        %v2590 = vld [vmem:[%s2585 + $0x20] sm:$0xff]
        %v2591 = vld [vmem:[%s2585 + $0x28] sm:$0xff]
        %v2592 = vld [vmem:[%s2585 + $0x30] sm:$0xff]
        %v2593 = vld [vmem:[%s2585 + $0x38] sm:$0xff]
        %v2594 = vld [vmem:[%s2585 + $0x40] sm:$0xff]
        %v2595 = vld [vmem:[%s2585 + $0x48] sm:$0xff]
        %v2596 = vld [vmem:[%s2585 + $0x50] sm:$0xff]
        %v2597 = vld [vmem:[%s2585 + $0x58] sm:$0xff]
        %v2598 = vld [vmem:[%s2585 + $0x60] sm:$0xff]
        %v2599 = vld [vmem:[%s2585 + $0x68] sm:$0xff]
        %v2600 = vld [vmem:[%s2585 + $0x70] sm:$0xff]
        %v2601 = vld [vmem:[%s2585 + $0x78] sm:$0xff]
        %v2602 = vld [vmem:[%s2585 + $0x80] sm:$0xff]
        %v2603 = vld [vmem:[%s2585 + $0x88] sm:$0xff]
        %v2605 = vsel %vm2532, %v2557, 0
        %v2608 = vsel %vm2532, %v2558, 0
        %v2611 = vsel %vm2532, %v2559, 0
        %v2614 = vsel %vm2532, %v2560, 0
        %v2617 = vsel %vm2532, %v2561, 0
        %v2620 = vsel %vm2532, %v2562, 0
        %v2623 = vsel %vm2532, %v2563, 0
        %v2626 = vsel %vm2532, %v2564, 0
        %v2629 = vsel %vm2532, %v2565, 0
        %v2632 = vsel %vm2532, %v2584, 0
        %2634 = vmatpush.msra.mxu0 0.0
        %2635 = vmatpush.msra.mxu0 0.0
        %2636 = vmatpush.msra.mxu0 0.0
        %2637 = vmatpush.msra.mxu0 0.0
        %2638 = vmatpush.msra.mxu0 0.0
        %2639 = vmatpush.msra.mxu0 0.0
        %2640 = vmatpush.msra.mxu0 0.0
        %2641 = vmatpush.msra.mxu0 %v2602
        %2642 = vmatpush.msra.mxu0 %v2600
        %2643 = vmatpush.msra.mxu0 %v2598
        %2644 = vmatpush.msra.mxu0 %v2596
        %2645 = vmatpush.msra.mxu0 %v2594
        %2646 = vmatpush.msra.mxu0 %v2592
        %2647 = vmatpush.msra.mxu0 %v2590
        %2648 = vmatpush.msra.mxu0 %v2588
        %2649 = vmatpush.msra.mxu0 %v2586
        %2650 = vmatmul.f32.gmra.mxu0 %v2605
        %v2651 = vpop.f32.mrf.mxu0
        %v2652 = vadd.f32 0.0, %v2651
        %2653 = vmatmul.f32.gmra.mxu0 %v2608
        %v2654 = vpop.f32.mrf.mxu0
        %v2655 = vadd.f32 0.0, %v2654
        %2656 = vmatmul.f32.gmra.mxu0 %v2611
        %v2657 = vpop.f32.mrf.mxu0
        %v2658 = vadd.f32 0.0, %v2657
        %2659 = vmatmul.f32.gmra.mxu0 %v2614
        %v2660 = vpop.f32.mrf.mxu0
        %v2661 = vadd.f32 0.0, %v2660
        %2662 = vmatmul.f32.gmra.mxu0 %v2617
        %v2663 = vpop.f32.mrf.mxu0
        %v2664 = vadd.f32 0.0, %v2663
        %2665 = vmatmul.f32.gmra.mxu0 %v2620
        %v2666 = vpop.f32.mrf.mxu0
        %v2667 = vadd.f32 0.0, %v2666
        %2668 = vmatmul.f32.gmra.mxu0 %v2623
        %v2669 = vpop.f32.mrf.mxu0
        %v2670 = vadd.f32 0.0, %v2669
        %2671 = vmatmul.f32.gmra.mxu0 %v2626
        %v2672 = vpop.f32.mrf.mxu0
        %v2673 = vadd.f32 0.0, %v2672
        %2674 = vmatmul.f32.gmra.mxu0 %v2629
        %v2675 = vpop.f32.mrf.mxu0
        %v2676 = vadd.f32 0.0, %v2675
        %2677 = vmatmul.f32.gmra.mxu0 %v2632
        %v2678 = vpop.f32.mrf.mxu0
        %v2679 = vadd.f32 0.0, %v2678
        %2680 = vdwg.mxu0
        %2681 = vmatpush.msra.mxu0 0.0
        %2682 = vmatpush.msra.mxu0 0.0
        %2683 = vmatpush.msra.mxu0 0.0
        %2684 = vmatpush.msra.mxu0 0.0
        %2685 = vmatpush.msra.mxu0 0.0
        %2686 = vmatpush.msra.mxu0 0.0
        %2687 = vmatpush.msra.mxu0 0.0
        %2688 = vmatpush.msra.mxu0 %v2603
        %2689 = vmatpush.msra.mxu0 %v2601
        %2690 = vmatpush.msra.mxu0 %v2599
        %2691 = vmatpush.msra.mxu0 %v2597
        %2692 = vmatpush.msra.mxu0 %v2595
        %2693 = vmatpush.msra.mxu0 %v2593
        %2694 = vmatpush.msra.mxu0 %v2591
        %2695 = vmatpush.msra.mxu0 %v2589
        %2696 = vmatpush.msra.mxu0 %v2587
        %2697 = vmatmul.f32.gmra.mxu0 %v2605
        %v2698 = vpop.f32.mrf.mxu0
        %v2699 = vadd.f32 0.0, %v2698
        %2700 = vmatmul.f32.gmra.mxu0 %v2608
        %v2701 = vpop.f32.mrf.mxu0
        %v2702 = vadd.f32 0.0, %v2701
        %2703 = vmatmul.f32.gmra.mxu0 %v2611
        %v2704 = vpop.f32.mrf.mxu0
        %v2705 = vadd.f32 0.0, %v2704
        %2706 = vmatmul.f32.gmra.mxu0 %v2614
        %v2707 = vpop.f32.mrf.mxu0
        %v2708 = vadd.f32 0.0, %v2707
        %2709 = vmatmul.f32.gmra.mxu0 %v2617
        %v2710 = vpop.f32.mrf.mxu0
        %v2711 = vadd.f32 0.0, %v2710
        %2712 = vmatmul.f32.gmra.mxu0 %v2620
        %v2713 = vpop.f32.mrf.mxu0
        %v2714 = vadd.f32 0.0, %v2713
        %2715 = vmatmul.f32.gmra.mxu0 %v2623
        %v2716 = vpop.f32.mrf.mxu0
        %v2717 = vadd.f32 0.0, %v2716
        %2718 = vmatmul.f32.gmra.mxu0 %v2626
        %v2719 = vpop.f32.mrf.mxu0
        %v2720 = vadd.f32 0.0, %v2719
        %2721 = vmatmul.f32.gmra.mxu0 %v2629
        %v2722 = vpop.f32.mrf.mxu0
        %v2723 = vadd.f32 0.0, %v2722
        %2724 = vmatmul.f32.gmra.mxu0 %v2632
        %v2725 = vpop.f32.mrf.mxu0
        %v2726 = vadd.f32 0.0, %v2725
        %2727 = vdwg.mxu0
        %v2729 = vsel %vm2532, %v2556, 0
        %2731 = vmatpush.msra.mxu0 0.0
        %2732 = vmatpush.msra.mxu0 0.0
        %2733 = vmatpush.msra.mxu0 0.0
        %2734 = vmatpush.msra.mxu0 0.0
        %2735 = vmatpush.msra.mxu0 0.0
        %2736 = vmatpush.msra.mxu0 0.0
        %2737 = vmatpush.msra.mxu0 0.0
        %2738 = vmatpush.msra.mxu0 %v2582
        %2739 = vmatpush.msra.mxu0 %v2580
        %2740 = vmatpush.msra.mxu0 %v2578
        %2741 = vmatpush.msra.mxu0 %v2576
        %2742 = vmatpush.msra.mxu0 %v2574
        %2743 = vmatpush.msra.mxu0 %v2572
        %2744 = vmatpush.msra.mxu0 %v2570
        %2745 = vmatpush.msra.mxu0 %v2568
        %2746 = vmatpush.msra.mxu0 %v2566
        %2747 = vmatmul.f32.gmra.mxu0 %v2729
        %v2748 = vpop.f32.mrf.mxu0
        %v2749 = vadd.f32 %v2652, %v2748
        %2750 = vmatmul.f32.gmra.mxu0 %v2605
        %v2751 = vpop.f32.mrf.mxu0
        %v2752 = vadd.f32 %v2655, %v2751
        %2753 = vmatmul.f32.gmra.mxu0 %v2608
        %v2754 = vpop.f32.mrf.mxu0
        %v2755 = vadd.f32 %v2658, %v2754
        %2756 = vmatmul.f32.gmra.mxu0 %v2611
        %v2757 = vpop.f32.mrf.mxu0
        %v2758 = vadd.f32 %v2661, %v2757
        %2759 = vmatmul.f32.gmra.mxu0 %v2614
        %v2760 = vpop.f32.mrf.mxu0
        %v2761 = vadd.f32 %v2664, %v2760
        %2762 = vmatmul.f32.gmra.mxu0 %v2617
        %v2763 = vpop.f32.mrf.mxu0
        %v2764 = vadd.f32 %v2667, %v2763
        %2765 = vmatmul.f32.gmra.mxu0 %v2620
        %v2766 = vpop.f32.mrf.mxu0
        %v2767 = vadd.f32 %v2670, %v2766
        %2768 = vmatmul.f32.gmra.mxu0 %v2623
        %v2769 = vpop.f32.mrf.mxu0
        %v2770 = vadd.f32 %v2673, %v2769
        %2771 = vmatmul.f32.gmra.mxu0 %v2626
        %v2772 = vpop.f32.mrf.mxu0
        %v2773 = vadd.f32 %v2676, %v2772
        %2774 = vmatmul.f32.gmra.mxu0 %v2629
        %v2775 = vpop.f32.mrf.mxu0
        %v2776 = vadd.f32 %v2679, %v2775
        %2777 = vdwg.mxu0
        %2778 = vmatpush.msra.mxu0 0.0
        %2779 = vmatpush.msra.mxu0 0.0
        %2780 = vmatpush.msra.mxu0 0.0
        %2781 = vmatpush.msra.mxu0 0.0
        %2782 = vmatpush.msra.mxu0 0.0
        %2783 = vmatpush.msra.mxu0 0.0
        %2784 = vmatpush.msra.mxu0 0.0
        %2785 = vmatpush.msra.mxu0 %v2583
        %2786 = vmatpush.msra.mxu0 %v2581
        %2787 = vmatpush.msra.mxu0 %v2579
        %2788 = vmatpush.msra.mxu0 %v2577
        %2789 = vmatpush.msra.mxu0 %v2575
        %2790 = vmatpush.msra.mxu0 %v2573
        %2791 = vmatpush.msra.mxu0 %v2571
        %2792 = vmatpush.msra.mxu0 %v2569
        %2793 = vmatpush.msra.mxu0 %v2567
        %2794 = vmatmul.f32.gmra.mxu0 %v2729
        %v2795 = vpop.f32.mrf.mxu0
        %v2796 = vadd.f32 %v2699, %v2795
        %2797 = vmatmul.f32.gmra.mxu0 %v2605
        %v2798 = vpop.f32.mrf.mxu0
        %v2799 = vadd.f32 %v2702, %v2798
        %2800 = vmatmul.f32.gmra.mxu0 %v2608
        %v2801 = vpop.f32.mrf.mxu0
        %v2802 = vadd.f32 %v2705, %v2801
        %2803 = vmatmul.f32.gmra.mxu0 %v2611
        %v2804 = vpop.f32.mrf.mxu0
        %v2805 = vadd.f32 %v2708, %v2804
        %2806 = vmatmul.f32.gmra.mxu0 %v2614
        %v2807 = vpop.f32.mrf.mxu0
        %v2808 = vadd.f32 %v2711, %v2807
        %2809 = vmatmul.f32.gmra.mxu0 %v2617
        %v2810 = vpop.f32.mrf.mxu0
        %v2811 = vadd.f32 %v2714, %v2810
        %2812 = vmatmul.f32.gmra.mxu0 %v2620
        %v2813 = vpop.f32.mrf.mxu0
        %v2814 = vadd.f32 %v2717, %v2813
        %2815 = vmatmul.f32.gmra.mxu0 %v2623
        %v2816 = vpop.f32.mrf.mxu0
        %v2817 = vadd.f32 %v2720, %v2816
        %2818 = vmatmul.f32.gmra.mxu0 %v2626
        %v2819 = vpop.f32.mrf.mxu0
        %v2820 = vadd.f32 %v2723, %v2819
        %2821 = vmatmul.f32.gmra.mxu0 %v2629
        %v2822 = vpop.f32.mrf.mxu0
        %v2823 = vadd.f32 %v2726, %v2822
        %2824 = vdwg.mxu0
        %v2825 = vld [vmem:[#allocation2 + $0x10] sm:$0xff]
        %v2826 = vld [vmem:[#allocation2 + $0x18] sm:$0xff]
        %v2827 = vld [vmem:[#allocation2 + $0x20] sm:$0xff]
        %v2828 = vld [vmem:[#allocation2 + $0x28] sm:$0xff]
        %v2829 = vld [vmem:[#allocation2 + $0x30] sm:$0xff]
        %v2830 = vld [vmem:[#allocation2 + $0x38] sm:$0xff]
        %v2831 = vld [vmem:[#allocation2 + $0x40] sm:$0xff]
        %v2832 = vld [vmem:[#allocation2 + $0x48] sm:$0xff]
        %v2833 = vld [vmem:[#allocation2 + $0x50] sm:$0xff]
        %v2834 = vld [vmem:[#allocation2 + $0x58] sm:$0xff]
        %s2835 = scalar_lea.vmem %s4, 288
        %v2836 = vld [vmem:[%s2835] sm:$0xff]
        %v2837 = vld [vmem:[%s2835 + $0x8] sm:$0xff]
        %v2838 = vld [vmem:[%s2835 + $0x10] sm:$0xff]
        %v2839 = vld [vmem:[%s2835 + $0x18] sm:$0xff]
        %v2840 = vld [vmem:[%s2835 + $0x20] sm:$0xff]
        %v2841 = vld [vmem:[%s2835 + $0x28] sm:$0xff]
        %v2842 = vld [vmem:[%s2835 + $0x30] sm:$0xff]
        %v2843 = vld [vmem:[%s2835 + $0x38] sm:$0xff]
        %v2844 = vld [vmem:[%s2835 + $0x40] sm:$0xff]
        %v2845 = vld [vmem:[%s2835 + $0x48] sm:$0xff]
        %v2846 = vld [vmem:[%s2835 + $0x50] sm:$0xff]
        %v2847 = vld [vmem:[%s2835 + $0x58] sm:$0xff]
        %v2848 = vld [vmem:[%s2835 + $0x60] sm:$0xff]
        %v2849 = vld [vmem:[%s2835 + $0x68] sm:$0xff]
        %v2850 = vld [vmem:[%s2835 + $0x70] sm:$0xff]
        %v2851 = vld [vmem:[%s2835 + $0x78] sm:$0xff]
        %v2852 = vld [vmem:[%s2835 + $0x80] sm:$0xff]
        %v2853 = vld [vmem:[%s2835 + $0x88] sm:$0xff]
        %v2855 = vsel %vm2532, %v2825, 0
        %v2858 = vsel %vm2532, %v2826, 0
        %v2861 = vsel %vm2532, %v2827, 0
        %v2864 = vsel %vm2532, %v2828, 0
        %v2867 = vsel %vm2532, %v2829, 0
        %v2870 = vsel %vm2532, %v2830, 0
        %v2873 = vsel %vm2532, %v2831, 0
        %v2876 = vsel %vm2532, %v2832, 0
        %v2879 = vsel %vm2532, %v2833, 0
        %v2882 = vsel %vm2532, %v2834, 0
        %2884 = vmatpush.msra.mxu0 0.0
        %2885 = vmatpush.msra.mxu0 0.0
        %2886 = vmatpush.msra.mxu0 0.0
        %2887 = vmatpush.msra.mxu0 0.0
        %2888 = vmatpush.msra.mxu0 0.0
        %2889 = vmatpush.msra.mxu0 0.0
        %2890 = vmatpush.msra.mxu0 0.0
        %2891 = vmatpush.msra.mxu0 %v2852
        %2892 = vmatpush.msra.mxu0 %v2850
        %2893 = vmatpush.msra.mxu0 %v2848
        %2894 = vmatpush.msra.mxu0 %v2846
        %2895 = vmatpush.msra.mxu0 %v2844
        %2896 = vmatpush.msra.mxu0 %v2842
        %2897 = vmatpush.msra.mxu0 %v2840
        %2898 = vmatpush.msra.mxu0 %v2838
        %2899 = vmatpush.msra.mxu0 %v2836
        %2900 = vmatmul.f32.gmra.mxu0 %v2855
        %v2901 = vpop.f32.mrf.mxu0
        %v2902 = vadd.f32 0.0, %v2901
        %2903 = vmatmul.f32.gmra.mxu0 %v2858
        %v2904 = vpop.f32.mrf.mxu0
        %v2905 = vadd.f32 0.0, %v2904
        %2906 = vmatmul.f32.gmra.mxu0 %v2861
        %v2907 = vpop.f32.mrf.mxu0
        %v2908 = vadd.f32 0.0, %v2907
        %2909 = vmatmul.f32.gmra.mxu0 %v2864
        %v2910 = vpop.f32.mrf.mxu0
        %v2911 = vadd.f32 0.0, %v2910
        %2912 = vmatmul.f32.gmra.mxu0 %v2867
        %v2913 = vpop.f32.mrf.mxu0
        %v2914 = vadd.f32 0.0, %v2913
        %2915 = vmatmul.f32.gmra.mxu0 %v2870
        %v2916 = vpop.f32.mrf.mxu0
        %v2917 = vadd.f32 0.0, %v2916
        %2918 = vmatmul.f32.gmra.mxu0 %v2873
        %v2919 = vpop.f32.mrf.mxu0
        %v2920 = vadd.f32 0.0, %v2919
        %2921 = vmatmul.f32.gmra.mxu0 %v2876
        %v2922 = vpop.f32.mrf.mxu0
        %v2923 = vadd.f32 0.0, %v2922
        %2924 = vmatmul.f32.gmra.mxu0 %v2879
        %v2925 = vpop.f32.mrf.mxu0
        %v2926 = vadd.f32 0.0, %v2925
        %2927 = vmatmul.f32.gmra.mxu0 %v2882
        %v2928 = vpop.f32.mrf.mxu0
        %v2929 = vadd.f32 0.0, %v2928
        %2930 = vdwg.mxu0
        %2931 = vmatpush.msra.mxu0 0.0
        %2932 = vmatpush.msra.mxu0 0.0
        %2933 = vmatpush.msra.mxu0 0.0
        %2934 = vmatpush.msra.mxu0 0.0
        %2935 = vmatpush.msra.mxu0 0.0
        %2936 = vmatpush.msra.mxu0 0.0
        %2937 = vmatpush.msra.mxu0 0.0
        %2938 = vmatpush.msra.mxu0 %v2853
        %2939 = vmatpush.msra.mxu0 %v2851
        %2940 = vmatpush.msra.mxu0 %v2849
        %2941 = vmatpush.msra.mxu0 %v2847
        %2942 = vmatpush.msra.mxu0 %v2845
        %2943 = vmatpush.msra.mxu0 %v2843
        %2944 = vmatpush.msra.mxu0 %v2841
        %2945 = vmatpush.msra.mxu0 %v2839
        %2946 = vmatpush.msra.mxu0 %v2837
        %2947 = vmatmul.f32.gmra.mxu0 %v2855
        %v2948 = vpop.f32.mrf.mxu0
        %v2949 = vadd.f32 0.0, %v2948
        %2950 = vmatmul.f32.gmra.mxu0 %v2858
        %v2951 = vpop.f32.mrf.mxu0
        %v2952 = vadd.f32 0.0, %v2951
        %2953 = vmatmul.f32.gmra.mxu0 %v2861
        %v2954 = vpop.f32.mrf.mxu0
        %v2955 = vadd.f32 0.0, %v2954
        %2956 = vmatmul.f32.gmra.mxu0 %v2864
        %v2957 = vpop.f32.mrf.mxu0
        %v2958 = vadd.f32 0.0, %v2957
        %2959 = vmatmul.f32.gmra.mxu0 %v2867
        %v2960 = vpop.f32.mrf.mxu0
        %v2961 = vadd.f32 0.0, %v2960
        %2962 = vmatmul.f32.gmra.mxu0 %v2870
        %v2963 = vpop.f32.mrf.mxu0
        %v2964 = vadd.f32 0.0, %v2963
        %2965 = vmatmul.f32.gmra.mxu0 %v2873
        %v2966 = vpop.f32.mrf.mxu0
        %v2967 = vadd.f32 0.0, %v2966
        %2968 = vmatmul.f32.gmra.mxu0 %v2876
        %v2969 = vpop.f32.mrf.mxu0
        %v2970 = vadd.f32 0.0, %v2969
        %2971 = vmatmul.f32.gmra.mxu0 %v2879
        %v2972 = vpop.f32.mrf.mxu0
        %v2973 = vadd.f32 0.0, %v2972
        %2974 = vmatmul.f32.gmra.mxu0 %v2882
        %v2975 = vpop.f32.mrf.mxu0
        %v2976 = vadd.f32 0.0, %v2975
        %2977 = vdwg.mxu0
        %v2978 = vadd.f32 %v2749, %v2902
        %v2979 = vadd.f32 %v2796, %v2949
        %v2980 = vadd.f32 %v2752, %v2905
        %v2981 = vadd.f32 %v2799, %v2952
        %v2982 = vadd.f32 %v2755, %v2908
        %v2983 = vadd.f32 %v2802, %v2955
        %v2984 = vadd.f32 %v2758, %v2911
        %v2985 = vadd.f32 %v2805, %v2958
        %v2986 = vadd.f32 %v2761, %v2914
        %v2987 = vadd.f32 %v2808, %v2961
        %v2988 = vadd.f32 %v2764, %v2917
        %v2989 = vadd.f32 %v2811, %v2964
        %v2990 = vadd.f32 %v2767, %v2920
        %v2991 = vadd.f32 %v2814, %v2967
        %v2992 = vadd.f32 %v2770, %v2923
        %v2993 = vadd.f32 %v2817, %v2970
        %v2994 = vadd.f32 %v2773, %v2926
        %v2995 = vadd.f32 %v2820, %v2973
        %v2996 = vadd.f32 %v2776, %v2929
        %v2997 = vadd.f32 %v2823, %v2976
        %v2998 = vld [vmem:[%s5] sm:$0x3]
        %v3000 = vperm.slane %v2998, 0
        %v3001 = vperm.slane %v2998, 1
        %v3004 = vadd.f32 %v2978, %v3000
        %v3005 = vadd.f32 %v2979, %v3001
        %v3006 = vadd.f32 %v2980, %v3000
        %v3007 = vadd.f32 %v2981, %v3001
        %v3008 = vadd.f32 %v2982, %v3000
        %v3009 = vadd.f32 %v2983, %v3001
        %v3010 = vadd.f32 %v2984, %v3000
        %v3011 = vadd.f32 %v2985, %v3001
        %v3012 = vadd.f32 %v2986, %v3000
        %v3013 = vadd.f32 %v2987, %v3001
        %v3014 = vadd.f32 %v2988, %v3000
        %v3015 = vadd.f32 %v2989, %v3001
        %v3016 = vadd.f32 %v2990, %v3000
        %v3017 = vadd.f32 %v2991, %v3001
        %v3018 = vadd.f32 %v2992, %v3000
        %v3019 = vadd.f32 %v2993, %v3001
        %v3020 = vadd.f32 %v2994, %v3000
        %v3021 = vadd.f32 %v2995, %v3001
        %v3022 = vadd.f32 %v2996, %v3000
        %v3023 = vadd.f32 %v2997, %v3001
        %v3024 = vmax.f32 %v3004, 0.0
        %v3025 = vmax.f32 %v3005, 0.0
        %v3026 = vmax.f32 %v3006, 0.0
        %v3027 = vmax.f32 %v3007, 0.0
        %v3028 = vmax.f32 %v3008, 0.0
        %v3029 = vmax.f32 %v3009, 0.0
        %v3030 = vmax.f32 %v3010, 0.0
        %v3031 = vmax.f32 %v3011, 0.0
        %v3032 = vmax.f32 %v3012, 0.0
        %v3033 = vmax.f32 %v3013, 0.0
        %v3034 = vmax.f32 %v3014, 0.0
        %v3035 = vmax.f32 %v3015, 0.0
        %v3036 = vmax.f32 %v3016, 0.0
        %v3037 = vmax.f32 %v3017, 0.0
        %v3038 = vmax.f32 %v3018, 0.0
        %v3039 = vmax.f32 %v3019, 0.0
        %v3040 = vmax.f32 %v3020, 0.0
        %v3041 = vmax.f32 %v3021, 0.0
        %v3042 = vmax.f32 %v3022, 0.0
        %v3043 = vmax.f32 %v3023, 0.0
        %v3044 = vld [vmem:[%s6] sm:$0xff]
        %v3045 = vld [vmem:[%s6 + $0x8] sm:$0xff]
        %v3046 = vld [vmem:[%s6 + $0x10] sm:$0xff]
        %v3047 = vld [vmem:[%s6 + $0x18] sm:$0xff]
        %v3048 = vld [vmem:[%s6 + $0x20] sm:$0xff]
        %v3049 = vld [vmem:[%s6 + $0x28] sm:$0xff]
        %v3050 = vld [vmem:[%s6 + $0x30] sm:$0xff]
        %v3051 = vld [vmem:[%s6 + $0x38] sm:$0xff]
        %v3052 = vld [vmem:[%s6 + $0x40] sm:$0xff]
        %v3053 = vld [vmem:[%s6 + $0x48] sm:$0xff]
        %v3054 = vld [vmem:[%s6 + $0x50] sm:$0xff]
        %v3055 = vld [vmem:[%s6 + $0x58] sm:$0xff]
        %v3056 = vld [vmem:[%s6 + $0x60] sm:$0xff]
        %v3057 = vld [vmem:[%s6 + $0x68] sm:$0xff]
        %v3058 = vld [vmem:[%s6 + $0x70] sm:$0xff]
        %v3059 = vld [vmem:[%s6 + $0x78] sm:$0xff]
        %v3060 = vld [vmem:[%s6 + $0x80] sm:$0xff]
        %v3061 = vld [vmem:[%s6 + $0x88] sm:$0xff]
        %v3062 = vld [vmem:[%s6 + $0x90] sm:$0xff]
        %v3063 = vld [vmem:[%s6 + $0x98] sm:$0xff]
        %vm3064 = vcmask 261120
        %v3066 = vsel %vm3064, %v3025, 0
        %v3069 = vsel %vm3064, %v3027, 0
        %v3072 = vsel %vm3064, %v3029, 0
        %v3075 = vsel %vm3064, %v3031, 0
        %v3078 = vsel %vm3064, %v3033, 0
        %v3081 = vsel %vm3064, %v3035, 0
        %v3084 = vsel %vm3064, %v3037, 0
        %v3087 = vsel %vm3064, %v3039, 0
        %v3090 = vsel %vm3064, %v3041, 0
        %v3093 = vsel %vm3064, %v3043, 0
        %3095 = vmatpush.msra.mxu0 %v3059
        %3096 = vmatpush.msra.mxu0 %v3058
        %3097 = vmatpush.msra.mxu0 %v3057
        %3098 = vmatpush.msra.mxu0 %v3056
        %3099 = vmatpush.msra.mxu0 %v3055
        %3100 = vmatpush.msra.mxu0 %v3054
        %3101 = vmatpush.msra.mxu0 %v3053
        %3102 = vmatpush.msra.mxu0 %v3052
        %3103 = vmatpush.msra.mxu0 %v3051
        %3104 = vmatpush.msra.mxu0 %v3050
        %3105 = vmatpush.msra.mxu0 %v3049
        %3106 = vmatpush.msra.mxu0 %v3048
        %3107 = vmatpush.msra.mxu0 %v3047
        %3108 = vmatpush.msra.mxu0 %v3046
        %3109 = vmatpush.msra.mxu0 %v3045
        %3110 = vmatpush.msra.mxu0 %v3044
        %3111 = vmatmul.f32.gmra.mxu0 %v3024
        %v3112 = vpop.f32.mrf.mxu0
        %v3113 = vadd.f32 0.0, %v3112
        %3114 = vmatmul.f32.gmra.mxu0 %v3026
        %v3115 = vpop.f32.mrf.mxu0
        %v3116 = vadd.f32 0.0, %v3115
        %3117 = vmatmul.f32.gmra.mxu0 %v3028
        %v3118 = vpop.f32.mrf.mxu0
        %v3119 = vadd.f32 0.0, %v3118
        %3120 = vmatmul.f32.gmra.mxu0 %v3030
        %v3121 = vpop.f32.mrf.mxu0
        %v3122 = vadd.f32 0.0, %v3121
        %3123 = vmatmul.f32.gmra.mxu0 %v3032
        %v3124 = vpop.f32.mrf.mxu0
        %v3125 = vadd.f32 0.0, %v3124
        %3126 = vmatmul.f32.gmra.mxu0 %v3034
        %v3127 = vpop.f32.mrf.mxu0
        %v3128 = vadd.f32 0.0, %v3127
        %3129 = vmatmul.f32.gmra.mxu0 %v3036
        %v3130 = vpop.f32.mrf.mxu0
        %v3131 = vadd.f32 0.0, %v3130
        %3132 = vmatmul.f32.gmra.mxu0 %v3038
        %v3133 = vpop.f32.mrf.mxu0
        %v3134 = vadd.f32 0.0, %v3133
        %3135 = vmatmul.f32.gmra.mxu0 %v3040
        %v3136 = vpop.f32.mrf.mxu0
        %v3137 = vadd.f32 0.0, %v3136
        %3138 = vmatmul.f32.gmra.mxu0 %v3042
        %v3139 = vpop.f32.mrf.mxu0
        %v3140 = vadd.f32 0.0, %v3139
        %3141 = vdwg.mxu0
        %3142 = vmatpush.msra.mxu0 0.0
        %3143 = vmatpush.msra.mxu0 0.0
        %3144 = vmatpush.msra.mxu0 0.0
        %3145 = vmatpush.msra.mxu0 0.0
        %3146 = vmatpush.msra.mxu0 0.0
        %3147 = vmatpush.msra.mxu0 0.0
        %3148 = vmatpush.msra.mxu0 0.0
        %3149 = vmatpush.msra.mxu0 0.0
        %3150 = vmatpush.msra.mxu0 0.0
        %3151 = vmatpush.msra.mxu0 0.0
        %3152 = vmatpush.msra.mxu0 0.0
        %3153 = vmatpush.msra.mxu0 0.0
        %3154 = vmatpush.msra.mxu0 %v3063
        %3155 = vmatpush.msra.mxu0 %v3062
        %3156 = vmatpush.msra.mxu0 %v3061
        %3157 = vmatpush.msra.mxu0 %v3060
        %3158 = vmatmul.f32.gmra.mxu0 %v3066
        %v3159 = vpop.f32.mrf.mxu0
        %v3160 = vadd.f32 %v3113, %v3159
        %3161 = vmatmul.f32.gmra.mxu0 %v3069
        %v3162 = vpop.f32.mrf.mxu0
        %v3163 = vadd.f32 %v3116, %v3162
        %3164 = vmatmul.f32.gmra.mxu0 %v3072
        %v3165 = vpop.f32.mrf.mxu0
        %v3166 = vadd.f32 %v3119, %v3165
        %3167 = vmatmul.f32.gmra.mxu0 %v3075
        %v3168 = vpop.f32.mrf.mxu0
        %v3169 = vadd.f32 %v3122, %v3168
        %3170 = vmatmul.f32.gmra.mxu0 %v3078
        %v3171 = vpop.f32.mrf.mxu0
        %v3172 = vadd.f32 %v3125, %v3171
        %3173 = vmatmul.f32.gmra.mxu0 %v3081
        %v3174 = vpop.f32.mrf.mxu0
        %v3175 = vadd.f32 %v3128, %v3174
        %3176 = vmatmul.f32.gmra.mxu0 %v3084
        %v3177 = vpop.f32.mrf.mxu0
        %v3178 = vadd.f32 %v3131, %v3177
        %3179 = vmatmul.f32.gmra.mxu0 %v3087
        %v3180 = vpop.f32.mrf.mxu0
        %v3181 = vadd.f32 %v3134, %v3180
        %3182 = vmatmul.f32.gmra.mxu0 %v3090
        %v3183 = vpop.f32.mrf.mxu0
        %v3184 = vadd.f32 %v3137, %v3183
        %3185 = vmatmul.f32.gmra.mxu0 %v3093
        %v3186 = vpop.f32.mrf.mxu0
        %v3187 = vadd.f32 %v3140, %v3186
        %3188 = vdwg.mxu0
        %s3189 = scalar_lea.vmem %s6, 160
        %v3190 = vld [vmem:[%s3189] sm:$0xff]
        %v3191 = vld [vmem:[%s3189 + $0x8] sm:$0xff]
        %v3192 = vld [vmem:[%s3189 + $0x10] sm:$0xff]
        %v3193 = vld [vmem:[%s3189 + $0x18] sm:$0xff]
        %v3194 = vld [vmem:[%s3189 + $0x20] sm:$0xff]
        %v3195 = vld [vmem:[%s3189 + $0x28] sm:$0xff]
        %v3196 = vld [vmem:[%s3189 + $0x30] sm:$0xff]
        %v3197 = vld [vmem:[%s3189 + $0x38] sm:$0xff]
        %v3198 = vld [vmem:[%s3189 + $0x40] sm:$0xff]
        %v3199 = vld [vmem:[%s3189 + $0x48] sm:$0xff]
        %v3200 = vld [vmem:[%s3189 + $0x50] sm:$0xff]
        %v3201 = vld [vmem:[%s3189 + $0x58] sm:$0xff]
        %v3202 = vld [vmem:[%s3189 + $0x60] sm:$0xff]
        %v3203 = vld [vmem:[%s3189 + $0x68] sm:$0xff]
        %v3204 = vld [vmem:[%s3189 + $0x70] sm:$0xff]
        %v3205 = vld [vmem:[%s3189 + $0x78] sm:$0xff]
        %v3206 = vld [vmem:[%s3189 + $0x80] sm:$0xff]
        %v3207 = vld [vmem:[%s3189 + $0x88] sm:$0xff]
        %v3208 = vld [vmem:[%s3189 + $0x90] sm:$0xff]
        %v3209 = vld [vmem:[%s3189 + $0x98] sm:$0xff]
        %3210 = vmatpush.msra.mxu0 %v3205
        %3211 = vmatpush.msra.mxu0 %v3204
        %3212 = vmatpush.msra.mxu0 %v3203
        %3213 = vmatpush.msra.mxu0 %v3202
        %3214 = vmatpush.msra.mxu0 %v3201
        %3215 = vmatpush.msra.mxu0 %v3200
        %3216 = vmatpush.msra.mxu0 %v3199
        %3217 = vmatpush.msra.mxu0 %v3198
        %3218 = vmatpush.msra.mxu0 %v3197
        %3219 = vmatpush.msra.mxu0 %v3196
        %3220 = vmatpush.msra.mxu0 %v3195
        %3221 = vmatpush.msra.mxu0 %v3194
        %3222 = vmatpush.msra.mxu0 %v3193
        %3223 = vmatpush.msra.mxu0 %v3192
        %3224 = vmatpush.msra.mxu0 %v3191
        %3225 = vmatpush.msra.mxu0 %v3190
        %3226 = vmatmul.f32.gmra.mxu0 %v3024
        %v3227 = vpop.f32.mrf.mxu0
        %v3228 = vadd.f32 0.0, %v3227
        %3229 = vmatmul.f32.gmra.mxu0 %v3026
        %v3230 = vpop.f32.mrf.mxu0
        %v3231 = vadd.f32 0.0, %v3230
        %3232 = vmatmul.f32.gmra.mxu0 %v3028
        %v3233 = vpop.f32.mrf.mxu0
        %v3234 = vadd.f32 0.0, %v3233
        %3235 = vmatmul.f32.gmra.mxu0 %v3030
        %v3236 = vpop.f32.mrf.mxu0
        %v3237 = vadd.f32 0.0, %v3236
        %3238 = vmatmul.f32.gmra.mxu0 %v3032
        %v3239 = vpop.f32.mrf.mxu0
        %v3240 = vadd.f32 0.0, %v3239
        %3241 = vmatmul.f32.gmra.mxu0 %v3034
        %v3242 = vpop.f32.mrf.mxu0
        %v3243 = vadd.f32 0.0, %v3242
        %3244 = vmatmul.f32.gmra.mxu0 %v3036
        %v3245 = vpop.f32.mrf.mxu0
        %v3246 = vadd.f32 0.0, %v3245
        %3247 = vmatmul.f32.gmra.mxu0 %v3038
        %v3248 = vpop.f32.mrf.mxu0
        %v3249 = vadd.f32 0.0, %v3248
        %3250 = vmatmul.f32.gmra.mxu0 %v3040
        %v3251 = vpop.f32.mrf.mxu0
        %v3252 = vadd.f32 0.0, %v3251
        %3253 = vmatmul.f32.gmra.mxu0 %v3042
        %v3254 = vpop.f32.mrf.mxu0
        %v3255 = vadd.f32 0.0, %v3254
        %3256 = vdwg.mxu0
        %3257 = vmatpush.msra.mxu0 0.0
        %3258 = vmatpush.msra.mxu0 0.0
        %3259 = vmatpush.msra.mxu0 0.0
        %3260 = vmatpush.msra.mxu0 0.0
        %3261 = vmatpush.msra.mxu0 0.0
        %3262 = vmatpush.msra.mxu0 0.0
        %3263 = vmatpush.msra.mxu0 0.0
        %3264 = vmatpush.msra.mxu0 0.0
        %3265 = vmatpush.msra.mxu0 0.0
        %3266 = vmatpush.msra.mxu0 0.0
        %3267 = vmatpush.msra.mxu0 0.0
        %3268 = vmatpush.msra.mxu0 0.0
        %3269 = vmatpush.msra.mxu0 %v3209
        %3270 = vmatpush.msra.mxu0 %v3208
        %3271 = vmatpush.msra.mxu0 %v3207
        %3272 = vmatpush.msra.mxu0 %v3206
        %3273 = vmatmul.f32.gmra.mxu0 %v3066
        %v3274 = vpop.f32.mrf.mxu0
        %v3275 = vadd.f32 %v3228, %v3274
        %3276 = vmatmul.f32.gmra.mxu0 %v3069
        %v3277 = vpop.f32.mrf.mxu0
        %v3278 = vadd.f32 %v3231, %v3277
        %3279 = vmatmul.f32.gmra.mxu0 %v3072
        %v3280 = vpop.f32.mrf.mxu0
        %v3281 = vadd.f32 %v3234, %v3280
        %3282 = vmatmul.f32.gmra.mxu0 %v3075
        %v3283 = vpop.f32.mrf.mxu0
        %v3284 = vadd.f32 %v3237, %v3283
        %3285 = vmatmul.f32.gmra.mxu0 %v3078
        %v3286 = vpop.f32.mrf.mxu0
        %v3287 = vadd.f32 %v3240, %v3286
        %3288 = vmatmul.f32.gmra.mxu0 %v3081
        %v3289 = vpop.f32.mrf.mxu0
        %v3290 = vadd.f32 %v3243, %v3289
        %3291 = vmatmul.f32.gmra.mxu0 %v3084
        %v3292 = vpop.f32.mrf.mxu0
        %v3293 = vadd.f32 %v3246, %v3292
        %3294 = vmatmul.f32.gmra.mxu0 %v3087
        %v3295 = vpop.f32.mrf.mxu0
        %v3296 = vadd.f32 %v3249, %v3295
        %3297 = vmatmul.f32.gmra.mxu0 %v3090
        %v3298 = vpop.f32.mrf.mxu0
        %v3299 = vadd.f32 %v3252, %v3298
        %3300 = vmatmul.f32.gmra.mxu0 %v3093
        %v3301 = vpop.f32.mrf.mxu0
        %v3302 = vadd.f32 %v3255, %v3301
        %3303 = vdwg.mxu0
        %v3304 = vmax.f32 %v3160, %v3275
        %v3305 = vmax.f32 %v3163, %v3278
        %v3306 = vmax.f32 %v3166, %v3281
        %v3307 = vmax.f32 %v3169, %v3284
        %v3308 = vmax.f32 %v3172, %v3287
        %v3309 = vmax.f32 %v3175, %v3290
        %v3310 = vmax.f32 %v3178, %v3293
        %v3311 = vmax.f32 %v3181, %v3296
        %v3312 = vmax.f32 %v3184, %v3299
        %v3313 = vmax.f32 %v3187, %v3302
        %v3314 = vmax.f32 %v3304, %v3305
        %v3315 = vld [vmem:[%s7] sm:$0xff]
        %v3316 = vld [vmem:[%s7 + $0x8] sm:$0xff]
        %v3317 = vld [vmem:[%s7 + $0x10] sm:$0xff]
        %v3318 = vld [vmem:[%s7 + $0x18] sm:$0xff]
        %v3319 = vld [vmem:[%s7 + $0x20] sm:$0xff]
        %v3320 = vld [vmem:[%s7 + $0x28] sm:$0xff]
        %v3321 = vld [vmem:[%s7 + $0x30] sm:$0xff]
        %v3322 = vld [vmem:[%s7 + $0x38] sm:$0xff]
        %v3323 = vld [vmem:[%s7 + $0x40] sm:$0xff]
        %v3324 = vld [vmem:[%s7 + $0x48] sm:$0xff]
        %v3325 = vmax.f32 %v3306, %v3307
        %s3326 = scalar_lea.vmem %s7, 80
        %v3327 = vld [vmem:[%s3326] sm:$0xff]
        %v3328 = vld [vmem:[%s3326 + $0x8] sm:$0xff]
        %v3329 = vld [vmem:[%s3326 + $0x10] sm:$0xff]
        %v3330 = vld [vmem:[%s3326 + $0x18] sm:$0xff]
        %v3331 = vld [vmem:[%s3326 + $0x20] sm:$0xff]
        %v3332 = vld [vmem:[%s3326 + $0x28] sm:$0xff]
        %v3333 = vld [vmem:[%s3326 + $0x30] sm:$0xff]
        %v3334 = vld [vmem:[%s3326 + $0x38] sm:$0xff]
        %v3335 = vld [vmem:[%s3326 + $0x40] sm:$0xff]
        %v3336 = vld [vmem:[%s3326 + $0x48] sm:$0xff]
        %vm3337 = vcmask 654336
        %v3339 = vsel %vm3337, %v3325, 0
        %3341 = vmatpush.msra.mxu0 0.0
        %3342 = vmatpush.msra.mxu0 0.0
        %3343 = vmatpush.msra.mxu0 0.0
        %3344 = vmatpush.msra.mxu0 0.0
        %3345 = vmatpush.msra.mxu0 0.0
        %3346 = vmatpush.msra.mxu0 0.0
        %3347 = vmatpush.msra.mxu0 %v3336
        %3348 = vmatpush.msra.mxu0 %v3335
        %3349 = vmatpush.msra.mxu0 %v3334
        %3350 = vmatpush.msra.mxu0 %v3333
        %3351 = vmatpush.msra.mxu0 %v3332
        %3352 = vmatpush.msra.mxu0 %v3331
        %3353 = vmatpush.msra.mxu0 %v3330
        %3354 = vmatpush.msra.mxu0 %v3329
        %3355 = vmatpush.msra.mxu0 %v3328
        %3356 = vmatpush.msra.mxu0 %v3327
        %3357 = vmatmul.f32.gmra.mxu0 %v3339
        %v3358 = vpop.f32.mrf.mxu0
        %v3359 = vadd.f32 0.0, %v3358
        %3360 = vdwg.mxu0
        %v3362 = vsel %vm3337, %v3314, 0
        %3364 = vmatpush.msra.mxu0 0.0
        %3365 = vmatpush.msra.mxu0 0.0
        %3366 = vmatpush.msra.mxu0 0.0
        %3367 = vmatpush.msra.mxu0 0.0
        %3368 = vmatpush.msra.mxu0 0.0
        %3369 = vmatpush.msra.mxu0 0.0
        %3370 = vmatpush.msra.mxu0 %v3324
        %3371 = vmatpush.msra.mxu0 %v3323
        %3372 = vmatpush.msra.mxu0 %v3322
        %3373 = vmatpush.msra.mxu0 %v3321
        %3374 = vmatpush.msra.mxu0 %v3320
        %3375 = vmatpush.msra.mxu0 %v3319
        %3376 = vmatpush.msra.mxu0 %v3318
        %3377 = vmatpush.msra.mxu0 %v3317
        %3378 = vmatpush.msra.mxu0 %v3316
        %3379 = vmatpush.msra.mxu0 %v3315
        %3380 = vmatmul.f32.gmra.mxu0 %v3362
        %v3381 = vpop.f32.mrf.mxu0
        %v3382 = vadd.f32 %v3359, %v3381
        %3383 = vdwg.mxu0
        %v3384 = vmax.f32 %v3308, %v3309
        %s3385 = scalar_lea.vmem %s7, 160
        %v3386 = vld [vmem:[%s3385] sm:$0xff]
        %v3387 = vld [vmem:[%s3385 + $0x8] sm:$0xff]
        %v3388 = vld [vmem:[%s3385 + $0x10] sm:$0xff]
        %v3389 = vld [vmem:[%s3385 + $0x18] sm:$0xff]
        %v3390 = vld [vmem:[%s3385 + $0x20] sm:$0xff]
        %v3391 = vld [vmem:[%s3385 + $0x28] sm:$0xff]
        %v3392 = vld [vmem:[%s3385 + $0x30] sm:$0xff]
        %v3393 = vld [vmem:[%s3385 + $0x38] sm:$0xff]
        %v3394 = vld [vmem:[%s3385 + $0x40] sm:$0xff]
        %v3395 = vld [vmem:[%s3385 + $0x48] sm:$0xff]
        %v3397 = vsel %vm3337, %v3384, 0
        %3399 = vmatpush.msra.mxu0 0.0
        %3400 = vmatpush.msra.mxu0 0.0
        %3401 = vmatpush.msra.mxu0 0.0
        %3402 = vmatpush.msra.mxu0 0.0
        %3403 = vmatpush.msra.mxu0 0.0
        %3404 = vmatpush.msra.mxu0 0.0
        %3405 = vmatpush.msra.mxu0 %v3395
        %3406 = vmatpush.msra.mxu0 %v3394
        %3407 = vmatpush.msra.mxu0 %v3393
        %3408 = vmatpush.msra.mxu0 %v3392
        %3409 = vmatpush.msra.mxu0 %v3391
        %3410 = vmatpush.msra.mxu0 %v3390
        %3411 = vmatpush.msra.mxu0 %v3389
        %3412 = vmatpush.msra.mxu0 %v3388
        %3413 = vmatpush.msra.mxu0 %v3387
        %3414 = vmatpush.msra.mxu0 %v3386
        %3415 = vmatmul.f32.gmra.mxu0 %v3397
        %v3416 = vpop.f32.mrf.mxu0
        %v3417 = vadd.f32 0.0, %v3416
        %3418 = vdwg.mxu0
        %v3419 = vadd.f32 %v3382, %v3417
        %v3420 = vmax.f32 %v3310, %v3311
        %s3421 = scalar_lea.vmem %s7, 240
        %v3422 = vld [vmem:[%s3421] sm:$0xff]
        %v3423 = vld [vmem:[%s3421 + $0x8] sm:$0xff]
        %v3424 = vld [vmem:[%s3421 + $0x10] sm:$0xff]
        %v3425 = vld [vmem:[%s3421 + $0x18] sm:$0xff]
        %v3426 = vld [vmem:[%s3421 + $0x20] sm:$0xff]
        %v3427 = vld [vmem:[%s3421 + $0x28] sm:$0xff]
        %v3428 = vld [vmem:[%s3421 + $0x30] sm:$0xff]
        %v3429 = vld [vmem:[%s3421 + $0x38] sm:$0xff]
        %v3430 = vld [vmem:[%s3421 + $0x40] sm:$0xff]
        %v3431 = vld [vmem:[%s3421 + $0x48] sm:$0xff]
        %v3433 = vsel %vm3337, %v3420, 0
        %3435 = vmatpush.msra.mxu0 0.0
        %3436 = vmatpush.msra.mxu0 0.0
        %3437 = vmatpush.msra.mxu0 0.0
        %3438 = vmatpush.msra.mxu0 0.0
        %3439 = vmatpush.msra.mxu0 0.0
        %3440 = vmatpush.msra.mxu0 0.0
        %3441 = vmatpush.msra.mxu0 %v3431
        %3442 = vmatpush.msra.mxu0 %v3430
        %3443 = vmatpush.msra.mxu0 %v3429
        %3444 = vmatpush.msra.mxu0 %v3428
        %3445 = vmatpush.msra.mxu0 %v3427
        %3446 = vmatpush.msra.mxu0 %v3426
        %3447 = vmatpush.msra.mxu0 %v3425
        %3448 = vmatpush.msra.mxu0 %v3424
        %3449 = vmatpush.msra.mxu0 %v3423
        %3450 = vmatpush.msra.mxu0 %v3422
        %3451 = vmatmul.f32.gmra.mxu0 %v3433
        %v3452 = vpop.f32.mrf.mxu0
        %v3453 = vadd.f32 0.0, %v3452
        %3454 = vdwg.mxu0
        %v3455 = vadd.f32 %v3419, %v3453
        %v3456 = vmax.f32 %v3312, %v3313
        %s3457 = scalar_lea.vmem %s7, 320
        %v3458 = vld [vmem:[%s3457] sm:$0xff]
        %v3459 = vld [vmem:[%s3457 + $0x8] sm:$0xff]
        %v3460 = vld [vmem:[%s3457 + $0x10] sm:$0xff]
        %v3461 = vld [vmem:[%s3457 + $0x18] sm:$0xff]
        %v3462 = vld [vmem:[%s3457 + $0x20] sm:$0xff]
        %v3463 = vld [vmem:[%s3457 + $0x28] sm:$0xff]
        %v3464 = vld [vmem:[%s3457 + $0x30] sm:$0xff]
        %v3465 = vld [vmem:[%s3457 + $0x38] sm:$0xff]
        %v3466 = vld [vmem:[%s3457 + $0x40] sm:$0xff]
        %v3467 = vld [vmem:[%s3457 + $0x48] sm:$0xff]
        %v3469 = vsel %vm3337, %v3456, 0
        %3471 = vmatpush.msra.mxu0 0.0
        %3472 = vmatpush.msra.mxu0 0.0
        %3473 = vmatpush.msra.mxu0 0.0
        %3474 = vmatpush.msra.mxu0 0.0
        %3475 = vmatpush.msra.mxu0 0.0
        %3476 = vmatpush.msra.mxu0 0.0
        %3477 = vmatpush.msra.mxu0 %v3467
        %3478 = vmatpush.msra.mxu0 %v3466
        %3479 = vmatpush.msra.mxu0 %v3465
        %3480 = vmatpush.msra.mxu0 %v3464
        %3481 = vmatpush.msra.mxu0 %v3463
        %3482 = vmatpush.msra.mxu0 %v3462
        %3483 = vmatpush.msra.mxu0 %v3461
        %3484 = vmatpush.msra.mxu0 %v3460
        %3485 = vmatpush.msra.mxu0 %v3459
        %3486 = vmatpush.msra.mxu0 %v3458
        %3487 = vmatmul.f32.gmra.mxu0 %v3469
        %v3488 = vpop.f32.mrf.mxu0
        %v3489 = vadd.f32 0.0, %v3488
        %3490 = vdwg.mxu0
        %v3491 = vadd.f32 %v3455, %v3489
        %v3492 = vld [vmem:[%s8] sm:$0x1]
        %v3494 = vperm.slane %v3492, 0
        %v3496 = vadd.f32 %v3491, %v3494
        %v3497 = vmax.f32 %v3496, 0.0
        %v3498 = vld [vmem:[%s9] sm:$0xff]
        %v3499 = vld [vmem:[%s9 + $0x8] sm:$0xff]
        %v3500 = vld [vmem:[%s9 + $0x10] sm:$0xff]
        %v3501 = vld [vmem:[%s9 + $0x18] sm:$0xff]
        %v3502 = vld [vmem:[%s9 + $0x20] sm:$0xff]
        %v3503 = vld [vmem:[%s9 + $0x28] sm:$0xff]
        %v3504 = vld [vmem:[%s9 + $0x30] sm:$0xff]
        %v3505 = vld [vmem:[%s9 + $0x38] sm:$0xff]
        %v3506 = vld [vmem:[%s9 + $0x40] sm:$0xff]
        %v3507 = vld [vmem:[%s9 + $0x48] sm:$0xff]
        %v3508 = vld [vmem:[%s9 + $0x50] sm:$0xff]
        %v3509 = vld [vmem:[%s9 + $0x58] sm:$0xff]
        %v3510 = vld [vmem:[%s9 + $0x60] sm:$0xff]
        %v3511 = vld [vmem:[%s9 + $0x68] sm:$0xff]
        %v3512 = vld [vmem:[%s9 + $0x70] sm:$0xff]
        %v3513 = vld [vmem:[%s10] sm:$0x1]
        %v3515 = vperm.slane %v3513, 0
        %vm3517 = vcmask 982016
        %v3519 = vsel %vm3517, %v3497, 0
        %3521 = vmatpush.msra.mxu0 0.0
        %3522 = vmatpush.msra.mxu0 %v3512
        %3523 = vmatpush.msra.mxu0 %v3511
        %3524 = vmatpush.msra.mxu0 %v3510
        %3525 = vmatpush.msra.mxu0 %v3509
        %3526 = vmatpush.msra.mxu0 %v3508
        %3527 = vmatpush.msra.mxu0 %v3507
        %3528 = vmatpush.msra.mxu0 %v3506
        %3529 = vmatpush.msra.mxu0 %v3505
        %3530 = vmatpush.msra.mxu0 %v3504
        %3531 = vmatpush.msra.mxu0 %v3503
        %3532 = vmatpush.msra.mxu0 %v3502
        %3533 = vmatpush.msra.mxu0 %v3501
        %3534 = vmatpush.msra.mxu0 %v3500
        %3535 = vmatpush.msra.mxu0 %v3499
        %3536 = vmatpush.msra.mxu0 %v3498
        %3537 = vmatmul.f32.gmra.mxu0 %v3519
        %v3538 = vpop.f32.mrf.mxu0
        %v3539 = vadd.f32 %v3515, %v3538
        %3540 = vdwg.mxu0
        %v3541 = vmax.f32 %v3539, 0.0
        %v3542 = vld [vmem:[%s11] sm:$0xff]
        %v3543 = vld [vmem:[%s11 + $0x8] sm:$0xff]
        %v3544 = vld [vmem:[%s11 + $0x10] sm:$0xff]
        %v3545 = vld [vmem:[%s11 + $0x18] sm:$0xff]
        %v3546 = vld [vmem:[%s11 + $0x20] sm:$0xff]
        %v3547 = vld [vmem:[%s11 + $0x28] sm:$0xff]
        %v3548 = vld [vmem:[%s11 + $0x30] sm:$0xff]
        %v3549 = vld [vmem:[%s11 + $0x38] sm:$0xf]
        %v3550 = vld [vmem:[%s12] sm:$0x1]
        %v3552 = vperm.slane %v3550, 0
        %vm3554 = vcmask 490496
        %v3556 = vsel %vm3554, %v3541, 0
        %v3559 = vsel %vm556, %v3549, 0
        %3561 = vmatpush.msra.mxu0 0.0
        %3562 = vmatpush.msra.mxu0 0.0
        %3563 = vmatpush.msra.mxu0 0.0
        %3564 = vmatpush.msra.mxu0 0.0
        %3565 = vmatpush.msra.mxu0 0.0
        %3566 = vmatpush.msra.mxu0 0.0
        %3567 = vmatpush.msra.mxu0 0.0
        %3568 = vmatpush.msra.mxu0 0.0
        %3569 = vmatpush.msra.mxu0 %v3559
        %3570 = vmatpush.msra.mxu0 %v3548
        %3571 = vmatpush.msra.mxu0 %v3547
        %3572 = vmatpush.msra.mxu0 %v3546
        %3573 = vmatpush.msra.mxu0 %v3545
        %3574 = vmatpush.msra.mxu0 %v3544
        %3575 = vmatpush.msra.mxu0 %v3543
        %3576 = vmatpush.msra.mxu0 %v3542
        %3577 = vmatmul.f32.gmra.mxu0 %v3556
        %v3578 = vpop.f32.mrf.mxu0
        %v3579 = vadd.f32 %v3552, %v3578
        %3580 = vdwg.mxu0
        %v3581 = vmax.f32 %v3579, 0.0
        %3582 = vst [vmem:[%s434] sm:$0xff] %v3581
        %s3583 = sand.u32 %s313, 1
        %s3584 = scalar_lea.sflag [#allocation4], %s3583
        %s3585 = sand.u32 %s313, 1
        %s3586 = smul.addr %s3585, 8
        %s3587 = scalar_lea.vmem [#allocation3], %s3586
        // Predicated region
        $region73: #{net_forward.1} parent=71 // pred_check
          %p3588 = pneg %p323
        $region74: #{net_forward.1} parent=71 // pred_check_branch
          %3590 = sbr.rel (%p3588) target = $region76
        $region75: #{net_forward.1} parent=71 // pred_region
          %3592 = vsyncadd %s3584, 0
          %s3593 = smul.addr %s27, 8
          %s3594 = scalar_lea.hbm %s13, %s3593
          %s3596 = sshll.u32 %s3587, 4
          %s3597 = int_to_ptr.vmem [resolvable:$true] %s3596
          %s3598 = sshll.u32 %s3594, 4
          %s3599 = int_to_ptr.hbm [resolvable:$true] %s3598
          %3601 = dma.vmem_to_hbm [thread:$0]  %s3597, 128, %s3599, %s3584
        $region76: #{net_forward.1} parent=71 // pred_fallthru
          _
      $region72: #{net_forward.1} parent=5 // pred_fallthru
        _
      %p3602 = scmp.le.s32.totalorder 2, %s22
      // Predicated region
      $region77: #{net_forward.1} parent=5 // pred_check
        %p3603 = pneg %p3602
      $region78: #{net_forward.1} parent=5 // pred_check_branch
        %3605 = sbr.rel (%p3603) target = $region80
      $region79: #{net_forward.1} parent=5 // pred_region
        %s3606 = ssub.s32 %s22, 2
        // Predicated region
        $region81: #{net_forward.1} parent=79 // pred_check
          %p3607 = pneg %p329
        $region82: #{net_forward.1} parent=79 // pred_check_branch
          %3609 = sbr.rel (%p3607) target = $region84
        $region83: #{net_forward.1} parent=79 // pred_region
          %s3610 = sand.u32 %s314, 1
          %s3611 = scalar_lea.sflag [#allocation4], %s3610
          %s3612 = sand.u32 %s314, 1
          %s3613 = smul.addr %s3612, 8
          %s3614 = scalar_lea.vmem [#allocation3], %s3613
          %3616 = dma.done %s3611, 128
        $region84: #{net_forward.1} parent=79 // pred_fallthru
          _
      $region80: #{net_forward.1} parent=5 // pred_fallthru
        _
    $region6: #{net_forward.1} parent=1 // loop_footer
      %s26 = sadd.s32 1, %s22
    $region7: #{net_forward.1} parent=1 // loop_footer_branch
      %21 = sbr.rel target = $region3
    $region8: #{net_forward.1} parent=1 // loop_exit
      _
    %3617 = vsyncpa [#allocation4], 1
    %s3618 = scalar_lea.sflag [#allocation4], 1
    %3619 = vsyncpa %s3618, 1

</llo_original>
